<compile_context>
chip_gen: v7x
topology: tpu7x:2x2x1
jax: 0.10.0
libtpu: 0.0.40
codegen_flags: <defaults>
</compile_context>

<pallas_src>
import functools

import jax
import jax.numpy as jnp
from jax.experimental import pallas as pl
from jax.experimental.pallas import tpu as pltpu


def _round_up(x, m):
    return ((x + m - 1) // m) * m


def _vmem_budget_bytes():
    """Generation-aware VMEM budget: ~75% of physical, capped at 96 MiB."""
    try:
        cap = pltpu.get_tpu_info().vmem_capacity_bytes
    except Exception:  # hardware query unavailable (e.g. emulation); assume 128 MiB
        cap = 128 * 1024 * 1024
    return int(min(cap * 3 // 4, 96 * 1024 * 1024))


def _mlp_kernel(x_ref, w1_ref, b1_ref, w2_ref, b2_ref, w3_ref, b3_ref,
                o_ref, acc_ref):
    k = pl.program_id(1)

    @pl.when(k == 0)
    def _init():
        acc_ref[...] = jnp.zeros_like(acc_ref)

    # Layer 1 partial product: cast the f32 x tile to bf16 on the VPU (free
    # slot, hidden under the MXU); accumulate f32 in VMEM scratch across K.
    acc_ref[...] += jnp.dot(x_ref[...].astype(jnp.bfloat16), w1_ref[...],
                            preferred_element_type=jnp.float32)

    @pl.when(k == pl.num_programs(1) - 1)
    def _finalize():
        # Layer 1 epilogue: bias + ReLU, re-cast to bf16 for the next MXU op.
        h1 = jnp.maximum(acc_ref[...] + b1_ref[...], 0.0).astype(jnp.bfloat16)
        # Dropout(0.5) -> identity in eval mode.
        h2 = jnp.dot(h1, w2_ref[...], preferred_element_type=jnp.float32)
        h2 = jnp.maximum(h2 + b2_ref[...], 0.0).astype(jnp.bfloat16)
        # Dropout(0.5) -> identity in eval mode.
        h3 = jnp.dot(h2, w3_ref[...], preferred_element_type=jnp.float32)
        o_ref[...] = (h3 + b3_ref[...]).astype(o_ref.dtype)


def prepare_params(params):
    """One-time preparation: bf16 weights, (1, H) f32 biases, lane-dense O."""
    w1, b1, w2, b2, w3, b3 = params
    out_dim = w3.shape[1]
    o_pad = _round_up(max(out_dim, 128), 128)
    return (
        w1.astype(jnp.bfloat16),
        b1.reshape(1, -1).astype(jnp.float32),
        w2.astype(jnp.bfloat16),
        b2.reshape(1, -1).astype(jnp.float32),
        jnp.pad(w3, ((0, 0), (0, o_pad - out_dim))).astype(jnp.bfloat16),
        jnp.pad(b3, (0, o_pad - out_dim)).reshape(1, -1).astype(jnp.float32),
    )


@functools.partial(jax.jit, static_argnames=("out_dim", "block_m"))
def dnn_forward(x, prepared, *, out_dim, block_m=None):
    """Fused DNN forward. x: (B, input_dim) f32, prepared = prepare_params(...)."""
    w1, b1, w2, b2, w3, b3 = prepared
    B, D = x.shape
    H1 = w1.shape[1]          # 512
    H2 = w2.shape[1]          # 128
    O_pad = w3.shape[1]       # lane-dense padded output dim (multiple of 128)

    # ---- M tile: fill the 256-row MXU; Pallas handles the ragged last tile.
    if block_m is None:
        block_m = 512 if B >= 4096 else 256
    bm = min(block_m, _round_up(B, 16))
    num_m = pl.cdiv(B, bm)

    # ---- K tiling only when a resident w1 would blow the VMEM budget. ------
    budget = _vmem_budget_bytes()
    bf16, f32 = 2, 4

    def vmem_bytes(bk):
        return (2 * bm * bk * f32                      # x tile (double-buffered)
                + 2 * bk * H1 * bf16                   # w1 block
                + 2 * (H1 * H2 + H2 * O_pad) * bf16    # w2 / w3
                + 2 * (H1 + H2 + O_pad) * f32          # biases
                + 2 * bm * O_pad * f32                 # output tile
                + bm * H1 * f32                        # acc scratch
                + bm * (H1 * bf16 + H2 * (f32 + bf16) + O_pad * f32))  # temps

    if vmem_bytes(D) <= budget // 2:
        bk, d_pad = D, D
        x_in, w1_in = x, w1
    else:
        bk = 1024
        for cand in (2048, 1024, 512, 256):
            if D % cand == 0:
                bk = cand
                break
        d_pad = _round_up(D, bk)
        x_in = jnp.pad(x, ((0, 0), (0, d_pad - D)))
        w1_in = jnp.pad(w1, ((0, d_pad - D), (0, 0)))
    num_k = d_pad // bk

    cost = pl.CostEstimate(
        flops=2 * B * (D * H1 + H1 * H2 + H2 * O_pad),
        transcendentals=0,
        bytes_accessed=(B * D * f32
                        + (D * H1 + H1 * H2 + H2 * O_pad) * bf16
                        + (H1 + H2 + O_pad) * f32
                        + B * O_pad * f32),
    )

    out_p = pl.pallas_call(
        _mlp_kernel,
        out_shape=jax.ShapeDtypeStruct((B, O_pad), jnp.float32),
        grid_spec=pltpu.PrefetchScalarGridSpec(
            num_scalar_prefetch=0,
            grid=(num_m, num_k),
            in_specs=[
                pl.BlockSpec((bm, bk), lambda i, k: (i, k)),       # x (f32)
                pl.BlockSpec((bk, H1), lambda i, k: (k, 0)),       # w1
                pl.BlockSpec((1, H1), lambda i, k: (0, 0)),        # b1
                pl.BlockSpec((H1, H2), lambda i, k: (0, 0)),       # w2
                pl.BlockSpec((1, H2), lambda i, k: (0, 0)),        # b2
                pl.BlockSpec((H2, O_pad), lambda i, k: (0, 0)),    # w3
                pl.BlockSpec((1, O_pad), lambda i, k: (0, 0)),     # b3
            ],
            out_specs=pl.BlockSpec((bm, O_pad), lambda i, k: (i, 0)),
            scratch_shapes=[pltpu.VMEM((bm, H1), jnp.float32)],
        ),
        compiler_params=pltpu.CompilerParams(
            dimension_semantics=("parallel", "arbitrary"),
            vmem_limit_bytes=budget,
        ),
        cost_estimate=cost,
    )(x_in, w1_in, b1, w2, b2, w3, b3)

    return out_p[:, :out_dim]


def init_params(key, input_dim, output_dim=2):
    """Deterministic init mirroring nn.Linear's uniform(-1/sqrt(fan_in), ...)."""
    dims = [(input_dim, 512), (512, 128), (128, output_dim)]
    params = []
    for i, (fan_in, fan_out) in enumerate(dims):
        kw, kb = jax.random.split(jax.random.fold_in(key, i))
        bound = float(fan_in) ** -0.5
        # Store weights pre-transposed: (in, out) so layers are `x @ W + b`.
        w = jax.random.uniform(kw, (fan_in, fan_out), jnp.float32, -bound, bound)
        b = jax.random.uniform(kb, (fan_out,), jnp.float32, -bound, bound)
        params += [w, b]
    return tuple(params)


def _reference(x, params):
    """Pure-JAX reference with the same bf16-operand / f32-accumulate recipe."""
    w1, b1, w2, b2, w3, b3 = params
    h = jnp.dot(x.astype(jnp.bfloat16), w1.astype(jnp.bfloat16),
                preferred_element_type=jnp.float32)
    h = jnp.maximum(h + b1, 0.0)
    h = jnp.dot(h.astype(jnp.bfloat16), w2.astype(jnp.bfloat16),
                preferred_element_type=jnp.float32)
    h = jnp.maximum(h + b2, 0.0)
    h = jnp.dot(h.astype(jnp.bfloat16), w3.astype(jnp.bfloat16),
                preferred_element_type=jnp.float32)
    return h + b3


if __name__ == "__main__":
    key = jax.random.PRNGKey(0)
    # batch=300 -> bm=256, grid=(2, 1): exercises the multi-step "parallel"
    # M grid plus a ragged last tile (44 valid rows) without wrapper padding.
    batch, input_dim, output_dim = 300, 64, 2

    kx, kp = jax.random.split(key)
    x = jax.random.normal(kx, (batch, input_dim), dtype=jnp.float32)
    params = init_params(kp, input_dim, output_dim)
    prepared = prepare_params(params)   # one-time bf16 cast / bias reshape

    out = dnn_forward(x, prepared, out_dim=output_dim)
    out = jax.block_until_ready(out)

    ref = _reference(x, params)
    assert out.shape == (batch, output_dim)
    max_err = float(jnp.max(jnp.abs(out - ref)))
    assert jnp.allclose(out, ref, atol=1e-2, rtol=1e-2), max_err

    print("KERNEL_OK")
</pallas_src>

<mosaic_0001>
module attributes {stable_mosaic.version = 11 : i64} {
  func.func @_mlp_kernel(%arg0: i32, %arg1: i32, %arg2: memref<256x64xf32, #tpu.memory_space<vmem>>, %arg3: memref<64x512xbf16, #tpu.memory_space<vmem>>, %arg4: memref<1x512xf32, #tpu.memory_space<vmem>>, %arg5: memref<512x128xbf16, #tpu.memory_space<vmem>>, %arg6: memref<1x128xf32, #tpu.memory_space<vmem>>, %arg7: memref<128x128xbf16, #tpu.memory_space<vmem>>, %arg8: memref<1x128xf32, #tpu.memory_space<vmem>>, %arg9: memref<256x128xf32, #tpu.memory_space<vmem>>, %arg10: memref<256x512xf32, #tpu.memory_space<vmem>>) attributes {dimension_semantics = [#tpu.dimension_semantics<parallel>, #tpu.dimension_semantics<arbitrary>], iteration_bounds = array<i64: 2, 1>, scalar_prefetch = 0 : i64, scratch_operands = 1 : i64, tpu.core_type = #tpu.core_type<tc>, window_params = [{transform_indices = @transform_0, window_bounds = array<i64: 256, 64>}, {transform_indices = @transform_1, window_bounds = array<i64: 64, 512>}, {pipeline_mode = #tpu.pipeline_mode<synchronous>, transform_indices = @transform_2, window_bounds = array<i64: 1, 512>}, {pipeline_mode = #tpu.pipeline_mode<synchronous>, transform_indices = @transform_3, window_bounds = array<i64: 512, 128>}, {pipeline_mode = #tpu.pipeline_mode<synchronous>, transform_indices = @transform_4, window_bounds = array<i64: 1, 128>}, {pipeline_mode = #tpu.pipeline_mode<synchronous>, transform_indices = @transform_5, window_bounds = array<i64: 128, 128>}, {pipeline_mode = #tpu.pipeline_mode<synchronous>, transform_indices = @transform_6, window_bounds = array<i64: 1, 128>}, {transform_indices = @transform_7, window_bounds = array<i64: 256, 128>}]} {
    %c0_i32 = arith.constant 0 : i32
    %0 = arith.cmpi eq, %arg1, %c0_i32 : i32
    %1 = arith.extui %0 : i1 to i32
    %c0_i32_0 = arith.constant 0 : i32
    %2 = arith.cmpi ne, %1, %c0_i32_0 : i32
    scf.if %2 {
      %cst_10 = arith.constant 0.000000e+00 : f32
      %13 = vector.broadcast %cst_10 : f32 to vector<256x512xf32>
      %c0_11 = arith.constant 0 : index
      %c0_12 = arith.constant 0 : index
      %14 = vector.load %arg10[%c0_11, %c0_12] : memref<256x512xf32, #tpu.memory_space<vmem>>, vector<256x512xf32>
      tpu.vector_store %arg10[%c0_11, %c0_12], %13 {strides = array<i32>} : memref<256x512xf32, #tpu.memory_space<vmem>>, vector<256x512xf32>,
    } else {
    }
    %c0 = arith.constant 0 : index
    %c0_1 = arith.constant 0 : index
    %3 = vector.load %arg10[%c0, %c0_1] : memref<256x512xf32, #tpu.memory_space<vmem>>, vector<256x512xf32>
    %c0_2 = arith.constant 0 : index
    %c0_3 = arith.constant 0 : index
    %4 = vector.load %arg2[%c0_2, %c0_3] : memref<256x64xf32, #tpu.memory_space<vmem>>, vector<256x64xf32>
    %5 = arith.truncf %4 : vector<256x64xf32> to vector<256x64xbf16>
    %c0_4 = arith.constant 0 : index
    %c0_5 = arith.constant 0 : index
    %6 = vector.load %arg3[%c0_4, %c0_5] : memref<64x512xbf16, #tpu.memory_space<vmem>>, vector<64x512xbf16>
    %cst = arith.constant dense<0.000000e+00> : vector<256x512xf32>
    %7 = tpu.matmul %5, %6, %cst {dimension_numbers = #tpu.dot_dimension_numbers<[1], [0], [0], [1], [0, 0, 1, 1], [], []>} : vector<256x64xbf16>, vector<64x512xbf16>, vector<256x512xf32> -> vector<256x512xf32>
    %8 = arith.addf %3, %7 : vector<256x512xf32>
    %c0_6 = arith.constant 0 : index
    %c0_7 = arith.constant 0 : index
    %9 = vector.load %arg10[%c0_6, %c0_7] : memref<256x512xf32, #tpu.memory_space<vmem>>, vector<256x512xf32>
    tpu.vector_store %arg10[%c0_6, %c0_7], %8 {strides = array<i32>} : memref<256x512xf32, #tpu.memory_space<vmem>>, vector<256x512xf32>,
    %c0_i32_8 = arith.constant 0 : i32
    %10 = arith.cmpi eq, %arg1, %c0_i32_8 : i32
    %11 = arith.extui %10 : i1 to i32
    %c0_i32_9 = arith.constant 0 : i32
    %12 = arith.cmpi ne, %11, %c0_i32_9 : i32
    scf.if %12 {
      %c0_10 = arith.constant 0 : index
      %c0_11 = arith.constant 0 : index
      %13 = vector.load %arg10[%c0_10, %c0_11] : memref<256x512xf32, #tpu.memory_space<vmem>>, vector<256x512xf32>
      %c0_12 = arith.constant 0 : index
      %c0_13 = arith.constant 0 : index
      %14 = vector.load %arg4[%c0_12, %c0_13] : memref<1x512xf32, #tpu.memory_space<vmem>>, vector<1x512xf32>
      %15 = vector.broadcast %14 : vector<1x512xf32> to vector<256x512xf32>
      %16 = arith.addf %13, %15 : vector<256x512xf32>
      %cst_14 = arith.constant 0.000000e+00 : f32
      %17 = vector.broadcast %cst_14 : f32 to vector<256x512xf32>
      %18 = arith.maximumf %16, %17 : vector<256x512xf32>
      %19 = arith.truncf %18 : vector<256x512xf32> to vector<256x512xbf16>
      %c0_15 = arith.constant 0 : index
      %c0_16 = arith.constant 0 : index
      %20 = vector.load %arg5[%c0_15, %c0_16] : memref<512x128xbf16, #tpu.memory_space<vmem>>, vector<512x128xbf16>
      %cst_17 = arith.constant dense<0.000000e+00> : vector<256x128xf32>
      %21 = tpu.matmul %19, %20, %cst_17 {dimension_numbers = #tpu.dot_dimension_numbers<[1], [0], [0], [1], [0, 0, 1, 1], [], []>} : vector<256x512xbf16>, vector<512x128xbf16>, vector<256x128xf32> -> vector<256x128xf32>
      %c0_18 = arith.constant 0 : index
      %c0_19 = arith.constant 0 : index
      %22 = vector.load %arg6[%c0_18, %c0_19] : memref<1x128xf32, #tpu.memory_space<vmem>>, vector<1x128xf32>
      %23 = vector.broadcast %22 : vector<1x128xf32> to vector<256x128xf32>
      %24 = arith.addf %21, %23 : vector<256x128xf32>
      %cst_20 = arith.constant 0.000000e+00 : f32
      %25 = vector.broadcast %cst_20 : f32 to vector<256x128xf32>
      %26 = arith.maximumf %24, %25 : vector<256x128xf32>
      %27 = arith.truncf %26 : vector<256x128xf32> to vector<256x128xbf16>
      %c0_21 = arith.constant 0 : index
      %c0_22 = arith.constant 0 : index
      %28 = vector.load %arg7[%c0_21, %c0_22] : memref<128x128xbf16, #tpu.memory_space<vmem>>, vector<128x128xbf16>
      %cst_23 = arith.constant dense<0.000000e+00> : vector<256x128xf32>
      %29 = tpu.matmul %27, %28, %cst_23 {dimension_numbers = #tpu.dot_dimension_numbers<[1], [0], [0], [1], [0, 0, 1, 1], [], []>} : vector<256x128xbf16>, vector<128x128xbf16>, vector<256x128xf32> -> vector<256x128xf32>
      %c0_24 = arith.constant 0 : index
      %c0_25 = arith.constant 0 : index
      %30 = vector.load %arg8[%c0_24, %c0_25] : memref<1x128xf32, #tpu.memory_space<vmem>>, vector<1x128xf32>
      %31 = vector.broadcast %30 : vector<1x128xf32> to vector<256x128xf32>
      %32 = arith.addf %29, %31 : vector<256x128xf32>
      %c0_26 = arith.constant 0 : index
      %c0_27 = arith.constant 0 : index
      %33 = vector.load %arg9[%c0_26, %c0_27] : memref<256x128xf32, #tpu.memory_space<vmem>>, vector<256x128xf32>
      tpu.vector_store %arg9[%c0_26, %c0_27], %32 {strides = array<i32>} : memref<256x128xf32, #tpu.memory_space<vmem>>, vector<256x128xf32>,
    } else {
    }
    return
  }
  func.func @transform_0(%arg0: i32, %arg1: i32) -> (i32, i32) {
    %c0_i32 = arith.constant 0 : i32
    return %arg0, %arg1 : i32, i32
  }
  func.func @transform_1(%arg0: i32, %arg1: i32) -> (i32, i32) {
    %c0_i32 = arith.constant 0 : i32
    %c0_i32_0 = arith.constant 0 : i32
    return %arg1, %c0_i32 : i32, i32
  }
  func.func @transform_2(%arg0: i32, %arg1: i32) -> (i32, i32) {
    %c0_i32 = arith.constant 0 : i32
    %c0_i32_0 = arith.constant 0 : i32
    %c0_i32_1 = arith.constant 0 : i32
    return %c0_i32, %c0_i32_0 : i32, i32
  }
  func.func @transform_3(%arg0: i32, %arg1: i32) -> (i32, i32) {
    %c0_i32 = arith.constant 0 : i32
    %c0_i32_0 = arith.constant 0 : i32
    %c0_i32_1 = arith.constant 0 : i32
    return %c0_i32, %c0_i32_0 : i32, i32
  }
  func.func @transform_4(%arg0: i32, %arg1: i32) -> (i32, i32) {
    %c0_i32 = arith.constant 0 : i32
    %c0_i32_0 = arith.constant 0 : i32
    %c0_i32_1 = arith.constant 0 : i32
    return %c0_i32, %c0_i32_0 : i32, i32
  }
  func.func @transform_5(%arg0: i32, %arg1: i32) -> (i32, i32) {
    %c0_i32 = arith.constant 0 : i32
    %c0_i32_0 = arith.constant 0 : i32
    %c0_i32_1 = arith.constant 0 : i32
    return %c0_i32, %c0_i32_0 : i32, i32
  }
  func.func @transform_6(%arg0: i32, %arg1: i32) -> (i32, i32) {
    %c0_i32 = arith.constant 0 : i32
    %c0_i32_0 = arith.constant 0 : i32
    %c0_i32_1 = arith.constant 0 : i32
    return %c0_i32, %c0_i32_0 : i32, i32
  }
  func.func @transform_7(%arg0: i32, %arg1: i32) -> (i32, i32) {
    %c0_i32 = arith.constant 0 : i32
    %c0_i32_0 = arith.constant 0 : i32
    return %arg0, %c0_i32 : i32, i32
  }
}

</mosaic_0001>

<llo_original>
// kernel: dnn_forward.1
$region0: #{dnn_forward.1}
  #allocation0 [shape = 'u32[]', space=smem, size = 0x4, offset = 0x4, fixed_abs, tag = 'smem constant byte address 0x4 - core index']
  #allocation1 [shape = 'u32[144,128]{1,0:T(1,128)}', space=vmem, size = 0x12000, scoped, tag = 'internal scratch']
  #allocation2 [shape = 'f32[256,512]{1,0:T(8,128)}', space=vmem, size = 0x80000, scoped, tag = 'scratch operand']
  %s0 = inlined_call_operand.hbm [shape: f32[300,64], index: 0, kind: input, shape index: {}]
  %s1 = inlined_call_operand.hbm [shape: bf16[64,512], index: 1, kind: input, shape index: {}]
  %s2 = inlined_call_operand.hbm [shape: f32[1,512], index: 2, kind: input, shape index: {}]
  %s3 = inlined_call_operand.hbm [shape: bf16[512,128], index: 3, kind: input, shape index: {}]
  %s4 = inlined_call_operand.hbm [shape: f32[1,128], index: 4, kind: input, shape index: {}]
  %s5 = inlined_call_operand.hbm [shape: bf16[128,128], index: 5, kind: input, shape index: {}]
  %s6 = inlined_call_operand.hbm [shape: f32[1,128], index: 6, kind: input, shape index: {}]
  %s7 = inlined_call_operand.hbm [shape: f32[300,128], index: 7, kind: output, shape index: {}]
  %s8 = sld [smem:[#allocation0]]
  $region97: #{dnn_forward.1} parent=0
    _
  %s10 = ssub.s32 1, %s8
  %s11 = scalar_select 0, %s10, %s8
  $region1: #{dnn_forward.1} parent=0
    #allocation3 [shape = 'u8[262144]{0}', space=vmem, size = 0x40000, scoped, tag = 'input window, operand 0']
    #allocation4 [shape = 's32[2]{0}', space=sflag, size = 0x8, scoped, tag = 'scoped memory for dnn_forward.1']
    #allocation5 [shape = 's32[2]{0}', space=sflag, size = 0x8, scoped, tag = 'scoped memory for dnn_forward.1']
    #allocation6 [shape = 'u8[65536]{0}', space=vmem, size = 0x10000, scoped, tag = 'input window, operand 1, single buffered']
    #allocation7 [shape = 's32[1]{0}', space=sflag, size = 0x4, scoped, tag = 'scoped memory for dnn_forward.1']
    #allocation8 [shape = 'u8[2048]{0}', space=vmem, size = 0x800, scoped, tag = 'input window, operand 2, single buffered']
    #allocation9 [shape = 'u8[131072]{0}', space=vmem, size = 0x20000, scoped, tag = 'input window, operand 3, single buffered']
    #allocation10 [shape = 's32[1]{0}', space=sflag, size = 0x4, scoped, tag = 'scoped memory for dnn_forward.1']
    #allocation11 [shape = 'u8[512]{0}', space=vmem, size = 0x400, scoped, tag = 'input window, operand 4, single buffered']
    #allocation12 [shape = 'u8[32768]{0}', space=vmem, size = 0x8000, scoped, tag = 'input window, operand 5, single buffered']
    #allocation13 [shape = 's32[1]{0}', space=sflag, size = 0x4, scoped, tag = 'scoped memory for dnn_forward.1']
    #allocation14 [shape = 'u8[512]{0}', space=vmem, size = 0x400, scoped, tag = 'input window, operand 6, single buffered']
    #allocation15 [shape = 'u8[262144]{0}', space=vmem, size = 0x40000, scoped, tag = 'output window, operand 0']
    %12 = vsyncpa [#allocation4], 0
    %s13 = scalar_lea.sflag [#allocation4], 1
    %14 = vsyncpa %s13, 0
    %15 = vsyncpa [#allocation7], 0
    %16 = vsyncpa [#allocation10], 0
    %17 = vsyncpa [#allocation13], 0
    %18 = vsyncpa [#allocation5], 0
    %s19 = scalar_lea.sflag [#allocation5], 1
    %20 = vsyncpa %s19, 0
    loop: start=0, step=1, limit=4
    $region2: #{dnn_forward.1} parent=1 // loop_pre_header
      _
    $region3: #{dnn_forward.1} parent=1 // loop_header
      %s22 = sphi 0, %s26
      %p23 = scmp.ge.s32.totalorder %s22, 4
      %s29 = sphi 0, %s41
      %s30 = sphi 0, %s37
      %s31 = sphi 0, %s29
      %s32 = sphi 0, %s30
      %s33 = sphi 0, %s31
      %s34 = sphi 0, %s32
      %s46 = sphi 0, %s48
      %s49 = sphi 0, %s46
      %s50 = sphi 0, %s49
      %s66 = sphi 0, %s50
      %s72 = sphi 0, %s74
      %s75 = sphi 0, %s72
      %s76 = sphi 0, %s75
      %s92 = sphi 0, %s76
      %s96 = sphi 0, %s96
      %s98 = sphi 0, %s96
      %s99 = sphi 0, %s98
      %s113 = sphi 0, %s99
      %s117 = sphi 0, %s117
      %s119 = sphi 0, %s117
      %s120 = sphi 0, %s119
      %s134 = sphi 0, %s120
      %s138 = sphi 0, %s138
      %s140 = sphi 0, %s138
      %s141 = sphi 0, %s140
      %s155 = sphi 0, %s141
      %s159 = sphi 0, %s159
      %s161 = sphi 0, %s159
      %s162 = sphi 0, %s161
      %s176 = sphi 0, %s162
      %s180 = sphi 0, %s180
      %s182 = sphi 0, %s180
      %s183 = sphi 0, %s182
      %s197 = sphi 0, %s183
      %s203 = sphi 0, %s205
      %s206 = sphi 0, %s203
      %s207 = sphi 0, %s206
      %s223 = sphi 0, %s207
    $region4: #{dnn_forward.1} parent=1 // loop_header_branch
      %25 = sbr.rel (%p23) target = $region8
    $region5: #{dnn_forward.1} parent=1 // loop_body
      %s27 = ssub.s32 %s22, 1
      %s28 = ssub.s32 %s22, 2
      %s35 = sadd.s32 1, %s30
      %p36 = scmp.ge.s32.totalorder %s35, 1
      %s37 = scalar_select %p36, 0, %s35
      %s38 = sadd.s32 1, %s29
      %s39 = scalar_select %p36, %s38, %s29
      %p40 = scmp.ge.s32.totalorder %s39, 2
      %s41 = scalar_select %p40, 0, %s39
      %s42 = ssub.s32 %s29, %s41
      %s43 = ssub.s32 %s30, %s37
      %s44 = sor.u32 %s42, %s43
      %p45 = scmp.eq.s32.totalorder %s44, 0
      %s47 = sadd.s32 %s46, 1
      %s48 = scalar_select %p45, %s46, %s47
      %p51 = pneg %p45
      %p52 = scmp.eq.s32.totalorder %s22, 1
      %p53 = por %p51, %p52
      %p54 = scmp.ne.s32.totalorder %s46, %s49
      %p55 = scmp.eq.s32.totalorder %s22, 0
      %p56 = por %p54, %p55
      %p57 = scmp.ne.s32.totalorder %s46, %s49
      %p58 = scmp.eq.s32.totalorder %s27, 1
      %p59 = por %p57, %p58
      %p60 = scmp.ne.s32.totalorder %s49, %s50
      %p61 = scmp.eq.s32.totalorder %s27, 0
      %p62 = por %p60, %p61
      %p63 = scmp.ne.s32.totalorder %s49, %s50
      %p64 = scmp.eq.s32.totalorder %s28, 1
      %p65 = por %p63, %p64
      %p67 = scmp.ne.s32.totalorder %s50, %s66
      %p68 = scmp.eq.s32.totalorder %s28, 0
      %p69 = por %p67, %p68
      %s70 = ssub.s32 %s30, %s37
      %p71 = scmp.eq.s32.totalorder %s70, 0
      %s73 = sadd.s32 %s72, 1
      %s74 = scalar_select %p71, %s72, %s73
      %p77 = pneg %p71
      %p78 = scmp.eq.s32.totalorder %s22, 1
      %p79 = por %p77, %p78
      %p80 = scmp.ne.s32.totalorder %s72, %s75
      %p81 = scmp.eq.s32.totalorder %s22, 0
      %p82 = por %p80, %p81
      %p83 = scmp.ne.s32.totalorder %s72, %s75
      %p84 = scmp.eq.s32.totalorder %s27, 1
      %p85 = por %p83, %p84
      %p86 = scmp.ne.s32.totalorder %s75, %s76
      %p87 = scmp.eq.s32.totalorder %s27, 0
      %p88 = por %p86, %p87
      %p89 = scmp.ne.s32.totalorder %s75, %s76
      %p90 = scmp.eq.s32.totalorder %s28, 1
      %p91 = por %p89, %p90
      %p93 = scmp.ne.s32.totalorder %s76, %s92
      %p94 = scmp.eq.s32.totalorder %s28, 0
      %p95 = por %p93, %p94
      %s97 = sadd.s32 %s96, 1
      %p100 = scmp.eq.s32.totalorder %s22, 1
      %p101 = scmp.ne.s32.totalorder %s96, %s98
      %p102 = scmp.eq.s32.totalorder %s22, 0
      %p103 = por %p101, %p102
      %p104 = scmp.ne.s32.totalorder %s96, %s98
      %p105 = scmp.eq.s32.totalorder %s27, 1
      %p106 = por %p104, %p105
      %p107 = scmp.ne.s32.totalorder %s98, %s99
      %p108 = scmp.eq.s32.totalorder %s27, 0
      %p109 = por %p107, %p108
      %p110 = scmp.ne.s32.totalorder %s98, %s99
      %p111 = scmp.eq.s32.totalorder %s28, 1
      %p112 = por %p110, %p111
      %p114 = scmp.ne.s32.totalorder %s99, %s113
      %p115 = scmp.eq.s32.totalorder %s28, 0
      %p116 = por %p114, %p115
      %s118 = sadd.s32 %s117, 1
      %p121 = scmp.eq.s32.totalorder %s22, 1
      %p122 = scmp.ne.s32.totalorder %s117, %s119
      %p123 = scmp.eq.s32.totalorder %s22, 0
      %p124 = por %p122, %p123
      %p125 = scmp.ne.s32.totalorder %s117, %s119
      %p126 = scmp.eq.s32.totalorder %s27, 1
      %p127 = por %p125, %p126
      %p128 = scmp.ne.s32.totalorder %s119, %s120
      %p129 = scmp.eq.s32.totalorder %s27, 0
      %p130 = por %p128, %p129
      %p131 = scmp.ne.s32.totalorder %s119, %s120
      %p132 = scmp.eq.s32.totalorder %s28, 1
      %p133 = por %p131, %p132
      %p135 = scmp.ne.s32.totalorder %s120, %s134
      %p136 = scmp.eq.s32.totalorder %s28, 0
      %p137 = por %p135, %p136
      %s139 = sadd.s32 %s138, 1
      %p142 = scmp.eq.s32.totalorder %s22, 1
      %p143 = scmp.ne.s32.totalorder %s138, %s140
      %p144 = scmp.eq.s32.totalorder %s22, 0
      %p145 = por %p143, %p144
      %p146 = scmp.ne.s32.totalorder %s138, %s140
      %p147 = scmp.eq.s32.totalorder %s27, 1
      %p148 = por %p146, %p147
      %p149 = scmp.ne.s32.totalorder %s140, %s141
      %p150 = scmp.eq.s32.totalorder %s27, 0
      %p151 = por %p149, %p150
      %p152 = scmp.ne.s32.totalorder %s140, %s141
      %p153 = scmp.eq.s32.totalorder %s28, 1
      %p154 = por %p152, %p153
      %p156 = scmp.ne.s32.totalorder %s141, %s155
      %p157 = scmp.eq.s32.totalorder %s28, 0
      %p158 = por %p156, %p157
      %s160 = sadd.s32 %s159, 1
      %p163 = scmp.eq.s32.totalorder %s22, 1
      %p164 = scmp.ne.s32.totalorder %s159, %s161
      %p165 = scmp.eq.s32.totalorder %s22, 0
      %p166 = por %p164, %p165
      %p167 = scmp.ne.s32.totalorder %s159, %s161
      %p168 = scmp.eq.s32.totalorder %s27, 1
      %p169 = por %p167, %p168
      %p170 = scmp.ne.s32.totalorder %s161, %s162
      %p171 = scmp.eq.s32.totalorder %s27, 0
      %p172 = por %p170, %p171
      %p173 = scmp.ne.s32.totalorder %s161, %s162
      %p174 = scmp.eq.s32.totalorder %s28, 1
      %p175 = por %p173, %p174
      %p177 = scmp.ne.s32.totalorder %s162, %s176
      %p178 = scmp.eq.s32.totalorder %s28, 0
      %p179 = por %p177, %p178
      %s181 = sadd.s32 %s180, 1
      %p184 = scmp.eq.s32.totalorder %s22, 1
      %p185 = scmp.ne.s32.totalorder %s180, %s182
      %p186 = scmp.eq.s32.totalorder %s22, 0
      %p187 = por %p185, %p186
      %p188 = scmp.ne.s32.totalorder %s180, %s182
      %p189 = scmp.eq.s32.totalorder %s27, 1
      %p190 = por %p188, %p189
      %p191 = scmp.ne.s32.totalorder %s182, %s183
      %p192 = scmp.eq.s32.totalorder %s27, 0
      %p193 = por %p191, %p192
      %p194 = scmp.ne.s32.totalorder %s182, %s183
      %p195 = scmp.eq.s32.totalorder %s28, 1
      %p196 = por %p194, %p195
      %p198 = scmp.ne.s32.totalorder %s183, %s197
      %p199 = scmp.eq.s32.totalorder %s28, 0
      %p200 = por %p198, %p199
      %s201 = ssub.s32 %s29, %s41
      %p202 = scmp.eq.s32.totalorder %s201, 0
      %s204 = sadd.s32 %s203, 1
      %s205 = scalar_select %p202, %s203, %s204
      %p208 = pneg %p202
      %p209 = scmp.eq.s32.totalorder %s22, 1
      %p210 = por %p208, %p209
      %p211 = scmp.ne.s32.totalorder %s203, %s206
      %p212 = scmp.eq.s32.totalorder %s22, 0
      %p213 = por %p211, %p212
      %p214 = scmp.ne.s32.totalorder %s203, %s206
      %p215 = scmp.eq.s32.totalorder %s27, 1
      %p216 = por %p214, %p215
      %p217 = scmp.ne.s32.totalorder %s206, %s207
      %p218 = scmp.eq.s32.totalorder %s27, 0
      %p219 = por %p217, %p218
      %p220 = scmp.ne.s32.totalorder %s206, %s207
      %p221 = scmp.eq.s32.totalorder %s28, 1
      %p222 = por %p220, %p221
      %p224 = scmp.ne.s32.totalorder %s207, %s223
      %p225 = scmp.eq.s32.totalorder %s28, 0
      %p226 = por %p224, %p225
      %p227 = scmp.le.s32.totalorder 1, %s22
      %p228 = scmp.lt.s32.totalorder %s22, 3
      %p229 = pnand %p227, %p228
      %p230 = pneg %p229
      // Predicated region
      $region9: #{dnn_forward.1} parent=5 // pred_check
        _
      $region10: #{dnn_forward.1} parent=5 // pred_check_branch
        %232 = sbr.rel (%p229) target = $region12
      $region11: #{dnn_forward.1} parent=5 // pred_region
        %s233 = ssub.s32 %s22, 1
        // Predicated region
        $region13: #{dnn_forward.1} parent=11 // pred_check
          %p234 = pneg %p88
        $region14: #{dnn_forward.1} parent=11 // pred_check_branch
          %236 = sbr.rel (%p234) target = $region16
        $region15: #{dnn_forward.1} parent=11 // pred_region
          %s237 = smul.u32 8, %s32
          %s239 = ssub.s32 2048, 2048
          %240 = vsyncadd [#allocation7], %s239
          %s241 = smul.addr %s237, 4
          %s242 = smul.addr %s241, 64
          %s243 = scalar_lea.hbm %s1, %s242
          %s244 = sshll.u32 [#allocation6], 4
          %s245 = int_to_ptr.vmem [resolvable:$true] %s244
          %250 = dma.hbm_to_vmem [thread:$0]  %s243, 2048, %s245, [#allocation7], 256, 256, 16
        $region16: #{dnn_forward.1} parent=11 // pred_fallthru
          _
        // Predicated region
        $region17: #{dnn_forward.1} parent=11 // pred_check
          %p251 = pneg %p109
        $region18: #{dnn_forward.1} parent=11 // pred_check_branch
          %253 = sbr.rel (%p251) target = $region20
        $region19: #{dnn_forward.1} parent=11 // pred_region
          %s255 = ssub.s32 64, 64
          %256 = vsyncadd [#allocation7], %s255
          %s258 = sshll.u32 [#allocation8], 4
          %s259 = int_to_ptr.vmem [resolvable:$true] %s258
          %261 = dma.hbm_to_vmem [thread:$0]  %s2, 64, %s259, [#allocation7]
        $region20: #{dnn_forward.1} parent=11 // pred_fallthru
          _
        // Predicated region
        $region21: #{dnn_forward.1} parent=11 // pred_check
          %p262 = pneg %p130
        $region22: #{dnn_forward.1} parent=11 // pred_check_branch
          %264 = sbr.rel (%p262) target = $region24
        $region23: #{dnn_forward.1} parent=11 // pred_region
          %s266 = ssub.s32 4096, 4096
          %267 = vsyncadd [#allocation10], %s266
          %s268 = sshll.u32 [#allocation9], 4
          %s269 = int_to_ptr.vmem [resolvable:$true] %s268
          %274 = dma.hbm_to_vmem [thread:$0]  %s3, 4096, %s269, [#allocation10], 64, 64, 4
        $region24: #{dnn_forward.1} parent=11 // pred_fallthru
          _
        // Predicated region
        $region25: #{dnn_forward.1} parent=11 // pred_check
          %p275 = pneg %p151
        $region26: #{dnn_forward.1} parent=11 // pred_check_branch
          %277 = sbr.rel (%p275) target = $region28
        $region27: #{dnn_forward.1} parent=11 // pred_region
          %s279 = ssub.s32 16, 16
          %280 = vsyncadd [#allocation10], %s279
          %s282 = sshll.u32 [#allocation11], 4
          %s283 = int_to_ptr.vmem [resolvable:$true] %s282
          %285 = dma.hbm_to_vmem [thread:$0]  %s4, 16, %s283, [#allocation10]
        $region28: #{dnn_forward.1} parent=11 // pred_fallthru
          _
        // Predicated region
        $region29: #{dnn_forward.1} parent=11 // pred_check
          %p286 = pneg %p172
        $region30: #{dnn_forward.1} parent=11 // pred_check_branch
          %288 = sbr.rel (%p286) target = $region32
        $region31: #{dnn_forward.1} parent=11 // pred_region
          %s290 = ssub.s32 1024, 1024
          %291 = vsyncadd [#allocation13], %s290
          %s292 = sshll.u32 [#allocation12], 4
          %s293 = int_to_ptr.vmem [resolvable:$true] %s292
          %298 = dma.hbm_to_vmem [thread:$0]  %s5, 1024, %s293, [#allocation13], 64, 64, 4
        $region32: #{dnn_forward.1} parent=11 // pred_fallthru
          _
        // Predicated region
        $region33: #{dnn_forward.1} parent=11 // pred_check
          %p299 = pneg %p193
        $region34: #{dnn_forward.1} parent=11 // pred_check_branch
          %301 = sbr.rel (%p299) target = $region36
        $region35: #{dnn_forward.1} parent=11 // pred_region
          %s303 = ssub.s32 16, 16
          %304 = vsyncadd [#allocation13], %s303
          %s306 = sshll.u32 [#allocation14], 4
          %s307 = int_to_ptr.vmem [resolvable:$true] %s306
          %309 = dma.hbm_to_vmem [thread:$0]  %s6, 16, %s307, [#allocation13]
        $region36: #{dnn_forward.1} parent=11 // pred_fallthru
          _
      $region12: #{dnn_forward.1} parent=5 // pred_fallthru
        _
      %p310 = scmp.lt.s32.totalorder %s22, 2
      // Predicated region
      $region37: #{dnn_forward.1} parent=5 // pred_check
        %p311 = pneg %p310
      $region38: #{dnn_forward.1} parent=5 // pred_check_branch
        %313 = sbr.rel (%p311) target = $region40
      $region39: #{dnn_forward.1} parent=5 // pred_region
        // Predicated region
        $region41: #{dnn_forward.1} parent=39 // pred_check
          %p314 = pneg %p56
        $region42: #{dnn_forward.1} parent=39 // pred_check_branch
          %316 = sbr.rel (%p314) target = $region44
        $region43: #{dnn_forward.1} parent=39 // pred_region
          %s317 = sand.u32 %s46, 1
          %s318 = scalar_lea.sflag [#allocation4], %s317
          %s319 = sand.u32 %s46, 1
          %s320 = smul.addr %s319, 256
          %s321 = scalar_lea.vmem [#allocation3], %s320
          %s322 = smul.u32 32, %s29
          %s323 = ssub.s32 38, %s322
          %p324 = scmp.lt.s32.totalorder %s323, 32
          %s325 = scalar_select %p324, %s323, 32
          %s326 = smul.u32 128, %s325
          %s328 = ssub.s32 4096, %s326
          %329 = vsyncadd %s318, %s328
          %p330 = scmp.ne.s32.totalorder 0, %s326
          %s331 = sadd.s32 %s30, %s322
          %s332 = smul.addr %s331, 128
          %s333 = scalar_lea.hbm %s0, %s332
          %s334 = smul.u32 8, %s325
          %s335 = sshll.u32 %s321, 4
          %s336 = int_to_ptr.vmem [resolvable:$true] %s335
          %s337 = sshll.u32 %s334, 4
          %341 = dma.hbm_to_vmem [thread:$0]  (%p330), %s333, %s337, %s336, %s318, 128, 128, 8
        $region44: #{dnn_forward.1} parent=39 // pred_fallthru
          _
      $region40: #{dnn_forward.1} parent=5 // pred_fallthru
        _
      %p342 = scmp.le.s32.totalorder 1, %s22
      %p343 = scmp.lt.s32.totalorder %s22, 3
      %p344 = pnand %p342, %p343
      %p345 = pneg %p344
      // Predicated region
      $region45: #{dnn_forward.1} parent=5 // pred_check
        _
      $region46: #{dnn_forward.1} parent=5 // pred_check_branch
        %347 = sbr.rel (%p344) target = $region48
      $region47: #{dnn_forward.1} parent=5 // pred_region
        %s348 = ssub.s32 %s22, 1
        %s349 = sand.u32 %s49, 1
        %s350 = scalar_lea.sflag [#allocation4], %s349
        %s351 = sand.u32 %s49, 1
        %s352 = smul.addr %s351, 256
        %s353 = scalar_lea.vmem [#allocation3], %s352
        // Predicated region
        $region49: #{dnn_forward.1} parent=47 // pred_check
          %p354 = pneg %p62
        $region50: #{dnn_forward.1} parent=47 // pred_check_branch
          %356 = sbr.rel (%p354) target = $region52
        $region51: #{dnn_forward.1} parent=47 // pred_region
          %357 = dma.done %s350, 4096
        $region52: #{dnn_forward.1} parent=47 // pred_fallthru
          _
        // Predicated region
        $region53: #{dnn_forward.1} parent=47 // pred_check
          %p358 = pneg %p88
        $region54: #{dnn_forward.1} parent=47 // pred_check_branch
          %360 = sbr.rel (%p358) target = $region56
        $region55: #{dnn_forward.1} parent=47 // pred_region
          %361 = dma.done [#allocation7], 2048
        $region56: #{dnn_forward.1} parent=47 // pred_fallthru
          _
        // Predicated region
        $region57: #{dnn_forward.1} parent=47 // pred_check
          %p362 = pneg %p109
        $region58: #{dnn_forward.1} parent=47 // pred_check_branch
          %364 = sbr.rel (%p362) target = $region60
        $region59: #{dnn_forward.1} parent=47 // pred_region
          %365 = dma.done [#allocation7], 64
        $region60: #{dnn_forward.1} parent=47 // pred_fallthru
          _
        // Predicated region
        $region61: #{dnn_forward.1} parent=47 // pred_check
          %p366 = pneg %p130
        $region62: #{dnn_forward.1} parent=47 // pred_check_branch
          %368 = sbr.rel (%p366) target = $region64
        $region63: #{dnn_forward.1} parent=47 // pred_region
          %369 = dma.done [#allocation10], 4096
        $region64: #{dnn_forward.1} parent=47 // pred_fallthru
          _
        // Predicated region
        $region65: #{dnn_forward.1} parent=47 // pred_check
          %p370 = pneg %p151
        $region66: #{dnn_forward.1} parent=47 // pred_check_branch
          %372 = sbr.rel (%p370) target = $region68
        $region67: #{dnn_forward.1} parent=47 // pred_region
          %373 = dma.done [#allocation10], 16
        $region68: #{dnn_forward.1} parent=47 // pred_fallthru
          _
        // Predicated region
        $region69: #{dnn_forward.1} parent=47 // pred_check
          %p374 = pneg %p172
        $region70: #{dnn_forward.1} parent=47 // pred_check_branch
          %376 = sbr.rel (%p374) target = $region72
        $region71: #{dnn_forward.1} parent=47 // pred_region
          %377 = dma.done [#allocation13], 1024
        $region72: #{dnn_forward.1} parent=47 // pred_fallthru
          _
        // Predicated region
        $region73: #{dnn_forward.1} parent=47 // pred_check
          %p378 = pneg %p193
        $region74: #{dnn_forward.1} parent=47 // pred_check_branch
          %380 = sbr.rel (%p378) target = $region76
        $region75: #{dnn_forward.1} parent=47 // pred_region
          %381 = dma.done [#allocation13], 16
        $region76: #{dnn_forward.1} parent=47 // pred_fallthru
          _
        %s382 = sand.u32 %s49, 1
        %s383 = scalar_lea.sflag [#allocation4], %s382
        %s384 = sand.u32 %s49, 1
        %s385 = smul.addr %s384, 256
        %s386 = scalar_lea.vmem [#allocation3], %s385
        %p387 = pneg %p62
        %p388 = pneg %p59
        %p389 = pneg %p88
        %p390 = pneg %p85
        %p391 = pneg %p109
        %p392 = pneg %p106
        %p393 = pneg %p130
        %p394 = pneg %p127
        %p395 = pneg %p151
        %p396 = pneg %p148
        %p397 = pneg %p172
        %p398 = pneg %p169
        %p399 = pneg %p193
        %p400 = pneg %p190
        %p401 = pneg %p219
        %p402 = pneg %p216
        %s403 = sand.u32 %s206, 1
        %s404 = scalar_lea.sflag [#allocation5], %s403
        %s405 = sand.u32 %s206, 1
        %s406 = smul.addr %s405, 256
        %s407 = scalar_lea.vmem [#allocation15], %s406
        %s408 = smul.u32 32, %s31
        %s409 = ssub.s32 38, %s408
        %p410 = scmp.lt.s32.totalorder %s409, 32
        %s411 = scalar_select %p410, %s409, 32
        %s412 = smul.u32 128, %s411
        %s413 = smul.u32 8, %s32
        %s414 = smul.u32 32, %s31
        %s415 = ssub.s32 38, %s414
        %p416 = scmp.lt.s32.totalorder %s415, 32
        %s417 = scalar_select %p416, %s415, 32
        %s418 = smul.u32 128, %s417
        %p420 = scmp.eq.s32.totalorder %s32, 0
        // Predicated region
        $region77: #{dnn_forward.1} parent=47 // pred_check
          %p421 = pneg %p420
        $region78: #{dnn_forward.1} parent=47 // pred_check_branch
          %423 = sbr.rel (%p421) target = $region80
        $region79: #{dnn_forward.1} parent=47 // pred_region
          %424 = vst [vmem:[#allocation2] sm:$0xff] 0.0
          %425 = vst [vmem:[#allocation2 + $0x8] sm:$0xff] 0.0
          %426 = vst [vmem:[#allocation2 + $0x10] sm:$0xff] 0.0
          %427 = vst [vmem:[#allocation2 + $0x18] sm:$0xff] 0.0
          %428 = vst [vmem:[#allocation2 + $0x20] sm:$0xff] 0.0
          %429 = vst [vmem:[#allocation2 + $0x28] sm:$0xff] 0.0
          %430 = vst [vmem:[#allocation2 + $0x30] sm:$0xff] 0.0
          %431 = vst [vmem:[#allocation2 + $0x38] sm:$0xff] 0.0
          %432 = vst [vmem:[#allocation2 + $0x40] sm:$0xff] 0.0
          %433 = vst [vmem:[#allocation2 + $0x48] sm:$0xff] 0.0
          %434 = vst [vmem:[#allocation2 + $0x50] sm:$0xff] 0.0
          %435 = vst [vmem:[#allocation2 + $0x58] sm:$0xff] 0.0
          %436 = vst [vmem:[#allocation2 + $0x60] sm:$0xff] 0.0
          %437 = vst [vmem:[#allocation2 + $0x68] sm:$0xff] 0.0
          %438 = vst [vmem:[#allocation2 + $0x70] sm:$0xff] 0.0
          %439 = vst [vmem:[#allocation2 + $0x78] sm:$0xff] 0.0
          %440 = vst [vmem:[#allocation2 + $0x80] sm:$0xff] 0.0
          %441 = vst [vmem:[#allocation2 + $0x88] sm:$0xff] 0.0
          %442 = vst [vmem:[#allocation2 + $0x90] sm:$0xff] 0.0
          %443 = vst [vmem:[#allocation2 + $0x98] sm:$0xff] 0.0
          %444 = vst [vmem:[#allocation2 + $0xa0] sm:$0xff] 0.0
          %445 = vst [vmem:[#allocation2 + $0xa8] sm:$0xff] 0.0
          %446 = vst [vmem:[#allocation2 + $0xb0] sm:$0xff] 0.0
          %447 = vst [vmem:[#allocation2 + $0xb8] sm:$0xff] 0.0
          %448 = vst [vmem:[#allocation2 + $0xc0] sm:$0xff] 0.0
          %449 = vst [vmem:[#allocation2 + $0xc8] sm:$0xff] 0.0
          %450 = vst [vmem:[#allocation2 + $0xd0] sm:$0xff] 0.0
          %451 = vst [vmem:[#allocation2 + $0xd8] sm:$0xff] 0.0
          %452 = vst [vmem:[#allocation2 + $0xe0] sm:$0xff] 0.0
          %453 = vst [vmem:[#allocation2 + $0xe8] sm:$0xff] 0.0
          %454 = vst [vmem:[#allocation2 + $0xf0] sm:$0xff] 0.0
          %455 = vst [vmem:[#allocation2 + $0xf8] sm:$0xff] 0.0
          %456 = vst [vmem:[#allocation2 + $0x100] sm:$0xff] 0.0
          %457 = vst [vmem:[#allocation2 + $0x108] sm:$0xff] 0.0
          %458 = vst [vmem:[#allocation2 + $0x110] sm:$0xff] 0.0
          %459 = vst [vmem:[#allocation2 + $0x118] sm:$0xff] 0.0
          %460 = vst [vmem:[#allocation2 + $0x120] sm:$0xff] 0.0
          %461 = vst [vmem:[#allocation2 + $0x128] sm:$0xff] 0.0
          %462 = vst [vmem:[#allocation2 + $0x130] sm:$0xff] 0.0
          %463 = vst [vmem:[#allocation2 + $0x138] sm:$0xff] 0.0
          %464 = vst [vmem:[#allocation2 + $0x140] sm:$0xff] 0.0
          %465 = vst [vmem:[#allocation2 + $0x148] sm:$0xff] 0.0
          %466 = vst [vmem:[#allocation2 + $0x150] sm:$0xff] 0.0
          %467 = vst [vmem:[#allocation2 + $0x158] sm:$0xff] 0.0
          %468 = vst [vmem:[#allocation2 + $0x160] sm:$0xff] 0.0
          %469 = vst [vmem:[#allocation2 + $0x168] sm:$0xff] 0.0
          %470 = vst [vmem:[#allocation2 + $0x170] sm:$0xff] 0.0
          %471 = vst [vmem:[#allocation2 + $0x178] sm:$0xff] 0.0
          %472 = vst [vmem:[#allocation2 + $0x180] sm:$0xff] 0.0
          %473 = vst [vmem:[#allocation2 + $0x188] sm:$0xff] 0.0
          %474 = vst [vmem:[#allocation2 + $0x190] sm:$0xff] 0.0
          %475 = vst [vmem:[#allocation2 + $0x198] sm:$0xff] 0.0
          %476 = vst [vmem:[#allocation2 + $0x1a0] sm:$0xff] 0.0
          %477 = vst [vmem:[#allocation2 + $0x1a8] sm:$0xff] 0.0
          %478 = vst [vmem:[#allocation2 + $0x1b0] sm:$0xff] 0.0
          %479 = vst [vmem:[#allocation2 + $0x1b8] sm:$0xff] 0.0
          %480 = vst [vmem:[#allocation2 + $0x1c0] sm:$0xff] 0.0
          %481 = vst [vmem:[#allocation2 + $0x1c8] sm:$0xff] 0.0
          %482 = vst [vmem:[#allocation2 + $0x1d0] sm:$0xff] 0.0
          %483 = vst [vmem:[#allocation2 + $0x1d8] sm:$0xff] 0.0
          %484 = vst [vmem:[#allocation2 + $0x1e0] sm:$0xff] 0.0
          %485 = vst [vmem:[#allocation2 + $0x1e8] sm:$0xff] 0.0
          %486 = vst [vmem:[#allocation2 + $0x1f0] sm:$0xff] 0.0
          %487 = vst [vmem:[#allocation2 + $0x1f8] sm:$0xff] 0.0
          %488 = vst [vmem:[#allocation2 + $0x200] sm:$0xff] 0.0
          %489 = vst [vmem:[#allocation2 + $0x208] sm:$0xff] 0.0
          %490 = vst [vmem:[#allocation2 + $0x210] sm:$0xff] 0.0
          %491 = vst [vmem:[#allocation2 + $0x218] sm:$0xff] 0.0
          %492 = vst [vmem:[#allocation2 + $0x220] sm:$0xff] 0.0
          %493 = vst [vmem:[#allocation2 + $0x228] sm:$0xff] 0.0
          %494 = vst [vmem:[#allocation2 + $0x230] sm:$0xff] 0.0
          %495 = vst [vmem:[#allocation2 + $0x238] sm:$0xff] 0.0
          %496 = vst [vmem:[#allocation2 + $0x240] sm:$0xff] 0.0
          %497 = vst [vmem:[#allocation2 + $0x248] sm:$0xff] 0.0
          %498 = vst [vmem:[#allocation2 + $0x250] sm:$0xff] 0.0
          %499 = vst [vmem:[#allocation2 + $0x258] sm:$0xff] 0.0
          %500 = vst [vmem:[#allocation2 + $0x260] sm:$0xff] 0.0
          %501 = vst [vmem:[#allocation2 + $0x268] sm:$0xff] 0.0
          %502 = vst [vmem:[#allocation2 + $0x270] sm:$0xff] 0.0
          %503 = vst [vmem:[#allocation2 + $0x278] sm:$0xff] 0.0
          %504 = vst [vmem:[#allocation2 + $0x280] sm:$0xff] 0.0
          %505 = vst [vmem:[#allocation2 + $0x288] sm:$0xff] 0.0
          %506 = vst [vmem:[#allocation2 + $0x290] sm:$0xff] 0.0
          %507 = vst [vmem:[#allocation2 + $0x298] sm:$0xff] 0.0
          %508 = vst [vmem:[#allocation2 + $0x2a0] sm:$0xff] 0.0
          %509 = vst [vmem:[#allocation2 + $0x2a8] sm:$0xff] 0.0
          %510 = vst [vmem:[#allocation2 + $0x2b0] sm:$0xff] 0.0
          %511 = vst [vmem:[#allocation2 + $0x2b8] sm:$0xff] 0.0
          %512 = vst [vmem:[#allocation2 + $0x2c0] sm:$0xff] 0.0
          %513 = vst [vmem:[#allocation2 + $0x2c8] sm:$0xff] 0.0
          %514 = vst [vmem:[#allocation2 + $0x2d0] sm:$0xff] 0.0
          %515 = vst [vmem:[#allocation2 + $0x2d8] sm:$0xff] 0.0
          %516 = vst [vmem:[#allocation2 + $0x2e0] sm:$0xff] 0.0
          %517 = vst [vmem:[#allocation2 + $0x2e8] sm:$0xff] 0.0
          %518 = vst [vmem:[#allocation2 + $0x2f0] sm:$0xff] 0.0
          %519 = vst [vmem:[#allocation2 + $0x2f8] sm:$0xff] 0.0
          %520 = vst [vmem:[#allocation2 + $0x300] sm:$0xff] 0.0
          %521 = vst [vmem:[#allocation2 + $0x308] sm:$0xff] 0.0
          %522 = vst [vmem:[#allocation2 + $0x310] sm:$0xff] 0.0
          %523 = vst [vmem:[#allocation2 + $0x318] sm:$0xff] 0.0
          %524 = vst [vmem:[#allocation2 + $0x320] sm:$0xff] 0.0
          %525 = vst [vmem:[#allocation2 + $0x328] sm:$0xff] 0.0
          %526 = vst [vmem:[#allocation2 + $0x330] sm:$0xff] 0.0
          %527 = vst [vmem:[#allocation2 + $0x338] sm:$0xff] 0.0
          %528 = vst [vmem:[#allocation2 + $0x340] sm:$0xff] 0.0
          %529 = vst [vmem:[#allocation2 + $0x348] sm:$0xff] 0.0
          %530 = vst [vmem:[#allocation2 + $0x350] sm:$0xff] 0.0
          %531 = vst [vmem:[#allocation2 + $0x358] sm:$0xff] 0.0
          %532 = vst [vmem:[#allocation2 + $0x360] sm:$0xff] 0.0
          %533 = vst [vmem:[#allocation2 + $0x368] sm:$0xff] 0.0
          %534 = vst [vmem:[#allocation2 + $0x370] sm:$0xff] 0.0
          %535 = vst [vmem:[#allocation2 + $0x378] sm:$0xff] 0.0
          %536 = vst [vmem:[#allocation2 + $0x380] sm:$0xff] 0.0
          %537 = vst [vmem:[#allocation2 + $0x388] sm:$0xff] 0.0
          %538 = vst [vmem:[#allocation2 + $0x390] sm:$0xff] 0.0
          %539 = vst [vmem:[#allocation2 + $0x398] sm:$0xff] 0.0
          %540 = vst [vmem:[#allocation2 + $0x3a0] sm:$0xff] 0.0
          %541 = vst [vmem:[#allocation2 + $0x3a8] sm:$0xff] 0.0
          %542 = vst [vmem:[#allocation2 + $0x3b0] sm:$0xff] 0.0
          %543 = vst [vmem:[#allocation2 + $0x3b8] sm:$0xff] 0.0
          %544 = vst [vmem:[#allocation2 + $0x3c0] sm:$0xff] 0.0
          %545 = vst [vmem:[#allocation2 + $0x3c8] sm:$0xff] 0.0
          %546 = vst [vmem:[#allocation2 + $0x3d0] sm:$0xff] 0.0
          %547 = vst [vmem:[#allocation2 + $0x3d8] sm:$0xff] 0.0
          %548 = vst [vmem:[#allocation2 + $0x3e0] sm:$0xff] 0.0
          %549 = vst [vmem:[#allocation2 + $0x3e8] sm:$0xff] 0.0
          %550 = vst [vmem:[#allocation2 + $0x3f0] sm:$0xff] 0.0
          %551 = vst [vmem:[#allocation2 + $0x3f8] sm:$0xff] 0.0
        $region80: #{dnn_forward.1} parent=47 // pred_fallthru
          _
        %v552 = vld [vmem:[#allocation2] sm:$0xff]
        %v553 = vld [vmem:[#allocation2 + $0x8] sm:$0xff]
        %v554 = vld [vmem:[#allocation2 + $0x10] sm:$0xff]
        %v555 = vld [vmem:[#allocation2 + $0x18] sm:$0xff]
        %v556 = vld [vmem:[#allocation2 + $0x20] sm:$0xff]
        %v557 = vld [vmem:[#allocation2 + $0x28] sm:$0xff]
        %v558 = vld [vmem:[#allocation2 + $0x30] sm:$0xff]
        %v559 = vld [vmem:[#allocation2 + $0x38] sm:$0xff]
        %v560 = vld [vmem:[#allocation2 + $0x40] sm:$0xff]
        %v561 = vld [vmem:[#allocation2 + $0x48] sm:$0xff]
        %v562 = vld [vmem:[#allocation2 + $0x50] sm:$0xff]
        %v563 = vld [vmem:[#allocation2 + $0x58] sm:$0xff]
        %v564 = vld [vmem:[#allocation2 + $0x60] sm:$0xff]
        %v565 = vld [vmem:[#allocation2 + $0x68] sm:$0xff]
        %v566 = vld [vmem:[#allocation2 + $0x70] sm:$0xff]
        %v567 = vld [vmem:[#allocation2 + $0x78] sm:$0xff]
        %v568 = vld [vmem:[#allocation2 + $0x80] sm:$0xff]
        %v569 = vld [vmem:[#allocation2 + $0x88] sm:$0xff]
        %v570 = vld [vmem:[#allocation2 + $0x90] sm:$0xff]
        %v571 = vld [vmem:[#allocation2 + $0x98] sm:$0xff]
        %v572 = vld [vmem:[#allocation2 + $0xa0] sm:$0xff]
        %v573 = vld [vmem:[#allocation2 + $0xa8] sm:$0xff]
        %v574 = vld [vmem:[#allocation2 + $0xb0] sm:$0xff]
        %v575 = vld [vmem:[#allocation2 + $0xb8] sm:$0xff]
        %v576 = vld [vmem:[#allocation2 + $0xc0] sm:$0xff]
        %v577 = vld [vmem:[#allocation2 + $0xc8] sm:$0xff]
        %v578 = vld [vmem:[#allocation2 + $0xd0] sm:$0xff]
        %v579 = vld [vmem:[#allocation2 + $0xd8] sm:$0xff]
        %v580 = vld [vmem:[#allocation2 + $0xe0] sm:$0xff]
        %v581 = vld [vmem:[#allocation2 + $0xe8] sm:$0xff]
        %v582 = vld [vmem:[#allocation2 + $0xf0] sm:$0xff]
        %v583 = vld [vmem:[#allocation2 + $0xf8] sm:$0xff]
        %v584 = vld [vmem:[#allocation2 + $0x100] sm:$0xff]
        %v585 = vld [vmem:[#allocation2 + $0x108] sm:$0xff]
        %v586 = vld [vmem:[#allocation2 + $0x110] sm:$0xff]
        %v587 = vld [vmem:[#allocation2 + $0x118] sm:$0xff]
        %v588 = vld [vmem:[#allocation2 + $0x120] sm:$0xff]
        %v589 = vld [vmem:[#allocation2 + $0x128] sm:$0xff]
        %v590 = vld [vmem:[#allocation2 + $0x130] sm:$0xff]
        %v591 = vld [vmem:[#allocation2 + $0x138] sm:$0xff]
        %v592 = vld [vmem:[#allocation2 + $0x140] sm:$0xff]
        %v593 = vld [vmem:[#allocation2 + $0x148] sm:$0xff]
        %v594 = vld [vmem:[#allocation2 + $0x150] sm:$0xff]
        %v595 = vld [vmem:[#allocation2 + $0x158] sm:$0xff]
        %v596 = vld [vmem:[#allocation2 + $0x160] sm:$0xff]
        %v597 = vld [vmem:[#allocation2 + $0x168] sm:$0xff]
        %v598 = vld [vmem:[#allocation2 + $0x170] sm:$0xff]
        %v599 = vld [vmem:[#allocation2 + $0x178] sm:$0xff]
        %v600 = vld [vmem:[#allocation2 + $0x180] sm:$0xff]
        %v601 = vld [vmem:[#allocation2 + $0x188] sm:$0xff]
        %v602 = vld [vmem:[#allocation2 + $0x190] sm:$0xff]
        %v603 = vld [vmem:[#allocation2 + $0x198] sm:$0xff]
        %v604 = vld [vmem:[#allocation2 + $0x1a0] sm:$0xff]
        %v605 = vld [vmem:[#allocation2 + $0x1a8] sm:$0xff]
        %v606 = vld [vmem:[#allocation2 + $0x1b0] sm:$0xff]
        %v607 = vld [vmem:[#allocation2 + $0x1b8] sm:$0xff]
        %v608 = vld [vmem:[#allocation2 + $0x1c0] sm:$0xff]
        %v609 = vld [vmem:[#allocation2 + $0x1c8] sm:$0xff]
        %v610 = vld [vmem:[#allocation2 + $0x1d0] sm:$0xff]
        %v611 = vld [vmem:[#allocation2 + $0x1d8] sm:$0xff]
        %v612 = vld [vmem:[#allocation2 + $0x1e0] sm:$0xff]
        %v613 = vld [vmem:[#allocation2 + $0x1e8] sm:$0xff]
        %v614 = vld [vmem:[#allocation2 + $0x1f0] sm:$0xff]
        %v615 = vld [vmem:[#allocation2 + $0x1f8] sm:$0xff]
        %v616 = vld [vmem:[#allocation2 + $0x200] sm:$0xff]
        %v617 = vld [vmem:[#allocation2 + $0x208] sm:$0xff]
        %v618 = vld [vmem:[#allocation2 + $0x210] sm:$0xff]
        %v619 = vld [vmem:[#allocation2 + $0x218] sm:$0xff]
        %v620 = vld [vmem:[#allocation2 + $0x220] sm:$0xff]
        %v621 = vld [vmem:[#allocation2 + $0x228] sm:$0xff]
        %v622 = vld [vmem:[#allocation2 + $0x230] sm:$0xff]
        %v623 = vld [vmem:[#allocation2 + $0x238] sm:$0xff]
        %v624 = vld [vmem:[#allocation2 + $0x240] sm:$0xff]
        %v625 = vld [vmem:[#allocation2 + $0x248] sm:$0xff]
        %v626 = vld [vmem:[#allocation2 + $0x250] sm:$0xff]
        %v627 = vld [vmem:[#allocation2 + $0x258] sm:$0xff]
        %v628 = vld [vmem:[#allocation2 + $0x260] sm:$0xff]
        %v629 = vld [vmem:[#allocation2 + $0x268] sm:$0xff]
        %v630 = vld [vmem:[#allocation2 + $0x270] sm:$0xff]
        %v631 = vld [vmem:[#allocation2 + $0x278] sm:$0xff]
        %v632 = vld [vmem:[#allocation2 + $0x280] sm:$0xff]
        %v633 = vld [vmem:[#allocation2 + $0x288] sm:$0xff]
        %v634 = vld [vmem:[#allocation2 + $0x290] sm:$0xff]
        %v635 = vld [vmem:[#allocation2 + $0x298] sm:$0xff]
        %v636 = vld [vmem:[#allocation2 + $0x2a0] sm:$0xff]
        %v637 = vld [vmem:[#allocation2 + $0x2a8] sm:$0xff]
        %v638 = vld [vmem:[#allocation2 + $0x2b0] sm:$0xff]
        %v639 = vld [vmem:[#allocation2 + $0x2b8] sm:$0xff]
        %v640 = vld [vmem:[#allocation2 + $0x2c0] sm:$0xff]
        %v641 = vld [vmem:[#allocation2 + $0x2c8] sm:$0xff]
        %v642 = vld [vmem:[#allocation2 + $0x2d0] sm:$0xff]
        %v643 = vld [vmem:[#allocation2 + $0x2d8] sm:$0xff]
        %v644 = vld [vmem:[#allocation2 + $0x2e0] sm:$0xff]
        %v645 = vld [vmem:[#allocation2 + $0x2e8] sm:$0xff]
        %v646 = vld [vmem:[#allocation2 + $0x2f0] sm:$0xff]
        %v647 = vld [vmem:[#allocation2 + $0x2f8] sm:$0xff]
        %v648 = vld [vmem:[#allocation2 + $0x300] sm:$0xff]
        %v649 = vld [vmem:[#allocation2 + $0x308] sm:$0xff]
        %v650 = vld [vmem:[#allocation2 + $0x310] sm:$0xff]
        %v651 = vld [vmem:[#allocation2 + $0x318] sm:$0xff]
        %v652 = vld [vmem:[#allocation2 + $0x320] sm:$0xff]
        %v653 = vld [vmem:[#allocation2 + $0x328] sm:$0xff]
        %v654 = vld [vmem:[#allocation2 + $0x330] sm:$0xff]
        %v655 = vld [vmem:[#allocation2 + $0x338] sm:$0xff]
        %v656 = vld [vmem:[#allocation2 + $0x340] sm:$0xff]
        %v657 = vld [vmem:[#allocation2 + $0x348] sm:$0xff]
        %v658 = vld [vmem:[#allocation2 + $0x350] sm:$0xff]
        %v659 = vld [vmem:[#allocation2 + $0x358] sm:$0xff]
        %v660 = vld [vmem:[#allocation2 + $0x360] sm:$0xff]
        %v661 = vld [vmem:[#allocation2 + $0x368] sm:$0xff]
        %v662 = vld [vmem:[#allocation2 + $0x370] sm:$0xff]
        %v663 = vld [vmem:[#allocation2 + $0x378] sm:$0xff]
        %v664 = vld [vmem:[#allocation2 + $0x380] sm:$0xff]
        %v665 = vld [vmem:[#allocation2 + $0x388] sm:$0xff]
        %v666 = vld [vmem:[#allocation2 + $0x390] sm:$0xff]
        %v667 = vld [vmem:[#allocation2 + $0x398] sm:$0xff]
        %v668 = vld [vmem:[#allocation2 + $0x3a0] sm:$0xff]
        %v669 = vld [vmem:[#allocation2 + $0x3a8] sm:$0xff]
        %v670 = vld [vmem:[#allocation2 + $0x3b0] sm:$0xff]
        %v671 = vld [vmem:[#allocation2 + $0x3b8] sm:$0xff]
        %v672 = vld [vmem:[#allocation2 + $0x3c0] sm:$0xff]
        %v673 = vld [vmem:[#allocation2 + $0x3c8] sm:$0xff]
        %v674 = vld [vmem:[#allocation2 + $0x3d0] sm:$0xff]
        %v675 = vld [vmem:[#allocation2 + $0x3d8] sm:$0xff]
        %v676 = vld [vmem:[#allocation2 + $0x3e0] sm:$0xff]
        %v677 = vld [vmem:[#allocation2 + $0x3e8] sm:$0xff]
        %v678 = vld [vmem:[#allocation2 + $0x3f0] sm:$0xff]
        %v679 = vld [vmem:[#allocation2 + $0x3f8] sm:$0xff]
        %v680 = vld [vmem:[%s353] sm:$0xff]
        %v681 = vld [vmem:[%s353 + $0x8] sm:$0xff]
        %v682 = vld [vmem:[%s353 + $0x10] sm:$0xff]
        %v683 = vld [vmem:[%s353 + $0x18] sm:$0xff]
        %v684 = vld [vmem:[%s353 + $0x20] sm:$0xff]
        %v685 = vld [vmem:[%s353 + $0x28] sm:$0xff]
        %v686 = vld [vmem:[%s353 + $0x30] sm:$0xff]
        %v687 = vld [vmem:[%s353 + $0x38] sm:$0xff]
        %v688 = vld [vmem:[%s353 + $0x40] sm:$0xff]
        %v689 = vld [vmem:[%s353 + $0x48] sm:$0xff]
        %v690 = vld [vmem:[%s353 + $0x50] sm:$0xff]
        %v691 = vld [vmem:[%s353 + $0x58] sm:$0xff]
        %v692 = vld [vmem:[%s353 + $0x60] sm:$0xff]
        %v693 = vld [vmem:[%s353 + $0x68] sm:$0xff]
        %v694 = vld [vmem:[%s353 + $0x70] sm:$0xff]
        %v695 = vld [vmem:[%s353 + $0x78] sm:$0xff]
        %v696 = vld [vmem:[%s353 + $0x80] sm:$0xff]
        %v697 = vld [vmem:[%s353 + $0x88] sm:$0xff]
        %v698 = vld [vmem:[%s353 + $0x90] sm:$0xff]
        %v699 = vld [vmem:[%s353 + $0x98] sm:$0xff]
        %v700 = vld [vmem:[%s353 + $0xa0] sm:$0xff]
        %v701 = vld [vmem:[%s353 + $0xa8] sm:$0xff]
        %v702 = vld [vmem:[%s353 + $0xb0] sm:$0xff]
        %v703 = vld [vmem:[%s353 + $0xb8] sm:$0xff]
        %v704 = vld [vmem:[%s353 + $0xc0] sm:$0xff]
        %v705 = vld [vmem:[%s353 + $0xc8] sm:$0xff]
        %v706 = vld [vmem:[%s353 + $0xd0] sm:$0xff]
        %v707 = vld [vmem:[%s353 + $0xd8] sm:$0xff]
        %v708 = vld [vmem:[%s353 + $0xe0] sm:$0xff]
        %v709 = vld [vmem:[%s353 + $0xe8] sm:$0xff]
        %v710 = vld [vmem:[%s353 + $0xf0] sm:$0xff]
        %v711 = vld [vmem:[%s353 + $0xf8] sm:$0xff]
        %v712 = vpack.c.bf16 %v681, %v680
        %v713 = vpack.c.bf16 %v683, %v682
        %v714 = vpack.c.bf16 %v685, %v684
        %v715 = vpack.c.bf16 %v687, %v686
        %v716 = vpack.c.bf16 %v689, %v688
        %v717 = vpack.c.bf16 %v691, %v690
        %v718 = vpack.c.bf16 %v693, %v692
        %v719 = vpack.c.bf16 %v695, %v694
        %v720 = vpack.c.bf16 %v697, %v696
        %v721 = vpack.c.bf16 %v699, %v698
        %v722 = vpack.c.bf16 %v701, %v700
        %v723 = vpack.c.bf16 %v703, %v702
        %v724 = vpack.c.bf16 %v705, %v704
        %v725 = vpack.c.bf16 %v707, %v706
        %v726 = vpack.c.bf16 %v709, %v708
        %v727 = vpack.c.bf16 %v711, %v710
        %v728 = vld [vmem:[#allocation6] sm:$0xff]
        %v729 = vld [vmem:[#allocation6 + $0x8] sm:$0xff]
        %v730 = vld [vmem:[#allocation6 + $0x10] sm:$0xff]
        %v731 = vld [vmem:[#allocation6 + $0x18] sm:$0xff]
        %v732 = vld [vmem:[#allocation6 + $0x20] sm:$0xff]
        %v733 = vld [vmem:[#allocation6 + $0x28] sm:$0xff]
        %v734 = vld [vmem:[#allocation6 + $0x30] sm:$0xff]
        %v735 = vld [vmem:[#allocation6 + $0x38] sm:$0xff]
        %v736 = vld [vmem:[#allocation6 + $0x40] sm:$0xff]
        %v737 = vld [vmem:[#allocation6 + $0x48] sm:$0xff]
        %v738 = vld [vmem:[#allocation6 + $0x50] sm:$0xff]
        %v739 = vld [vmem:[#allocation6 + $0x58] sm:$0xff]
        %v740 = vld [vmem:[#allocation6 + $0x60] sm:$0xff]
        %v741 = vld [vmem:[#allocation6 + $0x68] sm:$0xff]
        %v742 = vld [vmem:[#allocation6 + $0x70] sm:$0xff]
        %v743 = vld [vmem:[#allocation6 + $0x78] sm:$0xff]
        %v760 = vunpack.c.l.b16 %v728
        %v761 = vunpack.c.h.b16 %v728
        %v762 = vunpack.c.l.b16 %v729
        %v763 = vunpack.c.h.b16 %v729
        %v764 = vunpack.c.l.b16 %v730
        %v765 = vunpack.c.h.b16 %v730
        %v766 = vunpack.c.l.b16 %v731
        %v767 = vunpack.c.h.b16 %v731
        %v768 = vunpack.c.l.b16 %v732
        %v769 = vunpack.c.h.b16 %v732
        %v770 = vunpack.c.l.b16 %v733
        %v771 = vunpack.c.h.b16 %v733
        %v772 = vunpack.c.l.b16 %v734
        %v773 = vunpack.c.h.b16 %v734
        %v774 = vunpack.c.l.b16 %v735
        %v775 = vunpack.c.h.b16 %v735
        %v776 = vunpack.c.l.b16 %v736
        %v777 = vunpack.c.h.b16 %v736
        %v778 = vunpack.c.l.b16 %v737
        %v779 = vunpack.c.h.b16 %v737
        %v780 = vunpack.c.l.b16 %v738
        %v781 = vunpack.c.h.b16 %v738
        %v782 = vunpack.c.l.b16 %v739
        %v783 = vunpack.c.h.b16 %v739
        %v784 = vunpack.c.l.b16 %v740
        %v785 = vunpack.c.h.b16 %v740
        %v786 = vunpack.c.l.b16 %v741
        %v787 = vunpack.c.h.b16 %v741
        %v788 = vunpack.c.l.b16 %v742
        %v789 = vunpack.c.h.b16 %v742
        %v790 = vunpack.c.l.b16 %v743
        %v791 = vunpack.c.h.b16 %v743
        %v792 = vpack.c.b16 %v764, %v760
        %v793 = vpack.c.b16 %v765, %v761
        %v794 = vpack.c.b16 %v766, %v762
        %v795 = vpack.c.b16 %v767, %v763
        %v796 = vpack.c.b16 %v772, %v768
        %v797 = vpack.c.b16 %v773, %v769
        %v798 = vpack.c.b16 %v774, %v770
        %v799 = vpack.c.b16 %v775, %v771
        %v800 = vpack.c.b16 %v780, %v776
        %v801 = vpack.c.b16 %v781, %v777
        %v802 = vpack.c.b16 %v782, %v778
        %v803 = vpack.c.b16 %v783, %v779
        %v804 = vpack.c.b16 %v788, %v784
        %v805 = vpack.c.b16 %v789, %v785
        %v806 = vpack.c.b16 %v790, %v786
        %v807 = vpack.c.b16 %v791, %v787
        %vm824 = vcmask 523264
        %v826 = vsel %vm824, %v712, 0
        %v829 = vsel %vm824, %v713, 0
        %v832 = vsel %vm824, %v714, 0
        %v835 = vsel %vm824, %v715, 0
        %v838 = vsel %vm824, %v716, 0
        %v841 = vsel %vm824, %v717, 0
        %v844 = vsel %vm824, %v718, 0
        %v847 = vsel %vm824, %v719, 0
        %v850 = vsel %vm824, %v720, 0
        %v853 = vsel %vm824, %v721, 0
        %v856 = vsel %vm824, %v722, 0
        %v859 = vsel %vm824, %v723, 0
        %v862 = vsel %vm824, %v724, 0
        %v865 = vsel %vm824, %v725, 0
        %v868 = vsel %vm824, %v726, 0
        %v871 = vsel %vm824, %v727, 0
        %873 = vmatprep.subr.bf16.mxu0 %v793
        %874 = vmatpush1.bf16.msra.mxu0 %v792
        %875 = vmatprep.subr.bf16.mxu0 %v797
        %876 = vmatpush1.bf16.msra.mxu0 %v796
        %877 = vmatprep.subr.bf16.mxu0 %v801
        %878 = vmatpush1.bf16.msra.mxu0 %v800
        %879 = vmatprep.subr.bf16.mxu0 %v805
        %880 = vmatpush1.bf16.msra.mxu0 %v804
        %881 = vmatprep.subr.bf16.mxu0 0
        %882 = vmatpush1.bf16.msra.mxu0 0
        %883 = vmatprep.subr.bf16.mxu0 0
        %884 = vmatpush1.bf16.msra.mxu0 0
        %885 = vmatprep.subr.bf16.mxu0 0
        %886 = vmatpush1.bf16.msra.mxu0 0
        %887 = vmatprep.subr.bf16.mxu0 0
        %888 = vmatpush1.bf16.msra.mxu0 0
        %889 = vmatprep.subr.bf16.mxu0 0
        %890 = vmatpush1.bf16.msra.mxu0 0
        %891 = vmatprep.subr.bf16.mxu0 0
        %892 = vmatpush1.bf16.msra.mxu0 0
        %893 = vmatprep.subr.bf16.mxu0 0
        %894 = vmatpush1.bf16.msra.mxu0 0
        %895 = vmatprep.subr.bf16.mxu0 0
        %896 = vmatpush1.bf16.msra.mxu0 0
        %897 = vmatprep.subr.bf16.mxu0 0
        %898 = vmatpush1.bf16.msra.mxu0 0
        %899 = vmatprep.subr.bf16.mxu0 0
        %900 = vmatpush1.bf16.msra.mxu0 0
        %901 = vmatprep.subr.bf16.mxu0 0
        %902 = vmatpush1.bf16.msra.mxu0 0
        %903 = vmatprep.subr.bf16.mxu0 0
        %904 = vmatpush1.bf16.msra.mxu0 0
        %905 = vmatprep.mubr.bf16.mxu0 0
        %906 = vmatmul.mubr.bf16.gmra.mrb[0].mxu0 %v826
        %v907 = vpop.f32.mrb[0].mxu0
        %v908 = vadd.f32 0.0, %v907
        %v909 = vpop.f32.mrb[0].mxu0
        %v910 = vadd.f32 0.0, %v909
        %v911 = vpop.f32.mrb[0].mxu0
        %v912 = vadd.f32 0.0, %v911
        %v913 = vpop.f32.mrb[0].mxu0
        %v914 = vadd.f32 0.0, %v913
        %915 = vmatprep.mubr.bf16.mxu0 0
        %916 = vmatmul.mubr.bf16.gmra.mrb[0].mxu0 %v829
        %v917 = vpop.f32.mrb[0].mxu0
        %v918 = vadd.f32 0.0, %v917
        %v919 = vpop.f32.mrb[0].mxu0
        %v920 = vadd.f32 0.0, %v919
        %v921 = vpop.f32.mrb[0].mxu0
        %v922 = vadd.f32 0.0, %v921
        %v923 = vpop.f32.mrb[0].mxu0
        %v924 = vadd.f32 0.0, %v923
        %925 = vmatprep.mubr.bf16.mxu0 0
        %926 = vmatmul.mubr.bf16.gmra.mrb[0].mxu0 %v832
        %v927 = vpop.f32.mrb[0].mxu0
        %v928 = vadd.f32 0.0, %v927
        %v929 = vpop.f32.mrb[0].mxu0
        %v930 = vadd.f32 0.0, %v929
        %v931 = vpop.f32.mrb[0].mxu0
        %v932 = vadd.f32 0.0, %v931
        %v933 = vpop.f32.mrb[0].mxu0
        %v934 = vadd.f32 0.0, %v933
        %935 = vmatprep.mubr.bf16.mxu0 0
        %936 = vmatmul.mubr.bf16.gmra.mrb[0].mxu0 %v835
        %v937 = vpop.f32.mrb[0].mxu0
        %v938 = vadd.f32 0.0, %v937
        %v939 = vpop.f32.mrb[0].mxu0
        %v940 = vadd.f32 0.0, %v939
        %v941 = vpop.f32.mrb[0].mxu0
        %v942 = vadd.f32 0.0, %v941
        %v943 = vpop.f32.mrb[0].mxu0
        %v944 = vadd.f32 0.0, %v943
        %945 = vmatprep.mubr.bf16.mxu0 0
        %946 = vmatmul.mubr.bf16.gmra.mrb[0].mxu0 %v838
        %v947 = vpop.f32.mrb[0].mxu0
        %v948 = vadd.f32 0.0, %v947
        %v949 = vpop.f32.mrb[0].mxu0
        %v950 = vadd.f32 0.0, %v949
        %v951 = vpop.f32.mrb[0].mxu0
        %v952 = vadd.f32 0.0, %v951
        %v953 = vpop.f32.mrb[0].mxu0
        %v954 = vadd.f32 0.0, %v953
        %955 = vmatprep.mubr.bf16.mxu0 0
        %956 = vmatmul.mubr.bf16.gmra.mrb[0].mxu0 %v841
        %v957 = vpop.f32.mrb[0].mxu0
        %v958 = vadd.f32 0.0, %v957
        %v959 = vpop.f32.mrb[0].mxu0
        %v960 = vadd.f32 0.0, %v959
        %v961 = vpop.f32.mrb[0].mxu0
        %v962 = vadd.f32 0.0, %v961
        %v963 = vpop.f32.mrb[0].mxu0
        %v964 = vadd.f32 0.0, %v963
        %965 = vmatprep.mubr.bf16.mxu0 0
        %966 = vmatmul.mubr.bf16.gmra.mrb[0].mxu0 %v844
        %v967 = vpop.f32.mrb[0].mxu0
        %v968 = vadd.f32 0.0, %v967
        %v969 = vpop.f32.mrb[0].mxu0
        %v970 = vadd.f32 0.0, %v969
        %v971 = vpop.f32.mrb[0].mxu0
        %v972 = vadd.f32 0.0, %v971
        %v973 = vpop.f32.mrb[0].mxu0
        %v974 = vadd.f32 0.0, %v973
        %975 = vmatprep.mubr.bf16.mxu0 0
        %976 = vmatmul.mubr.bf16.gmra.mrb[0].mxu0 %v847
        %v977 = vpop.f32.mrb[0].mxu0
        %v978 = vadd.f32 0.0, %v977
        %v979 = vpop.f32.mrb[0].mxu0
        %v980 = vadd.f32 0.0, %v979
        %v981 = vpop.f32.mrb[0].mxu0
        %v982 = vadd.f32 0.0, %v981
        %v983 = vpop.f32.mrb[0].mxu0
        %v984 = vadd.f32 0.0, %v983
        %985 = vmatprep.mubr.bf16.mxu0 0
        %986 = vmatmul.mubr.bf16.gmra.mrb[0].mxu0 %v850
        %v987 = vpop.f32.mrb[0].mxu0
        %v988 = vadd.f32 0.0, %v987
        %v989 = vpop.f32.mrb[0].mxu0
        %v990 = vadd.f32 0.0, %v989
        %v991 = vpop.f32.mrb[0].mxu0
        %v992 = vadd.f32 0.0, %v991
        %v993 = vpop.f32.mrb[0].mxu0
        %v994 = vadd.f32 0.0, %v993
        %995 = vmatprep.mubr.bf16.mxu0 0
        %996 = vmatmul.mubr.bf16.gmra.mrb[0].mxu0 %v853
        %v997 = vpop.f32.mrb[0].mxu0
        %v998 = vadd.f32 0.0, %v997
        %v999 = vpop.f32.mrb[0].mxu0
        %v1000 = vadd.f32 0.0, %v999
        %v1001 = vpop.f32.mrb[0].mxu0
        %v1002 = vadd.f32 0.0, %v1001
        %v1003 = vpop.f32.mrb[0].mxu0
        %v1004 = vadd.f32 0.0, %v1003
        %1005 = vmatprep.mubr.bf16.mxu0 0
        %1006 = vmatmul.mubr.bf16.gmra.mrb[0].mxu0 %v856
        %v1007 = vpop.f32.mrb[0].mxu0
        %v1008 = vadd.f32 0.0, %v1007
        %v1009 = vpop.f32.mrb[0].mxu0
        %v1010 = vadd.f32 0.0, %v1009
        %v1011 = vpop.f32.mrb[0].mxu0
        %v1012 = vadd.f32 0.0, %v1011
        %v1013 = vpop.f32.mrb[0].mxu0
        %v1014 = vadd.f32 0.0, %v1013
        %1015 = vmatprep.mubr.bf16.mxu0 0
        %1016 = vmatmul.mubr.bf16.gmra.mrb[0].mxu0 %v859
        %v1017 = vpop.f32.mrb[0].mxu0
        %v1018 = vadd.f32 0.0, %v1017
        %v1019 = vpop.f32.mrb[0].mxu0
        %v1020 = vadd.f32 0.0, %v1019
        %v1021 = vpop.f32.mrb[0].mxu0
        %v1022 = vadd.f32 0.0, %v1021
        %v1023 = vpop.f32.mrb[0].mxu0
        %v1024 = vadd.f32 0.0, %v1023
        %1025 = vmatprep.mubr.bf16.mxu0 0
        %1026 = vmatmul.mubr.bf16.gmra.mrb[0].mxu0 %v862
        %v1027 = vpop.f32.mrb[0].mxu0
        %v1028 = vadd.f32 0.0, %v1027
        %v1029 = vpop.f32.mrb[0].mxu0
        %v1030 = vadd.f32 0.0, %v1029
        %v1031 = vpop.f32.mrb[0].mxu0
        %v1032 = vadd.f32 0.0, %v1031
        %v1033 = vpop.f32.mrb[0].mxu0
        %v1034 = vadd.f32 0.0, %v1033
        %1035 = vmatprep.mubr.bf16.mxu0 0
        %1036 = vmatmul.mubr.bf16.gmra.mrb[0].mxu0 %v865
        %v1037 = vpop.f32.mrb[0].mxu0
        %v1038 = vadd.f32 0.0, %v1037
        %v1039 = vpop.f32.mrb[0].mxu0
        %v1040 = vadd.f32 0.0, %v1039
        %v1041 = vpop.f32.mrb[0].mxu0
        %v1042 = vadd.f32 0.0, %v1041
        %v1043 = vpop.f32.mrb[0].mxu0
        %v1044 = vadd.f32 0.0, %v1043
        %1045 = vmatprep.mubr.bf16.mxu0 0
        %1046 = vmatmul.mubr.bf16.gmra.mrb[0].mxu0 %v868
        %v1047 = vpop.f32.mrb[0].mxu0
        %v1048 = vadd.f32 0.0, %v1047
        %v1049 = vpop.f32.mrb[0].mxu0
        %v1050 = vadd.f32 0.0, %v1049
        %v1051 = vpop.f32.mrb[0].mxu0
        %v1052 = vadd.f32 0.0, %v1051
        %v1053 = vpop.f32.mrb[0].mxu0
        %v1054 = vadd.f32 0.0, %v1053
        %1055 = vmatprep.mubr.bf16.mxu0 0
        %1056 = vmatmul.mubr.bf16.gmra.mrb[0].mxu0 %v871
        %v1057 = vpop.f32.mrb[0].mxu0
        %v1058 = vadd.f32 0.0, %v1057
        %v1059 = vpop.f32.mrb[0].mxu0
        %v1060 = vadd.f32 0.0, %v1059
        %v1061 = vpop.f32.mrb[0].mxu0
        %v1062 = vadd.f32 0.0, %v1061
        %v1063 = vpop.f32.mrb[0].mxu0
        %v1064 = vadd.f32 0.0, %v1063
        %1065 = vdwg.mxu0
        %1066 = vmatprep.subr.bf16.mxu0 %v795
        %1067 = vmatpush1.bf16.msra.mxu0 %v794
        %1068 = vmatprep.subr.bf16.mxu0 %v799
        %1069 = vmatpush1.bf16.msra.mxu0 %v798
        %1070 = vmatprep.subr.bf16.mxu0 %v803
        %1071 = vmatpush1.bf16.msra.mxu0 %v802
        %1072 = vmatprep.subr.bf16.mxu0 %v807
        %1073 = vmatpush1.bf16.msra.mxu0 %v806
        %1074 = vmatprep.subr.bf16.mxu0 0
        %1075 = vmatpush1.bf16.msra.mxu0 0
        %1076 = vmatprep.subr.bf16.mxu0 0
        %1077 = vmatpush1.bf16.msra.mxu0 0
        %1078 = vmatprep.subr.bf16.mxu0 0
        %1079 = vmatpush1.bf16.msra.mxu0 0
        %1080 = vmatprep.subr.bf16.mxu0 0
        %1081 = vmatpush1.bf16.msra.mxu0 0
        %1082 = vmatprep.subr.bf16.mxu0 0
        %1083 = vmatpush1.bf16.msra.mxu0 0
        %1084 = vmatprep.subr.bf16.mxu0 0
        %1085 = vmatpush1.bf16.msra.mxu0 0
        %1086 = vmatprep.subr.bf16.mxu0 0
        %1087 = vmatpush1.bf16.msra.mxu0 0
        %1088 = vmatprep.subr.bf16.mxu0 0
        %1089 = vmatpush1.bf16.msra.mxu0 0
        %1090 = vmatprep.subr.bf16.mxu0 0
        %1091 = vmatpush1.bf16.msra.mxu0 0
        %1092 = vmatprep.subr.bf16.mxu0 0
        %1093 = vmatpush1.bf16.msra.mxu0 0
        %1094 = vmatprep.subr.bf16.mxu0 0
        %1095 = vmatpush1.bf16.msra.mxu0 0
        %1096 = vmatprep.subr.bf16.mxu0 0
        %1097 = vmatpush1.bf16.msra.mxu0 0
        %1098 = vmatprep.mubr.bf16.mxu0 0
        %1099 = vmatmul.mubr.bf16.gmra.mrb[0].mxu0 %v826
        %v1100 = vpop.f32.mrb[0].mxu0
        %v1101 = vadd.f32 0.0, %v1100
        %v1102 = vpop.f32.mrb[0].mxu0
        %v1103 = vadd.f32 0.0, %v1102
        %v1104 = vpop.f32.mrb[0].mxu0
        %v1105 = vadd.f32 0.0, %v1104
        %v1106 = vpop.f32.mrb[0].mxu0
        %v1107 = vadd.f32 0.0, %v1106
        %1108 = vmatprep.mubr.bf16.mxu0 0
        %1109 = vmatmul.mubr.bf16.gmra.mrb[0].mxu0 %v829
        %v1110 = vpop.f32.mrb[0].mxu0
        %v1111 = vadd.f32 0.0, %v1110
        %v1112 = vpop.f32.mrb[0].mxu0
        %v1113 = vadd.f32 0.0, %v1112
        %v1114 = vpop.f32.mrb[0].mxu0
        %v1115 = vadd.f32 0.0, %v1114
        %v1116 = vpop.f32.mrb[0].mxu0
        %v1117 = vadd.f32 0.0, %v1116
        %1118 = vmatprep.mubr.bf16.mxu0 0
        %1119 = vmatmul.mubr.bf16.gmra.mrb[0].mxu0 %v832
        %v1120 = vpop.f32.mrb[0].mxu0
        %v1121 = vadd.f32 0.0, %v1120
        %v1122 = vpop.f32.mrb[0].mxu0
        %v1123 = vadd.f32 0.0, %v1122
        %v1124 = vpop.f32.mrb[0].mxu0
        %v1125 = vadd.f32 0.0, %v1124
        %v1126 = vpop.f32.mrb[0].mxu0
        %v1127 = vadd.f32 0.0, %v1126
        %1128 = vmatprep.mubr.bf16.mxu0 0
        %1129 = vmatmul.mubr.bf16.gmra.mrb[0].mxu0 %v835
        %v1130 = vpop.f32.mrb[0].mxu0
        %v1131 = vadd.f32 0.0, %v1130
        %v1132 = vpop.f32.mrb[0].mxu0
        %v1133 = vadd.f32 0.0, %v1132
        %v1134 = vpop.f32.mrb[0].mxu0
        %v1135 = vadd.f32 0.0, %v1134
        %v1136 = vpop.f32.mrb[0].mxu0
        %v1137 = vadd.f32 0.0, %v1136
        %1138 = vmatprep.mubr.bf16.mxu0 0
        %1139 = vmatmul.mubr.bf16.gmra.mrb[0].mxu0 %v838
        %v1140 = vpop.f32.mrb[0].mxu0
        %v1141 = vadd.f32 0.0, %v1140
        %v1142 = vpop.f32.mrb[0].mxu0
        %v1143 = vadd.f32 0.0, %v1142
        %v1144 = vpop.f32.mrb[0].mxu0
        %v1145 = vadd.f32 0.0, %v1144
        %v1146 = vpop.f32.mrb[0].mxu0
        %v1147 = vadd.f32 0.0, %v1146
        %1148 = vmatprep.mubr.bf16.mxu0 0
        %1149 = vmatmul.mubr.bf16.gmra.mrb[0].mxu0 %v841
        %v1150 = vpop.f32.mrb[0].mxu0
        %v1151 = vadd.f32 0.0, %v1150
        %v1152 = vpop.f32.mrb[0].mxu0
        %v1153 = vadd.f32 0.0, %v1152
        %v1154 = vpop.f32.mrb[0].mxu0
        %v1155 = vadd.f32 0.0, %v1154
        %v1156 = vpop.f32.mrb[0].mxu0
        %v1157 = vadd.f32 0.0, %v1156
        %1158 = vmatprep.mubr.bf16.mxu0 0
        %1159 = vmatmul.mubr.bf16.gmra.mrb[0].mxu0 %v844
        %v1160 = vpop.f32.mrb[0].mxu0
        %v1161 = vadd.f32 0.0, %v1160
        %v1162 = vpop.f32.mrb[0].mxu0
        %v1163 = vadd.f32 0.0, %v1162
        %v1164 = vpop.f32.mrb[0].mxu0
        %v1165 = vadd.f32 0.0, %v1164
        %v1166 = vpop.f32.mrb[0].mxu0
        %v1167 = vadd.f32 0.0, %v1166
        %1168 = vmatprep.mubr.bf16.mxu0 0
        %1169 = vmatmul.mubr.bf16.gmra.mrb[0].mxu0 %v847
        %v1170 = vpop.f32.mrb[0].mxu0
        %v1171 = vadd.f32 0.0, %v1170
        %v1172 = vpop.f32.mrb[0].mxu0
        %v1173 = vadd.f32 0.0, %v1172
        %v1174 = vpop.f32.mrb[0].mxu0
        %v1175 = vadd.f32 0.0, %v1174
        %v1176 = vpop.f32.mrb[0].mxu0
        %v1177 = vadd.f32 0.0, %v1176
        %1178 = vmatprep.mubr.bf16.mxu0 0
        %1179 = vmatmul.mubr.bf16.gmra.mrb[0].mxu0 %v850
        %v1180 = vpop.f32.mrb[0].mxu0
        %v1181 = vadd.f32 0.0, %v1180
        %v1182 = vpop.f32.mrb[0].mxu0
        %v1183 = vadd.f32 0.0, %v1182
        %v1184 = vpop.f32.mrb[0].mxu0
        %v1185 = vadd.f32 0.0, %v1184
        %v1186 = vpop.f32.mrb[0].mxu0
        %v1187 = vadd.f32 0.0, %v1186
        %1188 = vmatprep.mubr.bf16.mxu0 0
        %1189 = vmatmul.mubr.bf16.gmra.mrb[0].mxu0 %v853
        %v1190 = vpop.f32.mrb[0].mxu0
        %v1191 = vadd.f32 0.0, %v1190
        %v1192 = vpop.f32.mrb[0].mxu0
        %v1193 = vadd.f32 0.0, %v1192
        %v1194 = vpop.f32.mrb[0].mxu0
        %v1195 = vadd.f32 0.0, %v1194
        %v1196 = vpop.f32.mrb[0].mxu0
        %v1197 = vadd.f32 0.0, %v1196
        %1198 = vmatprep.mubr.bf16.mxu0 0
        %1199 = vmatmul.mubr.bf16.gmra.mrb[0].mxu0 %v856
        %v1200 = vpop.f32.mrb[0].mxu0
        %v1201 = vadd.f32 0.0, %v1200
        %v1202 = vpop.f32.mrb[0].mxu0
        %v1203 = vadd.f32 0.0, %v1202
        %v1204 = vpop.f32.mrb[0].mxu0
        %v1205 = vadd.f32 0.0, %v1204
        %v1206 = vpop.f32.mrb[0].mxu0
        %v1207 = vadd.f32 0.0, %v1206
        %1208 = vmatprep.mubr.bf16.mxu0 0
        %1209 = vmatmul.mubr.bf16.gmra.mrb[0].mxu0 %v859
        %v1210 = vpop.f32.mrb[0].mxu0
        %v1211 = vadd.f32 0.0, %v1210
        %v1212 = vpop.f32.mrb[0].mxu0
        %v1213 = vadd.f32 0.0, %v1212
        %v1214 = vpop.f32.mrb[0].mxu0
        %v1215 = vadd.f32 0.0, %v1214
        %v1216 = vpop.f32.mrb[0].mxu0
        %v1217 = vadd.f32 0.0, %v1216
        %1218 = vmatprep.mubr.bf16.mxu0 0
        %1219 = vmatmul.mubr.bf16.gmra.mrb[0].mxu0 %v862
        %v1220 = vpop.f32.mrb[0].mxu0
        %v1221 = vadd.f32 0.0, %v1220
        %v1222 = vpop.f32.mrb[0].mxu0
        %v1223 = vadd.f32 0.0, %v1222
        %v1224 = vpop.f32.mrb[0].mxu0
        %v1225 = vadd.f32 0.0, %v1224
        %v1226 = vpop.f32.mrb[0].mxu0
        %v1227 = vadd.f32 0.0, %v1226
        %1228 = vmatprep.mubr.bf16.mxu0 0
        %1229 = vmatmul.mubr.bf16.gmra.mrb[0].mxu0 %v865
        %v1230 = vpop.f32.mrb[0].mxu0
        %v1231 = vadd.f32 0.0, %v1230
        %v1232 = vpop.f32.mrb[0].mxu0
        %v1233 = vadd.f32 0.0, %v1232
        %v1234 = vpop.f32.mrb[0].mxu0
        %v1235 = vadd.f32 0.0, %v1234
        %v1236 = vpop.f32.mrb[0].mxu0
        %v1237 = vadd.f32 0.0, %v1236
        %1238 = vmatprep.mubr.bf16.mxu0 0
        %1239 = vmatmul.mubr.bf16.gmra.mrb[0].mxu0 %v868
        %v1240 = vpop.f32.mrb[0].mxu0
        %v1241 = vadd.f32 0.0, %v1240
        %v1242 = vpop.f32.mrb[0].mxu0
        %v1243 = vadd.f32 0.0, %v1242
        %v1244 = vpop.f32.mrb[0].mxu0
        %v1245 = vadd.f32 0.0, %v1244
        %v1246 = vpop.f32.mrb[0].mxu0
        %v1247 = vadd.f32 0.0, %v1246
        %1248 = vmatprep.mubr.bf16.mxu0 0
        %1249 = vmatmul.mubr.bf16.gmra.mrb[0].mxu0 %v871
        %v1250 = vpop.f32.mrb[0].mxu0
        %v1251 = vadd.f32 0.0, %v1250
        %v1252 = vpop.f32.mrb[0].mxu0
        %v1253 = vadd.f32 0.0, %v1252
        %v1254 = vpop.f32.mrb[0].mxu0
        %v1255 = vadd.f32 0.0, %v1254
        %v1256 = vpop.f32.mrb[0].mxu0
        %v1257 = vadd.f32 0.0, %v1256
        %1258 = vdwg.mxu0
        %v1259 = vadd.f32 %v552, %v908
        %v1260 = vadd.f32 %v553, %v910
        %v1261 = vadd.f32 %v554, %v1101
        %v1262 = vadd.f32 %v555, %v1103
        %v1263 = vadd.f32 %v556, %v912
        %v1264 = vadd.f32 %v557, %v914
        %v1265 = vadd.f32 %v558, %v1105
        %v1266 = vadd.f32 %v559, %v1107
        %v1267 = vadd.f32 %v560, %v918
        %v1268 = vadd.f32 %v561, %v920
        %v1269 = vadd.f32 %v562, %v1111
        %v1270 = vadd.f32 %v563, %v1113
        %v1271 = vadd.f32 %v564, %v922
        %v1272 = vadd.f32 %v565, %v924
        %v1273 = vadd.f32 %v566, %v1115
        %v1274 = vadd.f32 %v567, %v1117
        %v1275 = vadd.f32 %v568, %v928
        %v1276 = vadd.f32 %v569, %v930
        %v1277 = vadd.f32 %v570, %v1121
        %v1278 = vadd.f32 %v571, %v1123
        %v1279 = vadd.f32 %v572, %v932
        %v1280 = vadd.f32 %v573, %v934
        %v1281 = vadd.f32 %v574, %v1125
        %v1282 = vadd.f32 %v575, %v1127
        %v1283 = vadd.f32 %v576, %v938
        %v1284 = vadd.f32 %v577, %v940
        %v1285 = vadd.f32 %v578, %v1131
        %v1286 = vadd.f32 %v579, %v1133
        %v1287 = vadd.f32 %v580, %v942
        %v1288 = vadd.f32 %v581, %v944
        %v1289 = vadd.f32 %v582, %v1135
        %v1290 = vadd.f32 %v583, %v1137
        %v1291 = vadd.f32 %v584, %v948
        %v1292 = vadd.f32 %v585, %v950
        %v1293 = vadd.f32 %v586, %v1141
        %v1294 = vadd.f32 %v587, %v1143
        %v1295 = vadd.f32 %v588, %v952
        %v1296 = vadd.f32 %v589, %v954
        %v1297 = vadd.f32 %v590, %v1145
        %v1298 = vadd.f32 %v591, %v1147
        %v1299 = vadd.f32 %v592, %v958
        %v1300 = vadd.f32 %v593, %v960
        %v1301 = vadd.f32 %v594, %v1151
        %v1302 = vadd.f32 %v595, %v1153
        %v1303 = vadd.f32 %v596, %v962
        %v1304 = vadd.f32 %v597, %v964
        %v1305 = vadd.f32 %v598, %v1155
        %v1306 = vadd.f32 %v599, %v1157
        %v1307 = vadd.f32 %v600, %v968
        %v1308 = vadd.f32 %v601, %v970
        %v1309 = vadd.f32 %v602, %v1161
        %v1310 = vadd.f32 %v603, %v1163
        %v1311 = vadd.f32 %v604, %v972
        %v1312 = vadd.f32 %v605, %v974
        %v1313 = vadd.f32 %v606, %v1165
        %v1314 = vadd.f32 %v607, %v1167
        %v1315 = vadd.f32 %v608, %v978
        %v1316 = vadd.f32 %v609, %v980
        %v1317 = vadd.f32 %v610, %v1171
        %v1318 = vadd.f32 %v611, %v1173
        %v1319 = vadd.f32 %v612, %v982
        %v1320 = vadd.f32 %v613, %v984
        %v1321 = vadd.f32 %v614, %v1175
        %v1322 = vadd.f32 %v615, %v1177
        %v1323 = vadd.f32 %v616, %v988
        %v1324 = vadd.f32 %v617, %v990
        %v1325 = vadd.f32 %v618, %v1181
        %v1326 = vadd.f32 %v619, %v1183
        %v1327 = vadd.f32 %v620, %v992
        %v1328 = vadd.f32 %v621, %v994
        %v1329 = vadd.f32 %v622, %v1185
        %v1330 = vadd.f32 %v623, %v1187
        %v1331 = vadd.f32 %v624, %v998
        %v1332 = vadd.f32 %v625, %v1000
        %v1333 = vadd.f32 %v626, %v1191
        %v1334 = vadd.f32 %v627, %v1193
        %v1335 = vadd.f32 %v628, %v1002
        %v1336 = vadd.f32 %v629, %v1004
        %v1337 = vadd.f32 %v630, %v1195
        %v1338 = vadd.f32 %v631, %v1197
        %v1339 = vadd.f32 %v632, %v1008
        %v1340 = vadd.f32 %v633, %v1010
        %v1341 = vadd.f32 %v634, %v1201
        %v1342 = vadd.f32 %v635, %v1203
        %v1343 = vadd.f32 %v636, %v1012
        %v1344 = vadd.f32 %v637, %v1014
        %v1345 = vadd.f32 %v638, %v1205
        %v1346 = vadd.f32 %v639, %v1207
        %v1347 = vadd.f32 %v640, %v1018
        %v1348 = vadd.f32 %v641, %v1020
        %v1349 = vadd.f32 %v642, %v1211
        %v1350 = vadd.f32 %v643, %v1213
        %v1351 = vadd.f32 %v644, %v1022
        %v1352 = vadd.f32 %v645, %v1024
        %v1353 = vadd.f32 %v646, %v1215
        %v1354 = vadd.f32 %v647, %v1217
        %v1355 = vadd.f32 %v648, %v1028
        %v1356 = vadd.f32 %v649, %v1030
        %v1357 = vadd.f32 %v650, %v1221
        %v1358 = vadd.f32 %v651, %v1223
        %v1359 = vadd.f32 %v652, %v1032
        %v1360 = vadd.f32 %v653, %v1034
        %v1361 = vadd.f32 %v654, %v1225
        %v1362 = vadd.f32 %v655, %v1227
        %v1363 = vadd.f32 %v656, %v1038
        %v1364 = vadd.f32 %v657, %v1040
        %v1365 = vadd.f32 %v658, %v1231
        %v1366 = vadd.f32 %v659, %v1233
        %v1367 = vadd.f32 %v660, %v1042
        %v1368 = vadd.f32 %v661, %v1044
        %v1369 = vadd.f32 %v662, %v1235
        %v1370 = vadd.f32 %v663, %v1237
        %v1371 = vadd.f32 %v664, %v1048
        %v1372 = vadd.f32 %v665, %v1050
        %v1373 = vadd.f32 %v666, %v1241
        %v1374 = vadd.f32 %v667, %v1243
        %v1375 = vadd.f32 %v668, %v1052
        %v1376 = vadd.f32 %v669, %v1054
        %v1377 = vadd.f32 %v670, %v1245
        %v1378 = vadd.f32 %v671, %v1247
        %v1379 = vadd.f32 %v672, %v1058
        %v1380 = vadd.f32 %v673, %v1060
        %v1381 = vadd.f32 %v674, %v1251
        %v1382 = vadd.f32 %v675, %v1253
        %v1383 = vadd.f32 %v676, %v1062
        %v1384 = vadd.f32 %v677, %v1064
        %v1385 = vadd.f32 %v678, %v1255
        %v1386 = vadd.f32 %v679, %v1257
        %1387 = vst [vmem:[#allocation2] sm:$0xff] %v1259
        %1388 = vst [vmem:[#allocation2 + $0x8] sm:$0xff] %v1260
        %1389 = vst [vmem:[#allocation2 + $0x10] sm:$0xff] %v1261
        %1390 = vst [vmem:[#allocation2 + $0x18] sm:$0xff] %v1262
        %1391 = vst [vmem:[#allocation2 + $0x20] sm:$0xff] %v1263
        %1392 = vst [vmem:[#allocation2 + $0x28] sm:$0xff] %v1264
        %1393 = vst [vmem:[#allocation2 + $0x30] sm:$0xff] %v1265
        %1394 = vst [vmem:[#allocation2 + $0x38] sm:$0xff] %v1266
        %1395 = vst [vmem:[#allocation2 + $0x40] sm:$0xff] %v1267
        %1396 = vst [vmem:[#allocation2 + $0x48] sm:$0xff] %v1268
        %1397 = vst [vmem:[#allocation2 + $0x50] sm:$0xff] %v1269
        %1398 = vst [vmem:[#allocation2 + $0x58] sm:$0xff] %v1270
        %1399 = vst [vmem:[#allocation2 + $0x60] sm:$0xff] %v1271
        %1400 = vst [vmem:[#allocation2 + $0x68] sm:$0xff] %v1272
        %1401 = vst [vmem:[#allocation2 + $0x70] sm:$0xff] %v1273
        %1402 = vst [vmem:[#allocation2 + $0x78] sm:$0xff] %v1274
        %1403 = vst [vmem:[#allocation2 + $0x80] sm:$0xff] %v1275
        %1404 = vst [vmem:[#allocation2 + $0x88] sm:$0xff] %v1276
        %1405 = vst [vmem:[#allocation2 + $0x90] sm:$0xff] %v1277
        %1406 = vst [vmem:[#allocation2 + $0x98] sm:$0xff] %v1278
        %1407 = vst [vmem:[#allocation2 + $0xa0] sm:$0xff] %v1279
        %1408 = vst [vmem:[#allocation2 + $0xa8] sm:$0xff] %v1280
        %1409 = vst [vmem:[#allocation2 + $0xb0] sm:$0xff] %v1281
        %1410 = vst [vmem:[#allocation2 + $0xb8] sm:$0xff] %v1282
        %1411 = vst [vmem:[#allocation2 + $0xc0] sm:$0xff] %v1283
        %1412 = vst [vmem:[#allocation2 + $0xc8] sm:$0xff] %v1284
        %1413 = vst [vmem:[#allocation2 + $0xd0] sm:$0xff] %v1285
        %1414 = vst [vmem:[#allocation2 + $0xd8] sm:$0xff] %v1286
        %1415 = vst [vmem:[#allocation2 + $0xe0] sm:$0xff] %v1287
        %1416 = vst [vmem:[#allocation2 + $0xe8] sm:$0xff] %v1288
        %1417 = vst [vmem:[#allocation2 + $0xf0] sm:$0xff] %v1289
        %1418 = vst [vmem:[#allocation2 + $0xf8] sm:$0xff] %v1290
        %1419 = vst [vmem:[#allocation2 + $0x100] sm:$0xff] %v1291
        %1420 = vst [vmem:[#allocation2 + $0x108] sm:$0xff] %v1292
        %1421 = vst [vmem:[#allocation2 + $0x110] sm:$0xff] %v1293
        %1422 = vst [vmem:[#allocation2 + $0x118] sm:$0xff] %v1294
        %1423 = vst [vmem:[#allocation2 + $0x120] sm:$0xff] %v1295
        %1424 = vst [vmem:[#allocation2 + $0x128] sm:$0xff] %v1296
        %1425 = vst [vmem:[#allocation2 + $0x130] sm:$0xff] %v1297
        %1426 = vst [vmem:[#allocation2 + $0x138] sm:$0xff] %v1298
        %1427 = vst [vmem:[#allocation2 + $0x140] sm:$0xff] %v1299
        %1428 = vst [vmem:[#allocation2 + $0x148] sm:$0xff] %v1300
        %1429 = vst [vmem:[#allocation2 + $0x150] sm:$0xff] %v1301
        %1430 = vst [vmem:[#allocation2 + $0x158] sm:$0xff] %v1302
        %1431 = vst [vmem:[#allocation2 + $0x160] sm:$0xff] %v1303
        %1432 = vst [vmem:[#allocation2 + $0x168] sm:$0xff] %v1304
        %1433 = vst [vmem:[#allocation2 + $0x170] sm:$0xff] %v1305
        %1434 = vst [vmem:[#allocation2 + $0x178] sm:$0xff] %v1306
        %1435 = vst [vmem:[#allocation2 + $0x180] sm:$0xff] %v1307
        %1436 = vst [vmem:[#allocation2 + $0x188] sm:$0xff] %v1308
        %1437 = vst [vmem:[#allocation2 + $0x190] sm:$0xff] %v1309
        %1438 = vst [vmem:[#allocation2 + $0x198] sm:$0xff] %v1310
        %1439 = vst [vmem:[#allocation2 + $0x1a0] sm:$0xff] %v1311
        %1440 = vst [vmem:[#allocation2 + $0x1a8] sm:$0xff] %v1312
        %1441 = vst [vmem:[#allocation2 + $0x1b0] sm:$0xff] %v1313
        %1442 = vst [vmem:[#allocation2 + $0x1b8] sm:$0xff] %v1314
        %1443 = vst [vmem:[#allocation2 + $0x1c0] sm:$0xff] %v1315
        %1444 = vst [vmem:[#allocation2 + $0x1c8] sm:$0xff] %v1316
        %1445 = vst [vmem:[#allocation2 + $0x1d0] sm:$0xff] %v1317
        %1446 = vst [vmem:[#allocation2 + $0x1d8] sm:$0xff] %v1318
        %1447 = vst [vmem:[#allocation2 + $0x1e0] sm:$0xff] %v1319
        %1448 = vst [vmem:[#allocation2 + $0x1e8] sm:$0xff] %v1320
        %1449 = vst [vmem:[#allocation2 + $0x1f0] sm:$0xff] %v1321
        %1450 = vst [vmem:[#allocation2 + $0x1f8] sm:$0xff] %v1322
        %1451 = vst [vmem:[#allocation2 + $0x200] sm:$0xff] %v1323
        %1452 = vst [vmem:[#allocation2 + $0x208] sm:$0xff] %v1324
        %1453 = vst [vmem:[#allocation2 + $0x210] sm:$0xff] %v1325
        %1454 = vst [vmem:[#allocation2 + $0x218] sm:$0xff] %v1326
        %1455 = vst [vmem:[#allocation2 + $0x220] sm:$0xff] %v1327
        %1456 = vst [vmem:[#allocation2 + $0x228] sm:$0xff] %v1328
        %1457 = vst [vmem:[#allocation2 + $0x230] sm:$0xff] %v1329
        %1458 = vst [vmem:[#allocation2 + $0x238] sm:$0xff] %v1330
        %1459 = vst [vmem:[#allocation2 + $0x240] sm:$0xff] %v1331
        %1460 = vst [vmem:[#allocation2 + $0x248] sm:$0xff] %v1332
        %1461 = vst [vmem:[#allocation2 + $0x250] sm:$0xff] %v1333
        %1462 = vst [vmem:[#allocation2 + $0x258] sm:$0xff] %v1334
        %1463 = vst [vmem:[#allocation2 + $0x260] sm:$0xff] %v1335
        %1464 = vst [vmem:[#allocation2 + $0x268] sm:$0xff] %v1336
        %1465 = vst [vmem:[#allocation2 + $0x270] sm:$0xff] %v1337
        %1466 = vst [vmem:[#allocation2 + $0x278] sm:$0xff] %v1338
        %1467 = vst [vmem:[#allocation2 + $0x280] sm:$0xff] %v1339
        %1468 = vst [vmem:[#allocation2 + $0x288] sm:$0xff] %v1340
        %1469 = vst [vmem:[#allocation2 + $0x290] sm:$0xff] %v1341
        %1470 = vst [vmem:[#allocation2 + $0x298] sm:$0xff] %v1342
        %1471 = vst [vmem:[#allocation2 + $0x2a0] sm:$0xff] %v1343
        %1472 = vst [vmem:[#allocation2 + $0x2a8] sm:$0xff] %v1344
        %1473 = vst [vmem:[#allocation2 + $0x2b0] sm:$0xff] %v1345
        %1474 = vst [vmem:[#allocation2 + $0x2b8] sm:$0xff] %v1346
        %1475 = vst [vmem:[#allocation2 + $0x2c0] sm:$0xff] %v1347
        %1476 = vst [vmem:[#allocation2 + $0x2c8] sm:$0xff] %v1348
        %1477 = vst [vmem:[#allocation2 + $0x2d0] sm:$0xff] %v1349
        %1478 = vst [vmem:[#allocation2 + $0x2d8] sm:$0xff] %v1350
        %1479 = vst [vmem:[#allocation2 + $0x2e0] sm:$0xff] %v1351
        %1480 = vst [vmem:[#allocation2 + $0x2e8] sm:$0xff] %v1352
        %1481 = vst [vmem:[#allocation2 + $0x2f0] sm:$0xff] %v1353
        %1482 = vst [vmem:[#allocation2 + $0x2f8] sm:$0xff] %v1354
        %1483 = vst [vmem:[#allocation2 + $0x300] sm:$0xff] %v1355
        %1484 = vst [vmem:[#allocation2 + $0x308] sm:$0xff] %v1356
        %1485 = vst [vmem:[#allocation2 + $0x310] sm:$0xff] %v1357
        %1486 = vst [vmem:[#allocation2 + $0x318] sm:$0xff] %v1358
        %1487 = vst [vmem:[#allocation2 + $0x320] sm:$0xff] %v1359
        %1488 = vst [vmem:[#allocation2 + $0x328] sm:$0xff] %v1360
        %1489 = vst [vmem:[#allocation2 + $0x330] sm:$0xff] %v1361
        %1490 = vst [vmem:[#allocation2 + $0x338] sm:$0xff] %v1362
        %1491 = vst [vmem:[#allocation2 + $0x340] sm:$0xff] %v1363
        %1492 = vst [vmem:[#allocation2 + $0x348] sm:$0xff] %v1364
        %1493 = vst [vmem:[#allocation2 + $0x350] sm:$0xff] %v1365
        %1494 = vst [vmem:[#allocation2 + $0x358] sm:$0xff] %v1366
        %1495 = vst [vmem:[#allocation2 + $0x360] sm:$0xff] %v1367
        %1496 = vst [vmem:[#allocation2 + $0x368] sm:$0xff] %v1368
        %1497 = vst [vmem:[#allocation2 + $0x370] sm:$0xff] %v1369
        %1498 = vst [vmem:[#allocation2 + $0x378] sm:$0xff] %v1370
        %1499 = vst [vmem:[#allocation2 + $0x380] sm:$0xff] %v1371
        %1500 = vst [vmem:[#allocation2 + $0x388] sm:$0xff] %v1372
        %1501 = vst [vmem:[#allocation2 + $0x390] sm:$0xff] %v1373
        %1502 = vst [vmem:[#allocation2 + $0x398] sm:$0xff] %v1374
        %1503 = vst [vmem:[#allocation2 + $0x3a0] sm:$0xff] %v1375
        %1504 = vst [vmem:[#allocation2 + $0x3a8] sm:$0xff] %v1376
        %1505 = vst [vmem:[#allocation2 + $0x3b0] sm:$0xff] %v1377
        %1506 = vst [vmem:[#allocation2 + $0x3b8] sm:$0xff] %v1378
        %1507 = vst [vmem:[#allocation2 + $0x3c0] sm:$0xff] %v1379
        %1508 = vst [vmem:[#allocation2 + $0x3c8] sm:$0xff] %v1380
        %1509 = vst [vmem:[#allocation2 + $0x3d0] sm:$0xff] %v1381
        %1510 = vst [vmem:[#allocation2 + $0x3d8] sm:$0xff] %v1382
        %1511 = vst [vmem:[#allocation2 + $0x3e0] sm:$0xff] %v1383
        %1512 = vst [vmem:[#allocation2 + $0x3e8] sm:$0xff] %v1384
        %1513 = vst [vmem:[#allocation2 + $0x3f0] sm:$0xff] %v1385
        %1514 = vst [vmem:[#allocation2 + $0x3f8] sm:$0xff] %v1386
        // Predicated region
        $region81: #{dnn_forward.1} parent=47 // pred_check
          %p1515 = pneg %p420
        $region82: #{dnn_forward.1} parent=47 // pred_check_branch
          %1517 = sbr.rel (%p1515) target = $region84
        $region83: #{dnn_forward.1} parent=47 // pred_region
          %v1518 = vld [vmem:[#allocation2] sm:$0xff]
          %v1519 = vld [vmem:[#allocation2 + $0x8] sm:$0xff]
          %v1520 = vld [vmem:[#allocation2 + $0x10] sm:$0xff]
          %v1521 = vld [vmem:[#allocation2 + $0x18] sm:$0xff]
          %v1522 = vld [vmem:[#allocation2 + $0x20] sm:$0xff]
          %v1523 = vld [vmem:[#allocation2 + $0x28] sm:$0xff]
          %v1524 = vld [vmem:[#allocation2 + $0x30] sm:$0xff]
          %v1525 = vld [vmem:[#allocation2 + $0x38] sm:$0xff]
          %v1526 = vld [vmem:[#allocation2 + $0x40] sm:$0xff]
          %v1527 = vld [vmem:[#allocation2 + $0x48] sm:$0xff]
          %v1528 = vld [vmem:[#allocation2 + $0x50] sm:$0xff]
          %v1529 = vld [vmem:[#allocation2 + $0x58] sm:$0xff]
          %v1530 = vld [vmem:[#allocation2 + $0x60] sm:$0xff]
          %v1531 = vld [vmem:[#allocation2 + $0x68] sm:$0xff]
          %v1532 = vld [vmem:[#allocation2 + $0x70] sm:$0xff]
          %v1533 = vld [vmem:[#allocation2 + $0x78] sm:$0xff]
          %v1534 = vld [vmem:[#allocation2 + $0x80] sm:$0xff]
          %v1535 = vld [vmem:[#allocation2 + $0x88] sm:$0xff]
          %v1536 = vld [vmem:[#allocation2 + $0x90] sm:$0xff]
          %v1537 = vld [vmem:[#allocation2 + $0x98] sm:$0xff]
          %v1538 = vld [vmem:[#allocation2 + $0xa0] sm:$0xff]
          %v1539 = vld [vmem:[#allocation2 + $0xa8] sm:$0xff]
          %v1540 = vld [vmem:[#allocation2 + $0xb0] sm:$0xff]
          %v1541 = vld [vmem:[#allocation2 + $0xb8] sm:$0xff]
          %v1542 = vld [vmem:[#allocation2 + $0xc0] sm:$0xff]
          %v1543 = vld [vmem:[#allocation2 + $0xc8] sm:$0xff]
          %v1544 = vld [vmem:[#allocation2 + $0xd0] sm:$0xff]
          %v1545 = vld [vmem:[#allocation2 + $0xd8] sm:$0xff]
          %v1546 = vld [vmem:[#allocation2 + $0xe0] sm:$0xff]
          %v1547 = vld [vmem:[#allocation2 + $0xe8] sm:$0xff]
          %v1548 = vld [vmem:[#allocation2 + $0xf0] sm:$0xff]
          %v1549 = vld [vmem:[#allocation2 + $0xf8] sm:$0xff]
          %v1550 = vld [vmem:[#allocation2 + $0x100] sm:$0xff]
          %v1551 = vld [vmem:[#allocation2 + $0x108] sm:$0xff]
          %v1552 = vld [vmem:[#allocation2 + $0x110] sm:$0xff]
          %v1553 = vld [vmem:[#allocation2 + $0x118] sm:$0xff]
          %v1554 = vld [vmem:[#allocation2 + $0x120] sm:$0xff]
          %v1555 = vld [vmem:[#allocation2 + $0x128] sm:$0xff]
          %v1556 = vld [vmem:[#allocation2 + $0x130] sm:$0xff]
          %v1557 = vld [vmem:[#allocation2 + $0x138] sm:$0xff]
          %v1558 = vld [vmem:[#allocation2 + $0x140] sm:$0xff]
          %v1559 = vld [vmem:[#allocation2 + $0x148] sm:$0xff]
          %v1560 = vld [vmem:[#allocation2 + $0x150] sm:$0xff]
          %v1561 = vld [vmem:[#allocation2 + $0x158] sm:$0xff]
          %v1562 = vld [vmem:[#allocation2 + $0x160] sm:$0xff]
          %v1563 = vld [vmem:[#allocation2 + $0x168] sm:$0xff]
          %v1564 = vld [vmem:[#allocation2 + $0x170] sm:$0xff]
          %v1565 = vld [vmem:[#allocation2 + $0x178] sm:$0xff]
          %v1566 = vld [vmem:[#allocation2 + $0x180] sm:$0xff]
          %v1567 = vld [vmem:[#allocation2 + $0x188] sm:$0xff]
          %v1568 = vld [vmem:[#allocation2 + $0x190] sm:$0xff]
          %v1569 = vld [vmem:[#allocation2 + $0x198] sm:$0xff]
          %v1570 = vld [vmem:[#allocation2 + $0x1a0] sm:$0xff]
          %v1571 = vld [vmem:[#allocation2 + $0x1a8] sm:$0xff]
          %v1572 = vld [vmem:[#allocation2 + $0x1b0] sm:$0xff]
          %v1573 = vld [vmem:[#allocation2 + $0x1b8] sm:$0xff]
          %v1574 = vld [vmem:[#allocation2 + $0x1c0] sm:$0xff]
          %v1575 = vld [vmem:[#allocation2 + $0x1c8] sm:$0xff]
          %v1576 = vld [vmem:[#allocation2 + $0x1d0] sm:$0xff]
          %v1577 = vld [vmem:[#allocation2 + $0x1d8] sm:$0xff]
          %v1578 = vld [vmem:[#allocation2 + $0x1e0] sm:$0xff]
          %v1579 = vld [vmem:[#allocation2 + $0x1e8] sm:$0xff]
          %v1580 = vld [vmem:[#allocation2 + $0x1f0] sm:$0xff]
          %v1581 = vld [vmem:[#allocation2 + $0x1f8] sm:$0xff]
          %v1582 = vld [vmem:[#allocation2 + $0x200] sm:$0xff]
          %v1583 = vld [vmem:[#allocation2 + $0x208] sm:$0xff]
          %v1584 = vld [vmem:[#allocation2 + $0x210] sm:$0xff]
          %v1585 = vld [vmem:[#allocation2 + $0x218] sm:$0xff]
          %v1586 = vld [vmem:[#allocation2 + $0x220] sm:$0xff]
          %v1587 = vld [vmem:[#allocation2 + $0x228] sm:$0xff]
          %v1588 = vld [vmem:[#allocation2 + $0x230] sm:$0xff]
          %v1589 = vld [vmem:[#allocation2 + $0x238] sm:$0xff]
          %v1590 = vld [vmem:[#allocation2 + $0x240] sm:$0xff]
          %v1591 = vld [vmem:[#allocation2 + $0x248] sm:$0xff]
          %v1592 = vld [vmem:[#allocation2 + $0x250] sm:$0xff]
          %v1593 = vld [vmem:[#allocation2 + $0x258] sm:$0xff]
          %v1594 = vld [vmem:[#allocation2 + $0x260] sm:$0xff]
          %v1595 = vld [vmem:[#allocation2 + $0x268] sm:$0xff]
          %v1596 = vld [vmem:[#allocation2 + $0x270] sm:$0xff]
          %v1597 = vld [vmem:[#allocation2 + $0x278] sm:$0xff]
          %v1598 = vld [vmem:[#allocation2 + $0x280] sm:$0xff]
          %v1599 = vld [vmem:[#allocation2 + $0x288] sm:$0xff]
          %v1600 = vld [vmem:[#allocation2 + $0x290] sm:$0xff]
          %v1601 = vld [vmem:[#allocation2 + $0x298] sm:$0xff]
          %v1602 = vld [vmem:[#allocation2 + $0x2a0] sm:$0xff]
          %v1603 = vld [vmem:[#allocation2 + $0x2a8] sm:$0xff]
          %v1604 = vld [vmem:[#allocation2 + $0x2b0] sm:$0xff]
          %v1605 = vld [vmem:[#allocation2 + $0x2b8] sm:$0xff]
          %v1606 = vld [vmem:[#allocation2 + $0x2c0] sm:$0xff]
          %v1607 = vld [vmem:[#allocation2 + $0x2c8] sm:$0xff]
          %v1608 = vld [vmem:[#allocation2 + $0x2d0] sm:$0xff]
          %v1609 = vld [vmem:[#allocation2 + $0x2d8] sm:$0xff]
          %v1610 = vld [vmem:[#allocation2 + $0x2e0] sm:$0xff]
          %v1611 = vld [vmem:[#allocation2 + $0x2e8] sm:$0xff]
          %v1612 = vld [vmem:[#allocation2 + $0x2f0] sm:$0xff]
          %v1613 = vld [vmem:[#allocation2 + $0x2f8] sm:$0xff]
          %v1614 = vld [vmem:[#allocation2 + $0x300] sm:$0xff]
          %v1615 = vld [vmem:[#allocation2 + $0x308] sm:$0xff]
          %v1616 = vld [vmem:[#allocation2 + $0x310] sm:$0xff]
          %v1617 = vld [vmem:[#allocation2 + $0x318] sm:$0xff]
          %v1618 = vld [vmem:[#allocation2 + $0x320] sm:$0xff]
          %v1619 = vld [vmem:[#allocation2 + $0x328] sm:$0xff]
          %v1620 = vld [vmem:[#allocation2 + $0x330] sm:$0xff]
          %v1621 = vld [vmem:[#allocation2 + $0x338] sm:$0xff]
          %v1622 = vld [vmem:[#allocation2 + $0x340] sm:$0xff]
          %v1623 = vld [vmem:[#allocation2 + $0x348] sm:$0xff]
          %v1624 = vld [vmem:[#allocation2 + $0x350] sm:$0xff]
          %v1625 = vld [vmem:[#allocation2 + $0x358] sm:$0xff]
          %v1626 = vld [vmem:[#allocation2 + $0x360] sm:$0xff]
          %v1627 = vld [vmem:[#allocation2 + $0x368] sm:$0xff]
          %v1628 = vld [vmem:[#allocation2 + $0x370] sm:$0xff]
          %v1629 = vld [vmem:[#allocation2 + $0x378] sm:$0xff]
          %v1630 = vld [vmem:[#allocation2 + $0x380] sm:$0xff]
          %v1631 = vld [vmem:[#allocation2 + $0x388] sm:$0xff]
          %v1632 = vld [vmem:[#allocation2 + $0x390] sm:$0xff]
          %v1633 = vld [vmem:[#allocation2 + $0x398] sm:$0xff]
          %v1634 = vld [vmem:[#allocation2 + $0x3a0] sm:$0xff]
          %v1635 = vld [vmem:[#allocation2 + $0x3a8] sm:$0xff]
          %v1636 = vld [vmem:[#allocation2 + $0x3b0] sm:$0xff]
          %v1637 = vld [vmem:[#allocation2 + $0x3b8] sm:$0xff]
          %v1638 = vld [vmem:[#allocation2 + $0x3c0] sm:$0xff]
          %v1639 = vld [vmem:[#allocation2 + $0x3c8] sm:$0xff]
          %v1640 = vld [vmem:[#allocation2 + $0x3d0] sm:$0xff]
          %v1641 = vld [vmem:[#allocation2 + $0x3d8] sm:$0xff]
          %v1642 = vld [vmem:[#allocation2 + $0x3e0] sm:$0xff]
          %v1643 = vld [vmem:[#allocation2 + $0x3e8] sm:$0xff]
          %v1644 = vld [vmem:[#allocation2 + $0x3f0] sm:$0xff]
          %v1645 = vld [vmem:[#allocation2 + $0x3f8] sm:$0xff]
          %v1646 = vld [vmem:[#allocation8] sm:$0xf]
          %v1648 = vlaneseq
          %v1649 = vshrl.u32 %v1648, 7
          %v1650 = vsub.s32 0, %v1649
          %v1651 = vrot.slane %v1646, %v1650
          %v1652 = vlaneseq
          %v1653 = vshrl.u32 %v1652, 7
          %v1654 = vsub.s32 1, %v1653
          %v1655 = vrot.slane %v1646, %v1654
          %v1656 = vlaneseq
          %v1657 = vshrl.u32 %v1656, 7
          %v1658 = vsub.s32 2, %v1657
          %v1659 = vrot.slane %v1646, %v1658
          %v1660 = vlaneseq
          %v1661 = vshrl.u32 %v1660, 7
          %v1662 = vsub.s32 3, %v1661
          %v1663 = vrot.slane %v1646, %v1662
          %v1668 = vadd.f32 %v1518, %v1651
          %v1669 = vadd.f32 %v1519, %v1655
          %v1670 = vadd.f32 %v1520, %v1659
          %v1671 = vadd.f32 %v1521, %v1663
          %v1672 = vadd.f32 %v1522, %v1651
          %v1673 = vadd.f32 %v1523, %v1655
          %v1674 = vadd.f32 %v1524, %v1659
          %v1675 = vadd.f32 %v1525, %v1663
          %v1676 = vadd.f32 %v1526, %v1651
          %v1677 = vadd.f32 %v1527, %v1655
          %v1678 = vadd.f32 %v1528, %v1659
          %v1679 = vadd.f32 %v1529, %v1663
          %v1680 = vadd.f32 %v1530, %v1651
          %v1681 = vadd.f32 %v1531, %v1655
          %v1682 = vadd.f32 %v1532, %v1659
          %v1683 = vadd.f32 %v1533, %v1663
          %v1684 = vadd.f32 %v1534, %v1651
          %v1685 = vadd.f32 %v1535, %v1655
          %v1686 = vadd.f32 %v1536, %v1659
          %v1687 = vadd.f32 %v1537, %v1663
          %v1688 = vadd.f32 %v1538, %v1651
          %v1689 = vadd.f32 %v1539, %v1655
          %v1690 = vadd.f32 %v1540, %v1659
          %v1691 = vadd.f32 %v1541, %v1663
          %v1692 = vadd.f32 %v1542, %v1651
          %v1693 = vadd.f32 %v1543, %v1655
          %v1694 = vadd.f32 %v1544, %v1659
          %v1695 = vadd.f32 %v1545, %v1663
          %v1696 = vadd.f32 %v1546, %v1651
          %v1697 = vadd.f32 %v1547, %v1655
          %v1698 = vadd.f32 %v1548, %v1659
          %v1699 = vadd.f32 %v1549, %v1663
          %v1700 = vadd.f32 %v1550, %v1651
          %v1701 = vadd.f32 %v1551, %v1655
          %v1702 = vadd.f32 %v1552, %v1659
          %v1703 = vadd.f32 %v1553, %v1663
          %v1704 = vadd.f32 %v1554, %v1651
          %v1705 = vadd.f32 %v1555, %v1655
          %v1706 = vadd.f32 %v1556, %v1659
          %v1707 = vadd.f32 %v1557, %v1663
          %v1708 = vadd.f32 %v1558, %v1651
          %v1709 = vadd.f32 %v1559, %v1655
          %v1710 = vadd.f32 %v1560, %v1659
          %v1711 = vadd.f32 %v1561, %v1663
          %v1712 = vadd.f32 %v1562, %v1651
          %v1713 = vadd.f32 %v1563, %v1655
          %v1714 = vadd.f32 %v1564, %v1659
          %v1715 = vadd.f32 %v1565, %v1663
          %v1716 = vadd.f32 %v1566, %v1651
          %v1717 = vadd.f32 %v1567, %v1655
          %v1718 = vadd.f32 %v1568, %v1659
          %v1719 = vadd.f32 %v1569, %v1663
          %v1720 = vadd.f32 %v1570, %v1651
          %v1721 = vadd.f32 %v1571, %v1655
          %v1722 = vadd.f32 %v1572, %v1659
          %v1723 = vadd.f32 %v1573, %v1663
          %v1724 = vadd.f32 %v1574, %v1651
          %v1725 = vadd.f32 %v1575, %v1655
          %v1726 = vadd.f32 %v1576, %v1659
          %v1727 = vadd.f32 %v1577, %v1663
          %v1728 = vadd.f32 %v1578, %v1651
          %v1729 = vadd.f32 %v1579, %v1655
          %v1730 = vadd.f32 %v1580, %v1659
          %v1731 = vadd.f32 %v1581, %v1663
          %v1732 = vadd.f32 %v1582, %v1651
          %v1733 = vadd.f32 %v1583, %v1655
          %v1734 = vadd.f32 %v1584, %v1659
          %v1735 = vadd.f32 %v1585, %v1663
          %v1736 = vadd.f32 %v1586, %v1651
          %v1737 = vadd.f32 %v1587, %v1655
          %v1738 = vadd.f32 %v1588, %v1659
          %v1739 = vadd.f32 %v1589, %v1663
          %v1740 = vadd.f32 %v1590, %v1651
          %v1741 = vadd.f32 %v1591, %v1655
          %v1742 = vadd.f32 %v1592, %v1659
          %v1743 = vadd.f32 %v1593, %v1663
          %v1744 = vadd.f32 %v1594, %v1651
          %v1745 = vadd.f32 %v1595, %v1655
          %v1746 = vadd.f32 %v1596, %v1659
          %v1747 = vadd.f32 %v1597, %v1663
          %v1748 = vadd.f32 %v1598, %v1651
          %v1749 = vadd.f32 %v1599, %v1655
          %v1750 = vadd.f32 %v1600, %v1659
          %v1751 = vadd.f32 %v1601, %v1663
          %v1752 = vadd.f32 %v1602, %v1651
          %v1753 = vadd.f32 %v1603, %v1655
          %v1754 = vadd.f32 %v1604, %v1659
          %v1755 = vadd.f32 %v1605, %v1663
          %v1756 = vadd.f32 %v1606, %v1651
          %v1757 = vadd.f32 %v1607, %v1655
          %v1758 = vadd.f32 %v1608, %v1659
          %v1759 = vadd.f32 %v1609, %v1663
          %v1760 = vadd.f32 %v1610, %v1651
          %v1761 = vadd.f32 %v1611, %v1655
          %v1762 = vadd.f32 %v1612, %v1659
          %v1763 = vadd.f32 %v1613, %v1663
          %v1764 = vadd.f32 %v1614, %v1651
          %v1765 = vadd.f32 %v1615, %v1655
          %v1766 = vadd.f32 %v1616, %v1659
          %v1767 = vadd.f32 %v1617, %v1663
          %v1768 = vadd.f32 %v1618, %v1651
          %v1769 = vadd.f32 %v1619, %v1655
          %v1770 = vadd.f32 %v1620, %v1659
          %v1771 = vadd.f32 %v1621, %v1663
          %v1772 = vadd.f32 %v1622, %v1651
          %v1773 = vadd.f32 %v1623, %v1655
          %v1774 = vadd.f32 %v1624, %v1659
          %v1775 = vadd.f32 %v1625, %v1663
          %v1776 = vadd.f32 %v1626, %v1651
          %v1777 = vadd.f32 %v1627, %v1655
          %v1778 = vadd.f32 %v1628, %v1659
          %v1779 = vadd.f32 %v1629, %v1663
          %v1780 = vadd.f32 %v1630, %v1651
          %v1781 = vadd.f32 %v1631, %v1655
          %v1782 = vadd.f32 %v1632, %v1659
          %v1783 = vadd.f32 %v1633, %v1663
          %v1784 = vadd.f32 %v1634, %v1651
          %v1785 = vadd.f32 %v1635, %v1655
          %v1786 = vadd.f32 %v1636, %v1659
          %v1787 = vadd.f32 %v1637, %v1663
          %v1788 = vadd.f32 %v1638, %v1651
          %v1789 = vadd.f32 %v1639, %v1655
          %v1790 = vadd.f32 %v1640, %v1659
          %v1791 = vadd.f32 %v1641, %v1663
          %v1792 = vadd.f32 %v1642, %v1651
          %v1793 = vadd.f32 %v1643, %v1655
          %v1794 = vadd.f32 %v1644, %v1659
          %v1795 = vadd.f32 %v1645, %v1663
          %v1796 = vmax.f32 %v1668, 0.0
          %v1797 = vmax.f32 %v1669, 0.0
          %v1798 = vmax.f32 %v1670, 0.0
          %v1799 = vmax.f32 %v1671, 0.0
          %v1800 = vmax.f32 %v1672, 0.0
          %v1801 = vmax.f32 %v1673, 0.0
          %v1802 = vmax.f32 %v1674, 0.0
          %v1803 = vmax.f32 %v1675, 0.0
          %v1804 = vmax.f32 %v1676, 0.0
          %v1805 = vmax.f32 %v1677, 0.0
          %v1806 = vmax.f32 %v1678, 0.0
          %v1807 = vmax.f32 %v1679, 0.0
          %v1808 = vmax.f32 %v1680, 0.0
          %v1809 = vmax.f32 %v1681, 0.0
          %v1810 = vmax.f32 %v1682, 0.0
          %v1811 = vmax.f32 %v1683, 0.0
          %v1812 = vmax.f32 %v1684, 0.0
          %v1813 = vmax.f32 %v1685, 0.0
          %v1814 = vmax.f32 %v1686, 0.0
          %v1815 = vmax.f32 %v1687, 0.0
          %v1816 = vmax.f32 %v1688, 0.0
          %v1817 = vmax.f32 %v1689, 0.0
          %v1818 = vmax.f32 %v1690, 0.0
          %v1819 = vmax.f32 %v1691, 0.0
          %v1820 = vmax.f32 %v1692, 0.0
          %v1821 = vmax.f32 %v1693, 0.0
          %v1822 = vmax.f32 %v1694, 0.0
          %v1823 = vmax.f32 %v1695, 0.0
          %v1824 = vmax.f32 %v1696, 0.0
          %v1825 = vmax.f32 %v1697, 0.0
          %v1826 = vmax.f32 %v1698, 0.0
          %v1827 = vmax.f32 %v1699, 0.0
          %v1828 = vmax.f32 %v1700, 0.0
          %v1829 = vmax.f32 %v1701, 0.0
          %v1830 = vmax.f32 %v1702, 0.0
          %v1831 = vmax.f32 %v1703, 0.0
          %v1832 = vmax.f32 %v1704, 0.0
          %v1833 = vmax.f32 %v1705, 0.0
          %v1834 = vmax.f32 %v1706, 0.0
          %v1835 = vmax.f32 %v1707, 0.0
          %v1836 = vmax.f32 %v1708, 0.0
          %v1837 = vmax.f32 %v1709, 0.0
          %v1838 = vmax.f32 %v1710, 0.0
          %v1839 = vmax.f32 %v1711, 0.0
          %v1840 = vmax.f32 %v1712, 0.0
          %v1841 = vmax.f32 %v1713, 0.0
          %v1842 = vmax.f32 %v1714, 0.0
          %v1843 = vmax.f32 %v1715, 0.0
          %v1844 = vmax.f32 %v1716, 0.0
          %v1845 = vmax.f32 %v1717, 0.0
          %v1846 = vmax.f32 %v1718, 0.0
          %v1847 = vmax.f32 %v1719, 0.0
          %v1848 = vmax.f32 %v1720, 0.0
          %v1849 = vmax.f32 %v1721, 0.0
          %v1850 = vmax.f32 %v1722, 0.0
          %v1851 = vmax.f32 %v1723, 0.0
          %v1852 = vmax.f32 %v1724, 0.0
          %v1853 = vmax.f32 %v1725, 0.0
          %v1854 = vmax.f32 %v1726, 0.0
          %v1855 = vmax.f32 %v1727, 0.0
          %v1856 = vmax.f32 %v1728, 0.0
          %v1857 = vmax.f32 %v1729, 0.0
          %v1858 = vmax.f32 %v1730, 0.0
          %v1859 = vmax.f32 %v1731, 0.0
          %v1860 = vmax.f32 %v1732, 0.0
          %v1861 = vmax.f32 %v1733, 0.0
          %v1862 = vmax.f32 %v1734, 0.0
          %v1863 = vmax.f32 %v1735, 0.0
          %v1864 = vmax.f32 %v1736, 0.0
          %v1865 = vmax.f32 %v1737, 0.0
          %v1866 = vmax.f32 %v1738, 0.0
          %v1867 = vmax.f32 %v1739, 0.0
          %v1868 = vmax.f32 %v1740, 0.0
          %v1869 = vmax.f32 %v1741, 0.0
          %v1870 = vmax.f32 %v1742, 0.0
          %v1871 = vmax.f32 %v1743, 0.0
          %v1872 = vmax.f32 %v1744, 0.0
          %v1873 = vmax.f32 %v1745, 0.0
          %v1874 = vmax.f32 %v1746, 0.0
          %v1875 = vmax.f32 %v1747, 0.0
          %v1876 = vmax.f32 %v1748, 0.0
          %v1877 = vmax.f32 %v1749, 0.0
          %v1878 = vmax.f32 %v1750, 0.0
          %v1879 = vmax.f32 %v1751, 0.0
          %v1880 = vmax.f32 %v1752, 0.0
          %v1881 = vmax.f32 %v1753, 0.0
          %v1882 = vmax.f32 %v1754, 0.0
          %v1883 = vmax.f32 %v1755, 0.0
          %v1884 = vmax.f32 %v1756, 0.0
          %v1885 = vmax.f32 %v1757, 0.0
          %v1886 = vmax.f32 %v1758, 0.0
          %v1887 = vmax.f32 %v1759, 0.0
          %v1888 = vmax.f32 %v1760, 0.0
          %v1889 = vmax.f32 %v1761, 0.0
          %v1890 = vmax.f32 %v1762, 0.0
          %v1891 = vmax.f32 %v1763, 0.0
          %v1892 = vmax.f32 %v1764, 0.0
          %v1893 = vmax.f32 %v1765, 0.0
          %v1894 = vmax.f32 %v1766, 0.0
          %v1895 = vmax.f32 %v1767, 0.0
          %v1896 = vmax.f32 %v1768, 0.0
          %v1897 = vmax.f32 %v1769, 0.0
          %v1898 = vmax.f32 %v1770, 0.0
          %v1899 = vmax.f32 %v1771, 0.0
          %v1900 = vmax.f32 %v1772, 0.0
          %v1901 = vmax.f32 %v1773, 0.0
          %v1902 = vmax.f32 %v1774, 0.0
          %v1903 = vmax.f32 %v1775, 0.0
          %v1904 = vmax.f32 %v1776, 0.0
          %v1905 = vmax.f32 %v1777, 0.0
          %v1906 = vmax.f32 %v1778, 0.0
          %v1907 = vmax.f32 %v1779, 0.0
          %v1908 = vmax.f32 %v1780, 0.0
          %v1909 = vmax.f32 %v1781, 0.0
          %v1910 = vmax.f32 %v1782, 0.0
          %v1911 = vmax.f32 %v1783, 0.0
          %v1912 = vmax.f32 %v1784, 0.0
          %v1913 = vmax.f32 %v1785, 0.0
          %v1914 = vmax.f32 %v1786, 0.0
          %v1915 = vmax.f32 %v1787, 0.0
          %v1916 = vmax.f32 %v1788, 0.0
          %v1917 = vmax.f32 %v1789, 0.0
          %v1918 = vmax.f32 %v1790, 0.0
          %v1919 = vmax.f32 %v1791, 0.0
          %v1920 = vmax.f32 %v1792, 0.0
          %v1921 = vmax.f32 %v1793, 0.0
          %v1922 = vmax.f32 %v1794, 0.0
          %v1923 = vmax.f32 %v1795, 0.0
          %v1924 = vpack.c.bf16 %v1800, %v1796
          %v1925 = vpack.c.bf16 %v1801, %v1797
          %v1926 = vpack.c.bf16 %v1802, %v1798
          %v1927 = vpack.c.bf16 %v1803, %v1799
          %v1928 = vpack.c.bf16 %v1808, %v1804
          %v1929 = vpack.c.bf16 %v1809, %v1805
          %v1930 = vpack.c.bf16 %v1810, %v1806
          %v1931 = vpack.c.bf16 %v1811, %v1807
          %v1932 = vpack.c.bf16 %v1816, %v1812
          %v1933 = vpack.c.bf16 %v1817, %v1813
          %v1934 = vpack.c.bf16 %v1818, %v1814
          %v1935 = vpack.c.bf16 %v1819, %v1815
          %v1936 = vpack.c.bf16 %v1824, %v1820
          %v1937 = vpack.c.bf16 %v1825, %v1821
          %v1938 = vpack.c.bf16 %v1826, %v1822
          %v1939 = vpack.c.bf16 %v1827, %v1823
          %v1940 = vpack.c.bf16 %v1832, %v1828
          %v1941 = vpack.c.bf16 %v1833, %v1829
          %v1942 = vpack.c.bf16 %v1834, %v1830
          %v1943 = vpack.c.bf16 %v1835, %v1831
          %v1944 = vpack.c.bf16 %v1840, %v1836
          %v1945 = vpack.c.bf16 %v1841, %v1837
          %v1946 = vpack.c.bf16 %v1842, %v1838
          %v1947 = vpack.c.bf16 %v1843, %v1839
          %v1948 = vpack.c.bf16 %v1848, %v1844
          %v1949 = vpack.c.bf16 %v1849, %v1845
          %v1950 = vpack.c.bf16 %v1850, %v1846
          %v1951 = vpack.c.bf16 %v1851, %v1847
          %v1952 = vpack.c.bf16 %v1856, %v1852
          %v1953 = vpack.c.bf16 %v1857, %v1853
          %v1954 = vpack.c.bf16 %v1858, %v1854
          %v1955 = vpack.c.bf16 %v1859, %v1855
          %v1956 = vpack.c.bf16 %v1864, %v1860
          %v1957 = vpack.c.bf16 %v1865, %v1861
          %v1958 = vpack.c.bf16 %v1866, %v1862
          %v1959 = vpack.c.bf16 %v1867, %v1863
          %v1960 = vpack.c.bf16 %v1872, %v1868
          %v1961 = vpack.c.bf16 %v1873, %v1869
          %v1962 = vpack.c.bf16 %v1874, %v1870
          %v1963 = vpack.c.bf16 %v1875, %v1871
          %v1964 = vpack.c.bf16 %v1880, %v1876
          %v1965 = vpack.c.bf16 %v1881, %v1877
          %v1966 = vpack.c.bf16 %v1882, %v1878
          %v1967 = vpack.c.bf16 %v1883, %v1879
          %v1968 = vpack.c.bf16 %v1888, %v1884
          %v1969 = vpack.c.bf16 %v1889, %v1885
          %v1970 = vpack.c.bf16 %v1890, %v1886
          %v1971 = vpack.c.bf16 %v1891, %v1887
          %v1972 = vpack.c.bf16 %v1896, %v1892
          %v1973 = vpack.c.bf16 %v1897, %v1893
          %v1974 = vpack.c.bf16 %v1898, %v1894
          %v1975 = vpack.c.bf16 %v1899, %v1895
          %v1976 = vpack.c.bf16 %v1904, %v1900
          %v1977 = vpack.c.bf16 %v1905, %v1901
          %v1978 = vpack.c.bf16 %v1906, %v1902
          %v1979 = vpack.c.bf16 %v1907, %v1903
          %v1980 = vpack.c.bf16 %v1912, %v1908
          %v1981 = vpack.c.bf16 %v1913, %v1909
          %v1982 = vpack.c.bf16 %v1914, %v1910
          %v1983 = vpack.c.bf16 %v1915, %v1911
          %v1984 = vpack.c.bf16 %v1920, %v1916
          %v1985 = vpack.c.bf16 %v1921, %v1917
          %v1986 = vpack.c.bf16 %v1922, %v1918
          %v1987 = vpack.c.bf16 %v1923, %v1919
          %v1988 = vld [vmem:[#allocation9] sm:$0xf]
          %v1989 = vld [vmem:[#allocation9 + $0x4] sm:$0xf]
          %v1990 = vld [vmem:[#allocation9 + $0x8] sm:$0xf]
          %v1991 = vld [vmem:[#allocation9 + $0xc] sm:$0xf]
          %v1992 = vld [vmem:[#allocation9 + $0x10] sm:$0xf]
          %v1993 = vld [vmem:[#allocation9 + $0x14] sm:$0xf]
          %v1994 = vld [vmem:[#allocation9 + $0x18] sm:$0xf]
          %v1995 = vld [vmem:[#allocation9 + $0x1c] sm:$0xf]
          %v1996 = vld [vmem:[#allocation9 + $0x20] sm:$0xf]
          %v1997 = vld [vmem:[#allocation9 + $0x24] sm:$0xf]
          %v1998 = vld [vmem:[#allocation9 + $0x28] sm:$0xf]
          %v1999 = vld [vmem:[#allocation9 + $0x2c] sm:$0xf]
          %v2000 = vld [vmem:[#allocation9 + $0x30] sm:$0xf]
          %v2001 = vld [vmem:[#allocation9 + $0x34] sm:$0xf]
          %v2002 = vld [vmem:[#allocation9 + $0x38] sm:$0xf]
          %v2003 = vld [vmem:[#allocation9 + $0x3c] sm:$0xf]
          %v2004 = vld [vmem:[#allocation9 + $0x40] sm:$0xf]
          %v2005 = vld [vmem:[#allocation9 + $0x44] sm:$0xf]
          %v2006 = vld [vmem:[#allocation9 + $0x48] sm:$0xf]
          %v2007 = vld [vmem:[#allocation9 + $0x4c] sm:$0xf]
          %v2008 = vld [vmem:[#allocation9 + $0x50] sm:$0xf]
          %v2009 = vld [vmem:[#allocation9 + $0x54] sm:$0xf]
          %v2010 = vld [vmem:[#allocation9 + $0x58] sm:$0xf]
          %v2011 = vld [vmem:[#allocation9 + $0x5c] sm:$0xf]
          %v2012 = vld [vmem:[#allocation9 + $0x60] sm:$0xf]
          %v2013 = vld [vmem:[#allocation9 + $0x64] sm:$0xf]
          %v2014 = vld [vmem:[#allocation9 + $0x68] sm:$0xf]
          %v2015 = vld [vmem:[#allocation9 + $0x6c] sm:$0xf]
          %v2016 = vld [vmem:[#allocation9 + $0x70] sm:$0xf]
          %v2017 = vld [vmem:[#allocation9 + $0x74] sm:$0xf]
          %v2018 = vld [vmem:[#allocation9 + $0x78] sm:$0xf]
          %v2019 = vld [vmem:[#allocation9 + $0x7c] sm:$0xf]
          %v2020 = vld [vmem:[#allocation9 + $0x80] sm:$0xf]
          %v2021 = vld [vmem:[#allocation9 + $0x84] sm:$0xf]
          %v2022 = vld [vmem:[#allocation9 + $0x88] sm:$0xf]
          %v2023 = vld [vmem:[#allocation9 + $0x8c] sm:$0xf]
          %v2024 = vld [vmem:[#allocation9 + $0x90] sm:$0xf]
          %v2025 = vld [vmem:[#allocation9 + $0x94] sm:$0xf]
          %v2026 = vld [vmem:[#allocation9 + $0x98] sm:$0xf]
          %v2027 = vld [vmem:[#allocation9 + $0x9c] sm:$0xf]
          %v2028 = vld [vmem:[#allocation9 + $0xa0] sm:$0xf]
          %v2029 = vld [vmem:[#allocation9 + $0xa4] sm:$0xf]
          %v2030 = vld [vmem:[#allocation9 + $0xa8] sm:$0xf]
          %v2031 = vld [vmem:[#allocation9 + $0xac] sm:$0xf]
          %v2032 = vld [vmem:[#allocation9 + $0xb0] sm:$0xf]
          %v2033 = vld [vmem:[#allocation9 + $0xb4] sm:$0xf]
          %v2034 = vld [vmem:[#allocation9 + $0xb8] sm:$0xf]
          %v2035 = vld [vmem:[#allocation9 + $0xbc] sm:$0xf]
          %v2036 = vld [vmem:[#allocation9 + $0xc0] sm:$0xf]
          %v2037 = vld [vmem:[#allocation9 + $0xc4] sm:$0xf]
          %v2038 = vld [vmem:[#allocation9 + $0xc8] sm:$0xf]
          %v2039 = vld [vmem:[#allocation9 + $0xcc] sm:$0xf]
          %v2040 = vld [vmem:[#allocation9 + $0xd0] sm:$0xf]
          %v2041 = vld [vmem:[#allocation9 + $0xd4] sm:$0xf]
          %v2042 = vld [vmem:[#allocation9 + $0xd8] sm:$0xf]
          %v2043 = vld [vmem:[#allocation9 + $0xdc] sm:$0xf]
          %v2044 = vld [vmem:[#allocation9 + $0xe0] sm:$0xf]
          %v2045 = vld [vmem:[#allocation9 + $0xe4] sm:$0xf]
          %v2046 = vld [vmem:[#allocation9 + $0xe8] sm:$0xf]
          %v2047 = vld [vmem:[#allocation9 + $0xec] sm:$0xf]
          %v2048 = vld [vmem:[#allocation9 + $0xf0] sm:$0xf]
          %v2049 = vld [vmem:[#allocation9 + $0xf4] sm:$0xf]
          %v2050 = vld [vmem:[#allocation9 + $0xf8] sm:$0xf]
          %v2051 = vld [vmem:[#allocation9 + $0xfc] sm:$0xf]
          %v2052 = vld [vmem:[#allocation11] sm:$0x1]
          %v2054 = vlaneseq
          %v2055 = vshrl.u32 %v2054, 7
          %v2056 = vsub.s32 0, %v2055
          %v2057 = vrot.slane %v2052, %v2056
          %v2123 = vunpack.c.l.b16 %v1988
          %v2124 = vunpack.c.l.b16 %v1989
          %v2125 = vunpack.c.l.b16 %v1990
          %v2126 = vunpack.c.l.b16 %v1991
          %v2127 = vunpack.c.l.b16 %v1992
          %v2128 = vunpack.c.l.b16 %v1993
          %v2129 = vunpack.c.l.b16 %v1994
          %v2130 = vunpack.c.l.b16 %v1995
          %v2131 = vunpack.c.l.b16 %v1996
          %v2132 = vunpack.c.l.b16 %v1997
          %v2133 = vunpack.c.l.b16 %v1998
          %v2134 = vunpack.c.l.b16 %v1999
          %v2135 = vunpack.c.l.b16 %v2000
          %v2136 = vunpack.c.l.b16 %v2001
          %v2137 = vunpack.c.l.b16 %v2002
          %v2138 = vunpack.c.l.b16 %v2003
          %v2139 = vunpack.c.l.b16 %v2004
          %v2140 = vunpack.c.l.b16 %v2005
          %v2141 = vunpack.c.l.b16 %v2006
          %v2142 = vunpack.c.l.b16 %v2007
          %v2143 = vunpack.c.l.b16 %v2008
          %v2144 = vunpack.c.l.b16 %v2009
          %v2145 = vunpack.c.l.b16 %v2010
          %v2146 = vunpack.c.l.b16 %v2011
          %v2147 = vunpack.c.l.b16 %v2012
          %v2148 = vunpack.c.l.b16 %v2013
          %v2149 = vunpack.c.l.b16 %v2014
          %v2150 = vunpack.c.l.b16 %v2015
          %v2151 = vunpack.c.l.b16 %v2016
          %v2152 = vunpack.c.l.b16 %v2017
          %v2153 = vunpack.c.l.b16 %v2018
          %v2154 = vunpack.c.l.b16 %v2019
          %v2155 = vunpack.c.l.b16 %v2020
          %v2156 = vunpack.c.l.b16 %v2021
          %v2157 = vunpack.c.l.b16 %v2022
          %v2158 = vunpack.c.l.b16 %v2023
          %v2159 = vunpack.c.l.b16 %v2024
          %v2160 = vunpack.c.l.b16 %v2025
          %v2161 = vunpack.c.l.b16 %v2026
          %v2162 = vunpack.c.l.b16 %v2027
          %v2163 = vunpack.c.l.b16 %v2028
          %v2164 = vunpack.c.l.b16 %v2029
          %v2165 = vunpack.c.l.b16 %v2030
          %v2166 = vunpack.c.l.b16 %v2031
          %v2167 = vunpack.c.l.b16 %v2032
          %v2168 = vunpack.c.l.b16 %v2033
          %v2169 = vunpack.c.l.b16 %v2034
          %v2170 = vunpack.c.l.b16 %v2035
          %v2171 = vunpack.c.l.b16 %v2036
          %v2172 = vunpack.c.l.b16 %v2037
          %v2173 = vunpack.c.l.b16 %v2038
          %v2174 = vunpack.c.l.b16 %v2039
          %v2175 = vunpack.c.l.b16 %v2040
          %v2176 = vunpack.c.l.b16 %v2041
          %v2177 = vunpack.c.l.b16 %v2042
          %v2178 = vunpack.c.l.b16 %v2043
          %v2179 = vunpack.c.l.b16 %v2044
          %v2180 = vunpack.c.l.b16 %v2045
          %v2181 = vunpack.c.l.b16 %v2046
          %v2182 = vunpack.c.l.b16 %v2047
          %v2183 = vunpack.c.l.b16 %v2048
          %v2184 = vunpack.c.l.b16 %v2049
          %v2185 = vunpack.c.l.b16 %v2050
          %v2186 = vunpack.c.l.b16 %v2051
          %v2187 = vpack.c.b16 %v2124, %v2123
          %v2188 = vpack.c.b16 %v2126, %v2125
          %v2189 = vpack.c.b16 %v2128, %v2127
          %v2190 = vpack.c.b16 %v2130, %v2129
          %v2191 = vpack.c.b16 %v2132, %v2131
          %v2192 = vpack.c.b16 %v2134, %v2133
          %v2193 = vpack.c.b16 %v2136, %v2135
          %v2194 = vpack.c.b16 %v2138, %v2137
          %v2195 = vpack.c.b16 %v2140, %v2139
          %v2196 = vpack.c.b16 %v2142, %v2141
          %v2197 = vpack.c.b16 %v2144, %v2143
          %v2198 = vpack.c.b16 %v2146, %v2145
          %v2199 = vpack.c.b16 %v2148, %v2147
          %v2200 = vpack.c.b16 %v2150, %v2149
          %v2201 = vpack.c.b16 %v2152, %v2151
          %v2202 = vpack.c.b16 %v2154, %v2153
          %v2203 = vpack.c.b16 %v2156, %v2155
          %v2204 = vpack.c.b16 %v2158, %v2157
          %v2205 = vpack.c.b16 %v2160, %v2159
          %v2206 = vpack.c.b16 %v2162, %v2161
          %v2207 = vpack.c.b16 %v2164, %v2163
          %v2208 = vpack.c.b16 %v2166, %v2165
          %v2209 = vpack.c.b16 %v2168, %v2167
          %v2210 = vpack.c.b16 %v2170, %v2169
          %v2211 = vpack.c.b16 %v2172, %v2171
          %v2212 = vpack.c.b16 %v2174, %v2173
          %v2213 = vpack.c.b16 %v2176, %v2175
          %v2214 = vpack.c.b16 %v2178, %v2177
          %v2215 = vpack.c.b16 %v2180, %v2179
          %v2216 = vpack.c.b16 %v2182, %v2181
          %v2217 = vpack.c.b16 %v2184, %v2183
          %v2218 = vpack.c.b16 %v2186, %v2185
          %2251 = vmatprep.subr.bf16.mxu0 0
          %2252 = vmatpush1.bf16.msra.mxu0 %v2187
          %2253 = vmatprep.subr.bf16.mxu0 0
          %2254 = vmatpush1.bf16.msra.mxu0 %v2188
          %2255 = vmatprep.subr.bf16.mxu0 0
          %2256 = vmatpush1.bf16.msra.mxu0 %v2189
          %2257 = vmatprep.subr.bf16.mxu0 0
          %2258 = vmatpush1.bf16.msra.mxu0 %v2190
          %2259 = vmatprep.subr.bf16.mxu0 0
          %2260 = vmatpush1.bf16.msra.mxu0 %v2191
          %2261 = vmatprep.subr.bf16.mxu0 0
          %2262 = vmatpush1.bf16.msra.mxu0 %v2192
          %2263 = vmatprep.subr.bf16.mxu0 0
          %2264 = vmatpush1.bf16.msra.mxu0 %v2193
          %2265 = vmatprep.subr.bf16.mxu0 0
          %2266 = vmatpush1.bf16.msra.mxu0 %v2194
          %2267 = vmatprep.subr.bf16.mxu0 0
          %2268 = vmatpush1.bf16.msra.mxu0 %v2195
          %2269 = vmatprep.subr.bf16.mxu0 0
          %2270 = vmatpush1.bf16.msra.mxu0 %v2196
          %2271 = vmatprep.subr.bf16.mxu0 0
          %2272 = vmatpush1.bf16.msra.mxu0 %v2197
          %2273 = vmatprep.subr.bf16.mxu0 0
          %2274 = vmatpush1.bf16.msra.mxu0 %v2198
          %2275 = vmatprep.subr.bf16.mxu0 0
          %2276 = vmatpush1.bf16.msra.mxu0 %v2199
          %2277 = vmatprep.subr.bf16.mxu0 0
          %2278 = vmatpush1.bf16.msra.mxu0 %v2200
          %2279 = vmatprep.subr.bf16.mxu0 0
          %2280 = vmatpush1.bf16.msra.mxu0 %v2201
          %2281 = vmatprep.subr.bf16.mxu0 0
          %2282 = vmatpush1.bf16.msra.mxu0 %v2202
          %2283 = vmatprep.mubr.bf16.mxu0 %v1925
          %2284 = vmatmul.mubr.bf16.gmra.mrb[0].mxu0 %v1924
          %v2285 = vpop.f32.mrb[0].mxu0
          %v2286 = vadd.f32 %v2057, %v2285
          %v2287 = vpop.f32.mrb[0].mxu0
          %v2288 = vpop.f32.mrb[0].mxu0
          %v2289 = vadd.f32 %v2057, %v2288
          %v2290 = vpop.f32.mrb[0].mxu0
          %2291 = vmatprep.mubr.bf16.mxu0 %v1929
          %2292 = vmatmul.mubr.bf16.gmra.mrb[0].mxu0 %v1928
          %v2293 = vpop.f32.mrb[0].mxu0
          %v2294 = vadd.f32 %v2057, %v2293
          %v2295 = vpop.f32.mrb[0].mxu0
          %v2296 = vpop.f32.mrb[0].mxu0
          %v2297 = vadd.f32 %v2057, %v2296
          %v2298 = vpop.f32.mrb[0].mxu0
          %2299 = vmatprep.mubr.bf16.mxu0 %v1933
          %2300 = vmatmul.mubr.bf16.gmra.mrb[0].mxu0 %v1932
          %v2301 = vpop.f32.mrb[0].mxu0
          %v2302 = vadd.f32 %v2057, %v2301
          %v2303 = vpop.f32.mrb[0].mxu0
          %v2304 = vpop.f32.mrb[0].mxu0
          %v2305 = vadd.f32 %v2057, %v2304
          %v2306 = vpop.f32.mrb[0].mxu0
          %2307 = vmatprep.mubr.bf16.mxu0 %v1937
          %2308 = vmatmul.mubr.bf16.gmra.mrb[0].mxu0 %v1936
          %v2309 = vpop.f32.mrb[0].mxu0
          %v2310 = vadd.f32 %v2057, %v2309
          %v2311 = vpop.f32.mrb[0].mxu0
          %v2312 = vpop.f32.mrb[0].mxu0
          %v2313 = vadd.f32 %v2057, %v2312
          %v2314 = vpop.f32.mrb[0].mxu0
          %2315 = vmatprep.mubr.bf16.mxu0 %v1941
          %2316 = vmatmul.mubr.bf16.gmra.mrb[0].mxu0 %v1940
          %v2317 = vpop.f32.mrb[0].mxu0
          %v2318 = vadd.f32 %v2057, %v2317
          %v2319 = vpop.f32.mrb[0].mxu0
          %v2320 = vpop.f32.mrb[0].mxu0
          %v2321 = vadd.f32 %v2057, %v2320
          %v2322 = vpop.f32.mrb[0].mxu0
          %2323 = vmatprep.mubr.bf16.mxu0 %v1945
          %2324 = vmatmul.mubr.bf16.gmra.mrb[0].mxu0 %v1944
          %v2325 = vpop.f32.mrb[0].mxu0
          %v2326 = vadd.f32 %v2057, %v2325
          %v2327 = vpop.f32.mrb[0].mxu0
          %v2328 = vpop.f32.mrb[0].mxu0
          %v2329 = vadd.f32 %v2057, %v2328
          %v2330 = vpop.f32.mrb[0].mxu0
          %2331 = vmatprep.mubr.bf16.mxu0 %v1949
          %2332 = vmatmul.mubr.bf16.gmra.mrb[0].mxu0 %v1948
          %v2333 = vpop.f32.mrb[0].mxu0
          %v2334 = vadd.f32 %v2057, %v2333
          %v2335 = vpop.f32.mrb[0].mxu0
          %v2336 = vpop.f32.mrb[0].mxu0
          %v2337 = vadd.f32 %v2057, %v2336
          %v2338 = vpop.f32.mrb[0].mxu0
          %2339 = vmatprep.mubr.bf16.mxu0 %v1953
          %2340 = vmatmul.mubr.bf16.gmra.mrb[0].mxu0 %v1952
          %v2341 = vpop.f32.mrb[0].mxu0
          %v2342 = vadd.f32 %v2057, %v2341
          %v2343 = vpop.f32.mrb[0].mxu0
          %v2344 = vpop.f32.mrb[0].mxu0
          %v2345 = vadd.f32 %v2057, %v2344
          %v2346 = vpop.f32.mrb[0].mxu0
          %2347 = vmatprep.mubr.bf16.mxu0 %v1957
          %2348 = vmatmul.mubr.bf16.gmra.mrb[0].mxu0 %v1956
          %v2349 = vpop.f32.mrb[0].mxu0
          %v2350 = vadd.f32 %v2057, %v2349
          %v2351 = vpop.f32.mrb[0].mxu0
          %v2352 = vpop.f32.mrb[0].mxu0
          %v2353 = vadd.f32 %v2057, %v2352
          %v2354 = vpop.f32.mrb[0].mxu0
          %2355 = vmatprep.mubr.bf16.mxu0 %v1961
          %2356 = vmatmul.mubr.bf16.gmra.mrb[0].mxu0 %v1960
          %v2357 = vpop.f32.mrb[0].mxu0
          %v2358 = vadd.f32 %v2057, %v2357
          %v2359 = vpop.f32.mrb[0].mxu0
          %v2360 = vpop.f32.mrb[0].mxu0
          %v2361 = vadd.f32 %v2057, %v2360
          %v2362 = vpop.f32.mrb[0].mxu0
          %2363 = vmatprep.mubr.bf16.mxu0 %v1965
          %2364 = vmatmul.mubr.bf16.gmra.mrb[0].mxu0 %v1964
          %v2365 = vpop.f32.mrb[0].mxu0
          %v2366 = vadd.f32 %v2057, %v2365
          %v2367 = vpop.f32.mrb[0].mxu0
          %v2368 = vpop.f32.mrb[0].mxu0
          %v2369 = vadd.f32 %v2057, %v2368
          %v2370 = vpop.f32.mrb[0].mxu0
          %2371 = vmatprep.mubr.bf16.mxu0 %v1969
          %2372 = vmatmul.mubr.bf16.gmra.mrb[0].mxu0 %v1968
          %v2373 = vpop.f32.mrb[0].mxu0
          %v2374 = vadd.f32 %v2057, %v2373
          %v2375 = vpop.f32.mrb[0].mxu0
          %v2376 = vpop.f32.mrb[0].mxu0
          %v2377 = vadd.f32 %v2057, %v2376
          %v2378 = vpop.f32.mrb[0].mxu0
          %2379 = vmatprep.mubr.bf16.mxu0 %v1973
          %2380 = vmatmul.mubr.bf16.gmra.mrb[0].mxu0 %v1972
          %v2381 = vpop.f32.mrb[0].mxu0
          %v2382 = vadd.f32 %v2057, %v2381
          %v2383 = vpop.f32.mrb[0].mxu0
          %v2384 = vpop.f32.mrb[0].mxu0
          %v2385 = vadd.f32 %v2057, %v2384
          %v2386 = vpop.f32.mrb[0].mxu0
          %2387 = vmatprep.mubr.bf16.mxu0 %v1977
          %2388 = vmatmul.mubr.bf16.gmra.mrb[0].mxu0 %v1976
          %v2389 = vpop.f32.mrb[0].mxu0
          %v2390 = vadd.f32 %v2057, %v2389
          %v2391 = vpop.f32.mrb[0].mxu0
          %v2392 = vpop.f32.mrb[0].mxu0
          %v2393 = vadd.f32 %v2057, %v2392
          %v2394 = vpop.f32.mrb[0].mxu0
          %2395 = vmatprep.mubr.bf16.mxu0 %v1981
          %2396 = vmatmul.mubr.bf16.gmra.mrb[0].mxu0 %v1980
          %v2397 = vpop.f32.mrb[0].mxu0
          %v2398 = vadd.f32 %v2057, %v2397
          %v2399 = vpop.f32.mrb[0].mxu0
          %v2400 = vpop.f32.mrb[0].mxu0
          %v2401 = vadd.f32 %v2057, %v2400
          %v2402 = vpop.f32.mrb[0].mxu0
          %2403 = vmatprep.mubr.bf16.mxu0 %v1985
          %2404 = vmatmul.mubr.bf16.gmra.mrb[0].mxu0 %v1984
          %v2405 = vpop.f32.mrb[0].mxu0
          %v2406 = vadd.f32 %v2057, %v2405
          %v2407 = vpop.f32.mrb[0].mxu0
          %v2408 = vpop.f32.mrb[0].mxu0
          %v2409 = vadd.f32 %v2057, %v2408
          %v2410 = vpop.f32.mrb[0].mxu0
          %2411 = vdwg.mxu0
          %2412 = vmatprep.subr.bf16.mxu0 0
          %2413 = vmatpush1.bf16.msra.mxu0 %v2203
          %2414 = vmatprep.subr.bf16.mxu0 0
          %2415 = vmatpush1.bf16.msra.mxu0 %v2204
          %2416 = vmatprep.subr.bf16.mxu0 0
          %2417 = vmatpush1.bf16.msra.mxu0 %v2205
          %2418 = vmatprep.subr.bf16.mxu0 0
          %2419 = vmatpush1.bf16.msra.mxu0 %v2206
          %2420 = vmatprep.subr.bf16.mxu0 0
          %2421 = vmatpush1.bf16.msra.mxu0 %v2207
          %2422 = vmatprep.subr.bf16.mxu0 0
          %2423 = vmatpush1.bf16.msra.mxu0 %v2208
          %2424 = vmatprep.subr.bf16.mxu0 0
          %2425 = vmatpush1.bf16.msra.mxu0 %v2209
          %2426 = vmatprep.subr.bf16.mxu0 0
          %2427 = vmatpush1.bf16.msra.mxu0 %v2210
          %2428 = vmatprep.subr.bf16.mxu0 0
          %2429 = vmatpush1.bf16.msra.mxu0 %v2211
          %2430 = vmatprep.subr.bf16.mxu0 0
          %2431 = vmatpush1.bf16.msra.mxu0 %v2212
          %2432 = vmatprep.subr.bf16.mxu0 0
          %2433 = vmatpush1.bf16.msra.mxu0 %v2213
          %2434 = vmatprep.subr.bf16.mxu0 0
          %2435 = vmatpush1.bf16.msra.mxu0 %v2214
          %2436 = vmatprep.subr.bf16.mxu0 0
          %2437 = vmatpush1.bf16.msra.mxu0 %v2215
          %2438 = vmatprep.subr.bf16.mxu0 0
          %2439 = vmatpush1.bf16.msra.mxu0 %v2216
          %2440 = vmatprep.subr.bf16.mxu0 0
          %2441 = vmatpush1.bf16.msra.mxu0 %v2217
          %2442 = vmatprep.subr.bf16.mxu0 0
          %2443 = vmatpush1.bf16.msra.mxu0 %v2218
          %2444 = vmatprep.mubr.bf16.mxu0 %v1927
          %2445 = vmatmul.mubr.bf16.gmra.mrb[0].mxu0 %v1926
          %v2446 = vpop.f32.mrb[0].mxu0
          %v2447 = vadd.f32 %v2286, %v2446
          %v2448 = vpop.f32.mrb[0].mxu0
          %v2449 = vpop.f32.mrb[0].mxu0
          %v2450 = vadd.f32 %v2289, %v2449
          %v2451 = vpop.f32.mrb[0].mxu0
          %2452 = vmatprep.mubr.bf16.mxu0 %v1931
          %2453 = vmatmul.mubr.bf16.gmra.mrb[0].mxu0 %v1930
          %v2454 = vpop.f32.mrb[0].mxu0
          %v2455 = vadd.f32 %v2294, %v2454
          %v2456 = vpop.f32.mrb[0].mxu0
          %v2457 = vpop.f32.mrb[0].mxu0
          %v2458 = vadd.f32 %v2297, %v2457
          %v2459 = vpop.f32.mrb[0].mxu0
          %2460 = vmatprep.mubr.bf16.mxu0 %v1935
          %2461 = vmatmul.mubr.bf16.gmra.mrb[0].mxu0 %v1934
          %v2462 = vpop.f32.mrb[0].mxu0
          %v2463 = vadd.f32 %v2302, %v2462
          %v2464 = vpop.f32.mrb[0].mxu0
          %v2465 = vpop.f32.mrb[0].mxu0
          %v2466 = vadd.f32 %v2305, %v2465
          %v2467 = vpop.f32.mrb[0].mxu0
          %2468 = vmatprep.mubr.bf16.mxu0 %v1939
          %2469 = vmatmul.mubr.bf16.gmra.mrb[0].mxu0 %v1938
          %v2470 = vpop.f32.mrb[0].mxu0
          %v2471 = vadd.f32 %v2310, %v2470
          %v2472 = vpop.f32.mrb[0].mxu0
          %v2473 = vpop.f32.mrb[0].mxu0
          %v2474 = vadd.f32 %v2313, %v2473
          %v2475 = vpop.f32.mrb[0].mxu0
          %2476 = vmatprep.mubr.bf16.mxu0 %v1943
          %2477 = vmatmul.mubr.bf16.gmra.mrb[0].mxu0 %v1942
          %v2478 = vpop.f32.mrb[0].mxu0
          %v2479 = vadd.f32 %v2318, %v2478
          %v2480 = vpop.f32.mrb[0].mxu0
          %v2481 = vpop.f32.mrb[0].mxu0
          %v2482 = vadd.f32 %v2321, %v2481
          %v2483 = vpop.f32.mrb[0].mxu0
          %2484 = vmatprep.mubr.bf16.mxu0 %v1947
          %2485 = vmatmul.mubr.bf16.gmra.mrb[0].mxu0 %v1946
          %v2486 = vpop.f32.mrb[0].mxu0
          %v2487 = vadd.f32 %v2326, %v2486
          %v2488 = vpop.f32.mrb[0].mxu0
          %v2489 = vpop.f32.mrb[0].mxu0
          %v2490 = vadd.f32 %v2329, %v2489
          %v2491 = vpop.f32.mrb[0].mxu0
          %2492 = vmatprep.mubr.bf16.mxu0 %v1951
          %2493 = vmatmul.mubr.bf16.gmra.mrb[0].mxu0 %v1950
          %v2494 = vpop.f32.mrb[0].mxu0
          %v2495 = vadd.f32 %v2334, %v2494
          %v2496 = vpop.f32.mrb[0].mxu0
          %v2497 = vpop.f32.mrb[0].mxu0
          %v2498 = vadd.f32 %v2337, %v2497
          %v2499 = vpop.f32.mrb[0].mxu0
          %2500 = vmatprep.mubr.bf16.mxu0 %v1955
          %2501 = vmatmul.mubr.bf16.gmra.mrb[0].mxu0 %v1954
          %v2502 = vpop.f32.mrb[0].mxu0
          %v2503 = vadd.f32 %v2342, %v2502
          %v2504 = vpop.f32.mrb[0].mxu0
          %v2505 = vpop.f32.mrb[0].mxu0
          %v2506 = vadd.f32 %v2345, %v2505
          %v2507 = vpop.f32.mrb[0].mxu0
          %2508 = vmatprep.mubr.bf16.mxu0 %v1959
          %2509 = vmatmul.mubr.bf16.gmra.mrb[0].mxu0 %v1958
          %v2510 = vpop.f32.mrb[0].mxu0
          %v2511 = vadd.f32 %v2350, %v2510
          %v2512 = vpop.f32.mrb[0].mxu0
          %v2513 = vpop.f32.mrb[0].mxu0
          %v2514 = vadd.f32 %v2353, %v2513
          %v2515 = vpop.f32.mrb[0].mxu0
          %2516 = vmatprep.mubr.bf16.mxu0 %v1963
          %2517 = vmatmul.mubr.bf16.gmra.mrb[0].mxu0 %v1962
          %v2518 = vpop.f32.mrb[0].mxu0
          %v2519 = vadd.f32 %v2358, %v2518
          %v2520 = vpop.f32.mrb[0].mxu0
          %v2521 = vpop.f32.mrb[0].mxu0
          %v2522 = vadd.f32 %v2361, %v2521
          %v2523 = vpop.f32.mrb[0].mxu0
          %2524 = vmatprep.mubr.bf16.mxu0 %v1967
          %2525 = vmatmul.mubr.bf16.gmra.mrb[0].mxu0 %v1966
          %v2526 = vpop.f32.mrb[0].mxu0
          %v2527 = vadd.f32 %v2366, %v2526
          %v2528 = vpop.f32.mrb[0].mxu0
          %v2529 = vpop.f32.mrb[0].mxu0
          %v2530 = vadd.f32 %v2369, %v2529
          %v2531 = vpop.f32.mrb[0].mxu0
          %2532 = vmatprep.mubr.bf16.mxu0 %v1971
          %2533 = vmatmul.mubr.bf16.gmra.mrb[0].mxu0 %v1970
          %v2534 = vpop.f32.mrb[0].mxu0
          %v2535 = vadd.f32 %v2374, %v2534
          %v2536 = vpop.f32.mrb[0].mxu0
          %v2537 = vpop.f32.mrb[0].mxu0
          %v2538 = vadd.f32 %v2377, %v2537
          %v2539 = vpop.f32.mrb[0].mxu0
          %2540 = vmatprep.mubr.bf16.mxu0 %v1975
          %2541 = vmatmul.mubr.bf16.gmra.mrb[0].mxu0 %v1974
          %v2542 = vpop.f32.mrb[0].mxu0
          %v2543 = vadd.f32 %v2382, %v2542
          %v2544 = vpop.f32.mrb[0].mxu0
          %v2545 = vpop.f32.mrb[0].mxu0
          %v2546 = vadd.f32 %v2385, %v2545
          %v2547 = vpop.f32.mrb[0].mxu0
          %2548 = vmatprep.mubr.bf16.mxu0 %v1979
          %2549 = vmatmul.mubr.bf16.gmra.mrb[0].mxu0 %v1978
          %v2550 = vpop.f32.mrb[0].mxu0
          %v2551 = vadd.f32 %v2390, %v2550
          %v2552 = vpop.f32.mrb[0].mxu0
          %v2553 = vpop.f32.mrb[0].mxu0
          %v2554 = vadd.f32 %v2393, %v2553
          %v2555 = vpop.f32.mrb[0].mxu0
          %2556 = vmatprep.mubr.bf16.mxu0 %v1983
          %2557 = vmatmul.mubr.bf16.gmra.mrb[0].mxu0 %v1982
          %v2558 = vpop.f32.mrb[0].mxu0
          %v2559 = vadd.f32 %v2398, %v2558
          %v2560 = vpop.f32.mrb[0].mxu0
          %v2561 = vpop.f32.mrb[0].mxu0
          %v2562 = vadd.f32 %v2401, %v2561
          %v2563 = vpop.f32.mrb[0].mxu0
          %2564 = vmatprep.mubr.bf16.mxu0 %v1987
          %2565 = vmatmul.mubr.bf16.gmra.mrb[0].mxu0 %v1986
          %v2566 = vpop.f32.mrb[0].mxu0
          %v2567 = vadd.f32 %v2406, %v2566
          %v2568 = vpop.f32.mrb[0].mxu0
          %v2569 = vpop.f32.mrb[0].mxu0
          %v2570 = vadd.f32 %v2409, %v2569
          %v2571 = vpop.f32.mrb[0].mxu0
          %2572 = vdwg.mxu0
          %v2573 = vmax.f32 %v2447, 0.0
          %v2574 = vmax.f32 %v2450, 0.0
          %v2575 = vmax.f32 %v2455, 0.0
          %v2576 = vmax.f32 %v2458, 0.0
          %v2577 = vmax.f32 %v2463, 0.0
          %v2578 = vmax.f32 %v2466, 0.0
          %v2579 = vmax.f32 %v2471, 0.0
          %v2580 = vmax.f32 %v2474, 0.0
          %v2581 = vmax.f32 %v2479, 0.0
          %v2582 = vmax.f32 %v2482, 0.0
          %v2583 = vmax.f32 %v2487, 0.0
          %v2584 = vmax.f32 %v2490, 0.0
          %v2585 = vmax.f32 %v2495, 0.0
          %v2586 = vmax.f32 %v2498, 0.0
          %v2587 = vmax.f32 %v2503, 0.0
          %v2588 = vmax.f32 %v2506, 0.0
          %v2589 = vmax.f32 %v2511, 0.0
          %v2590 = vmax.f32 %v2514, 0.0
          %v2591 = vmax.f32 %v2519, 0.0
          %v2592 = vmax.f32 %v2522, 0.0
          %v2593 = vmax.f32 %v2527, 0.0
          %v2594 = vmax.f32 %v2530, 0.0
          %v2595 = vmax.f32 %v2535, 0.0
          %v2596 = vmax.f32 %v2538, 0.0
          %v2597 = vmax.f32 %v2543, 0.0
          %v2598 = vmax.f32 %v2546, 0.0
          %v2599 = vmax.f32 %v2551, 0.0
          %v2600 = vmax.f32 %v2554, 0.0
          %v2601 = vmax.f32 %v2559, 0.0
          %v2602 = vmax.f32 %v2562, 0.0
          %v2603 = vmax.f32 %v2567, 0.0
          %v2604 = vmax.f32 %v2570, 0.0
          %v2605 = vpack.c.bf16 %v2574, %v2573
          %v2606 = vpack.c.bf16 %v2576, %v2575
          %v2607 = vpack.c.bf16 %v2578, %v2577
          %v2608 = vpack.c.bf16 %v2580, %v2579
          %v2609 = vpack.c.bf16 %v2582, %v2581
          %v2610 = vpack.c.bf16 %v2584, %v2583
          %v2611 = vpack.c.bf16 %v2586, %v2585
          %v2612 = vpack.c.bf16 %v2588, %v2587
          %v2613 = vpack.c.bf16 %v2590, %v2589
          %v2614 = vpack.c.bf16 %v2592, %v2591
          %v2615 = vpack.c.bf16 %v2594, %v2593
          %v2616 = vpack.c.bf16 %v2596, %v2595
          %v2617 = vpack.c.bf16 %v2598, %v2597
          %v2618 = vpack.c.bf16 %v2600, %v2599
          %v2619 = vpack.c.bf16 %v2602, %v2601
          %v2620 = vpack.c.bf16 %v2604, %v2603
          %v2621 = vld [vmem:[#allocation12] sm:$0xf]
          %v2622 = vld [vmem:[#allocation12 + $0x4] sm:$0xf]
          %v2623 = vld [vmem:[#allocation12 + $0x8] sm:$0xf]
          %v2624 = vld [vmem:[#allocation12 + $0xc] sm:$0xf]
          %v2625 = vld [vmem:[#allocation12 + $0x10] sm:$0xf]
          %v2626 = vld [vmem:[#allocation12 + $0x14] sm:$0xf]
          %v2627 = vld [vmem:[#allocation12 + $0x18] sm:$0xf]
          %v2628 = vld [vmem:[#allocation12 + $0x1c] sm:$0xf]
          %v2629 = vld [vmem:[#allocation12 + $0x20] sm:$0xf]
          %v2630 = vld [vmem:[#allocation12 + $0x24] sm:$0xf]
          %v2631 = vld [vmem:[#allocation12 + $0x28] sm:$0xf]
          %v2632 = vld [vmem:[#allocation12 + $0x2c] sm:$0xf]
          %v2633 = vld [vmem:[#allocation12 + $0x30] sm:$0xf]
          %v2634 = vld [vmem:[#allocation12 + $0x34] sm:$0xf]
          %v2635 = vld [vmem:[#allocation12 + $0x38] sm:$0xf]
          %v2636 = vld [vmem:[#allocation12 + $0x3c] sm:$0xf]
          %v2637 = vld [vmem:[#allocation14] sm:$0x1]
          %v2639 = vlaneseq
          %v2640 = vshrl.u32 %v2639, 7
          %v2641 = vsub.s32 0, %v2640
          %v2642 = vrot.slane %v2637, %v2641
          %v2660 = vunpack.c.l.b16 %v2621
          %v2661 = vunpack.c.l.b16 %v2622
          %v2662 = vunpack.c.l.b16 %v2623
          %v2663 = vunpack.c.l.b16 %v2624
          %v2664 = vunpack.c.l.b16 %v2625
          %v2665 = vunpack.c.l.b16 %v2626
          %v2666 = vunpack.c.l.b16 %v2627
          %v2667 = vunpack.c.l.b16 %v2628
          %v2668 = vunpack.c.l.b16 %v2629
          %v2669 = vunpack.c.l.b16 %v2630
          %v2670 = vunpack.c.l.b16 %v2631
          %v2671 = vunpack.c.l.b16 %v2632
          %v2672 = vunpack.c.l.b16 %v2633
          %v2673 = vunpack.c.l.b16 %v2634
          %v2674 = vunpack.c.l.b16 %v2635
          %v2675 = vunpack.c.l.b16 %v2636
          %v2676 = vpack.c.b16 %v2661, %v2660
          %v2677 = vpack.c.b16 %v2663, %v2662
          %v2678 = vpack.c.b16 %v2665, %v2664
          %v2679 = vpack.c.b16 %v2667, %v2666
          %v2680 = vpack.c.b16 %v2669, %v2668
          %v2681 = vpack.c.b16 %v2671, %v2670
          %v2682 = vpack.c.b16 %v2673, %v2672
          %v2683 = vpack.c.b16 %v2675, %v2674
          %2692 = vmatprep.subr.bf16.mxu0 0
          %2693 = vmatpush1.bf16.msra.mxu0 %v2676
          %2694 = vmatprep.subr.bf16.mxu0 0
          %2695 = vmatpush1.bf16.msra.mxu0 %v2677
          %2696 = vmatprep.subr.bf16.mxu0 0
          %2697 = vmatpush1.bf16.msra.mxu0 %v2678
          %2698 = vmatprep.subr.bf16.mxu0 0
          %2699 = vmatpush1.bf16.msra.mxu0 %v2679
          %2700 = vmatprep.subr.bf16.mxu0 0
          %2701 = vmatpush1.bf16.msra.mxu0 %v2680
          %2702 = vmatprep.subr.bf16.mxu0 0
          %2703 = vmatpush1.bf16.msra.mxu0 %v2681
          %2704 = vmatprep.subr.bf16.mxu0 0
          %2705 = vmatpush1.bf16.msra.mxu0 %v2682
          %2706 = vmatprep.subr.bf16.mxu0 0
          %2707 = vmatpush1.bf16.msra.mxu0 %v2683
          %2708 = vmatprep.subr.bf16.mxu0 0
          %2709 = vmatpush1.bf16.msra.mxu0 0
          %2710 = vmatprep.subr.bf16.mxu0 0
          %2711 = vmatpush1.bf16.msra.mxu0 0
          %2712 = vmatprep.subr.bf16.mxu0 0
          %2713 = vmatpush1.bf16.msra.mxu0 0
          %2714 = vmatprep.subr.bf16.mxu0 0
          %2715 = vmatpush1.bf16.msra.mxu0 0
          %2716 = vmatprep.subr.bf16.mxu0 0
          %2717 = vmatpush1.bf16.msra.mxu0 0
          %2718 = vmatprep.subr.bf16.mxu0 0
          %2719 = vmatpush1.bf16.msra.mxu0 0
          %2720 = vmatprep.subr.bf16.mxu0 0
          %2721 = vmatpush1.bf16.msra.mxu0 0
          %2722 = vmatprep.subr.bf16.mxu0 0
          %2723 = vmatpush1.bf16.msra.mxu0 0
          %2724 = vmatprep.mubr.bf16.mxu0 0
          %2725 = vmatmul.mubr.bf16.gmra.mrb[0].mxu0 %v2605
          %v2726 = vpop.f32.mrb[0].mxu0
          %v2727 = vadd.f32 %v2642, %v2726
          %v2728 = vpop.f32.mrb[0].mxu0
          %v2729 = vpop.f32.mrb[0].mxu0
          %v2730 = vadd.f32 %v2642, %v2729
          %v2731 = vpop.f32.mrb[0].mxu0
          %2732 = vmatprep.mubr.bf16.mxu0 0
          %2733 = vmatmul.mubr.bf16.gmra.mrb[0].mxu0 %v2606
          %v2734 = vpop.f32.mrb[0].mxu0
          %v2735 = vadd.f32 %v2642, %v2734
          %v2736 = vpop.f32.mrb[0].mxu0
          %v2737 = vpop.f32.mrb[0].mxu0
          %v2738 = vadd.f32 %v2642, %v2737
          %v2739 = vpop.f32.mrb[0].mxu0
          %2740 = vmatprep.mubr.bf16.mxu0 0
          %2741 = vmatmul.mubr.bf16.gmra.mrb[0].mxu0 %v2607
          %v2742 = vpop.f32.mrb[0].mxu0
          %v2743 = vadd.f32 %v2642, %v2742
          %v2744 = vpop.f32.mrb[0].mxu0
          %v2745 = vpop.f32.mrb[0].mxu0
          %v2746 = vadd.f32 %v2642, %v2745
          %v2747 = vpop.f32.mrb[0].mxu0
          %2748 = vmatprep.mubr.bf16.mxu0 0
          %2749 = vmatmul.mubr.bf16.gmra.mrb[0].mxu0 %v2608
          %v2750 = vpop.f32.mrb[0].mxu0
          %v2751 = vadd.f32 %v2642, %v2750
          %v2752 = vpop.f32.mrb[0].mxu0
          %v2753 = vpop.f32.mrb[0].mxu0
          %v2754 = vadd.f32 %v2642, %v2753
          %v2755 = vpop.f32.mrb[0].mxu0
          %2756 = vmatprep.mubr.bf16.mxu0 0
          %2757 = vmatmul.mubr.bf16.gmra.mrb[0].mxu0 %v2609
          %v2758 = vpop.f32.mrb[0].mxu0
          %v2759 = vadd.f32 %v2642, %v2758
          %v2760 = vpop.f32.mrb[0].mxu0
          %v2761 = vpop.f32.mrb[0].mxu0
          %v2762 = vadd.f32 %v2642, %v2761
          %v2763 = vpop.f32.mrb[0].mxu0
          %2764 = vmatprep.mubr.bf16.mxu0 0
          %2765 = vmatmul.mubr.bf16.gmra.mrb[0].mxu0 %v2610
          %v2766 = vpop.f32.mrb[0].mxu0
          %v2767 = vadd.f32 %v2642, %v2766
          %v2768 = vpop.f32.mrb[0].mxu0
          %v2769 = vpop.f32.mrb[0].mxu0
          %v2770 = vadd.f32 %v2642, %v2769
          %v2771 = vpop.f32.mrb[0].mxu0
          %2772 = vmatprep.mubr.bf16.mxu0 0
          %2773 = vmatmul.mubr.bf16.gmra.mrb[0].mxu0 %v2611
          %v2774 = vpop.f32.mrb[0].mxu0
          %v2775 = vadd.f32 %v2642, %v2774
          %v2776 = vpop.f32.mrb[0].mxu0
          %v2777 = vpop.f32.mrb[0].mxu0
          %v2778 = vadd.f32 %v2642, %v2777
          %v2779 = vpop.f32.mrb[0].mxu0
          %2780 = vmatprep.mubr.bf16.mxu0 0
          %2781 = vmatmul.mubr.bf16.gmra.mrb[0].mxu0 %v2612
          %v2782 = vpop.f32.mrb[0].mxu0
          %v2783 = vadd.f32 %v2642, %v2782
          %v2784 = vpop.f32.mrb[0].mxu0
          %v2785 = vpop.f32.mrb[0].mxu0
          %v2786 = vadd.f32 %v2642, %v2785
          %v2787 = vpop.f32.mrb[0].mxu0
          %2788 = vmatprep.mubr.bf16.mxu0 0
          %2789 = vmatmul.mubr.bf16.gmra.mrb[0].mxu0 %v2613
          %v2790 = vpop.f32.mrb[0].mxu0
          %v2791 = vadd.f32 %v2642, %v2790
          %v2792 = vpop.f32.mrb[0].mxu0
          %v2793 = vpop.f32.mrb[0].mxu0
          %v2794 = vadd.f32 %v2642, %v2793
          %v2795 = vpop.f32.mrb[0].mxu0
          %2796 = vmatprep.mubr.bf16.mxu0 0
          %2797 = vmatmul.mubr.bf16.gmra.mrb[0].mxu0 %v2614
          %v2798 = vpop.f32.mrb[0].mxu0
          %v2799 = vadd.f32 %v2642, %v2798
          %v2800 = vpop.f32.mrb[0].mxu0
          %v2801 = vpop.f32.mrb[0].mxu0
          %v2802 = vadd.f32 %v2642, %v2801
          %v2803 = vpop.f32.mrb[0].mxu0
          %2804 = vmatprep.mubr.bf16.mxu0 0
          %2805 = vmatmul.mubr.bf16.gmra.mrb[0].mxu0 %v2615
          %v2806 = vpop.f32.mrb[0].mxu0
          %v2807 = vadd.f32 %v2642, %v2806
          %v2808 = vpop.f32.mrb[0].mxu0
          %v2809 = vpop.f32.mrb[0].mxu0
          %v2810 = vadd.f32 %v2642, %v2809
          %v2811 = vpop.f32.mrb[0].mxu0
          %2812 = vmatprep.mubr.bf16.mxu0 0
          %2813 = vmatmul.mubr.bf16.gmra.mrb[0].mxu0 %v2616
          %v2814 = vpop.f32.mrb[0].mxu0
          %v2815 = vadd.f32 %v2642, %v2814
          %v2816 = vpop.f32.mrb[0].mxu0
          %v2817 = vpop.f32.mrb[0].mxu0
          %v2818 = vadd.f32 %v2642, %v2817
          %v2819 = vpop.f32.mrb[0].mxu0
          %2820 = vmatprep.mubr.bf16.mxu0 0
          %2821 = vmatmul.mubr.bf16.gmra.mrb[0].mxu0 %v2617
          %v2822 = vpop.f32.mrb[0].mxu0
          %v2823 = vadd.f32 %v2642, %v2822
          %v2824 = vpop.f32.mrb[0].mxu0
          %v2825 = vpop.f32.mrb[0].mxu0
          %v2826 = vadd.f32 %v2642, %v2825
          %v2827 = vpop.f32.mrb[0].mxu0
          %2828 = vmatprep.mubr.bf16.mxu0 0
          %2829 = vmatmul.mubr.bf16.gmra.mrb[0].mxu0 %v2618
          %v2830 = vpop.f32.mrb[0].mxu0
          %v2831 = vadd.f32 %v2642, %v2830
          %v2832 = vpop.f32.mrb[0].mxu0
          %v2833 = vpop.f32.mrb[0].mxu0
          %v2834 = vadd.f32 %v2642, %v2833
          %v2835 = vpop.f32.mrb[0].mxu0
          %2836 = vmatprep.mubr.bf16.mxu0 0
          %2837 = vmatmul.mubr.bf16.gmra.mrb[0].mxu0 %v2619
          %v2838 = vpop.f32.mrb[0].mxu0
          %v2839 = vadd.f32 %v2642, %v2838
          %v2840 = vpop.f32.mrb[0].mxu0
          %v2841 = vpop.f32.mrb[0].mxu0
          %v2842 = vadd.f32 %v2642, %v2841
          %v2843 = vpop.f32.mrb[0].mxu0
          %2844 = vmatprep.mubr.bf16.mxu0 0
          %2845 = vmatmul.mubr.bf16.gmra.mrb[0].mxu0 %v2620
          %v2846 = vpop.f32.mrb[0].mxu0
          %v2847 = vadd.f32 %v2642, %v2846
          %v2848 = vpop.f32.mrb[0].mxu0
          %v2849 = vpop.f32.mrb[0].mxu0
          %v2850 = vadd.f32 %v2642, %v2849
          %v2851 = vpop.f32.mrb[0].mxu0
          %2852 = vdwg.mxu0
          %2853 = vst [vmem:[%s407] sm:$0xff] %v2727
          %2854 = vst [vmem:[%s407 + $0x8] sm:$0xff] %v2730
          %2855 = vst [vmem:[%s407 + $0x10] sm:$0xff] %v2735
          %2856 = vst [vmem:[%s407 + $0x18] sm:$0xff] %v2738
          %2857 = vst [vmem:[%s407 + $0x20] sm:$0xff] %v2743
          %2858 = vst [vmem:[%s407 + $0x28] sm:$0xff] %v2746
          %2859 = vst [vmem:[%s407 + $0x30] sm:$0xff] %v2751
          %2860 = vst [vmem:[%s407 + $0x38] sm:$0xff] %v2754
          %2861 = vst [vmem:[%s407 + $0x40] sm:$0xff] %v2759
          %2862 = vst [vmem:[%s407 + $0x48] sm:$0xff] %v2762
          %2863 = vst [vmem:[%s407 + $0x50] sm:$0xff] %v2767
          %2864 = vst [vmem:[%s407 + $0x58] sm:$0xff] %v2770
          %2865 = vst [vmem:[%s407 + $0x60] sm:$0xff] %v2775
          %2866 = vst [vmem:[%s407 + $0x68] sm:$0xff] %v2778
          %2867 = vst [vmem:[%s407 + $0x70] sm:$0xff] %v2783
          %2868 = vst [vmem:[%s407 + $0x78] sm:$0xff] %v2786
          %2869 = vst [vmem:[%s407 + $0x80] sm:$0xff] %v2791
          %2870 = vst [vmem:[%s407 + $0x88] sm:$0xff] %v2794
          %2871 = vst [vmem:[%s407 + $0x90] sm:$0xff] %v2799
          %2872 = vst [vmem:[%s407 + $0x98] sm:$0xff] %v2802
          %2873 = vst [vmem:[%s407 + $0xa0] sm:$0xff] %v2807
          %2874 = vst [vmem:[%s407 + $0xa8] sm:$0xff] %v2810
          %2875 = vst [vmem:[%s407 + $0xb0] sm:$0xff] %v2815
          %2876 = vst [vmem:[%s407 + $0xb8] sm:$0xff] %v2818
          %2877 = vst [vmem:[%s407 + $0xc0] sm:$0xff] %v2823
          %2878 = vst [vmem:[%s407 + $0xc8] sm:$0xff] %v2826
          %2879 = vst [vmem:[%s407 + $0xd0] sm:$0xff] %v2831
          %2880 = vst [vmem:[%s407 + $0xd8] sm:$0xff] %v2834
          %2881 = vst [vmem:[%s407 + $0xe0] sm:$0xff] %v2839
          %2882 = vst [vmem:[%s407 + $0xe8] sm:$0xff] %v2842
          %2883 = vst [vmem:[%s407 + $0xf0] sm:$0xff] %v2847
          %2884 = vst [vmem:[%s407 + $0xf8] sm:$0xff] %v2850
        $region84: #{dnn_forward.1} parent=47 // pred_fallthru
          _
        %s2885 = sand.u32 %s206, 1
        %s2886 = scalar_lea.sflag [#allocation5], %s2885
        %s2887 = sand.u32 %s206, 1
        %s2888 = smul.addr %s2887, 256
        %s2889 = scalar_lea.vmem [#allocation15], %s2888
        // Predicated region
        $region85: #{dnn_forward.1} parent=47 // pred_check
          %p2890 = pneg %p216
        $region86: #{dnn_forward.1} parent=47 // pred_check_branch
          %2892 = sbr.rel (%p2890) target = $region88
        $region87: #{dnn_forward.1} parent=47 // pred_region
          %s2893 = smul.u32 32, %s31
          %s2894 = ssub.s32 38, %s2893
          %p2895 = scmp.lt.s32.totalorder %s2894, 32
          %s2896 = scalar_select %p2895, %s2894, 32
          %s2897 = smul.u32 128, %s2896
          %s2899 = ssub.s32 4096, %s2897
          %2900 = vsyncadd %s2886, %s2899
          %p2901 = scmp.ne.s32.totalorder 0, %s2897
          %s2902 = smul.addr %s2893, 128
          %s2903 = scalar_lea.hbm %s7, %s2902
          %s2904 = smul.u32 8, %s2896
          %s2905 = sshll.u32 %s2889, 4
          %s2906 = int_to_ptr.vmem [resolvable:$true] %s2905
          %s2907 = sshll.u32 %s2904, 4
          %2911 = dma.vmem_to_hbm [thread:$0]  (%p2901), %s2906, %s2907, %s2903, %s2886, 128, 128, 8
        $region88: #{dnn_forward.1} parent=47 // pred_fallthru
          _
      $region48: #{dnn_forward.1} parent=5 // pred_fallthru
        _
      %p2912 = scmp.le.s32.totalorder 2, %s22
      // Predicated region
      $region89: #{dnn_forward.1} parent=5 // pred_check
        %p2913 = pneg %p2912
      $region90: #{dnn_forward.1} parent=5 // pred_check_branch
        %2915 = sbr.rel (%p2913) target = $region92
      $region91: #{dnn_forward.1} parent=5 // pred_region
        %s2916 = ssub.s32 %s22, 2
        // Predicated region
        $region93: #{dnn_forward.1} parent=91 // pred_check
          %p2917 = pneg %p222
        $region94: #{dnn_forward.1} parent=91 // pred_check_branch
          %2919 = sbr.rel (%p2917) target = $region96
        $region95: #{dnn_forward.1} parent=91 // pred_region
          %s2920 = sand.u32 %s207, 1
          %s2921 = scalar_lea.sflag [#allocation5], %s2920
          %s2922 = sand.u32 %s207, 1
          %s2923 = smul.addr %s2922, 256
          %s2924 = scalar_lea.vmem [#allocation15], %s2923
          %2925 = dma.done %s2921, 4096
        $region96: #{dnn_forward.1} parent=91 // pred_fallthru
          _
      $region92: #{dnn_forward.1} parent=5 // pred_fallthru
        _
    $region6: #{dnn_forward.1} parent=1 // loop_footer
      %s26 = sadd.s32 1, %s22
    $region7: #{dnn_forward.1} parent=1 // loop_footer_branch
      %21 = sbr.rel target = $region3
    $region8: #{dnn_forward.1} parent=1 // loop_exit
      _
    %2926 = vsyncpa [#allocation4], 1
    %s2927 = scalar_lea.sflag [#allocation4], 1
    %2928 = vsyncpa %s2927, 1
    %2929 = vsyncpa [#allocation7], 1
    %2930 = vsyncpa [#allocation10], 1
    %2931 = vsyncpa [#allocation13], 1
    %2932 = vsyncpa [#allocation5], 1
    %s2933 = scalar_lea.sflag [#allocation5], 1
    %2934 = vsyncpa %s2933, 1

</llo_original>
